<compile_context>
chip_gen: v7x
topology: tpu7x:2x2x1
jax: 0.10.0
libtpu: 0.0.40
codegen_flags: <defaults>
</compile_context>

<pallas_src>
import math
import functools

import jax
import jax.numpy as jnp
from jax import lax
from jax.experimental import pallas as pl
from jax.experimental.pallas import tpu as pltpu


def encoder_block_kernel(
    vl_ref,                                  # SMEM (B,) int32 valid lens (full array)
    x_ref,                                   # (R, D) f32   rows = Bb*S
    wq_ref, wk_ref, wv_ref, wo_ref,          # (D, D) matmul dtype
    w1_ref, b1_ref,                          # (D, F) matmul dtype, (1, F) f32
    w2_ref, b2_ref,                          # (F, D) matmul dtype, (1, D) f32
    g1_ref, be1_ref,                         # (1, D) layernorm 1 scale / shift (f32)
    g2_ref, be2_ref,                         # (1, D) layernorm 2 scale / shift (f32)
    o_ref,                                   # (R, D) f32
    q_s, k_s, v_s,                           # VMEM (R, D) matmul dtype scratch
    s_s,                                     # VMEM (H*S, S) f32 score scratch
    attn_s,                                  # VMEM (R, D) f32 head-concat attention
    *, num_heads, seq_len, hidden, batch_block, eps=1e-5,
):
    S, D, H, Bb = seq_len, hidden, num_heads, batch_block
    dh = D // H
    mm_dtype = wq_ref.dtype
    scale = 1.0 / math.sqrt(dh)

    x_mm = x_ref[...].astype(mm_dtype)                # (R, D) MXU operand dtype

    # --- Lane-dense QKV projections: three (R, D) @ (D, D) matmuls, f32 accum.
    # Results land in mm_dtype scratch so the attention core also runs on
    # MXU-native (bf16-capable) operands.
    q_s[...] = (jnp.dot(x_mm, wq_ref[...], preferred_element_type=jnp.float32)
                * scale).astype(mm_dtype)
    k_s[...] = jnp.dot(x_mm, wk_ref[...],
                       preferred_element_type=jnp.float32).astype(mm_dtype)
    v_s[...] = jnp.dot(x_mm, wv_ref[...],
                       preferred_element_type=jnp.float32).astype(mm_dtype)

    # Mask iota computed ONCE per grid step (hoisted out of the batch loop).
    col = lax.broadcasted_iota(jnp.int32, (H * S, S), 1)
    base = pl.program_id(0) * Bb

    def attn_body(b, carry):
        vl = vl_ref[base + b]
        row = pl.multiple_of(b * S, S)
        qb = q_s[pl.ds(row, S), :]                    # (S, D) mm_dtype (pre-scaled)
        kbT = k_s[pl.ds(row, S), :].T                 # (D, S): ONE transpose / batch
        vb = v_s[pl.ds(row, S), :]                    # (S, D)

        # Per-head scores written straight into VMEM scratch (no concatenates).
        for h in range(H):
            s_s[h * S:(h + 1) * S, :] = jnp.dot(
                qb[:, h * dh:(h + 1) * dh],
                kbT[h * dh:(h + 1) * dh, :],
                preferred_element_type=jnp.float32)

        # Single masked-softmax pass over all heads (d2l masked_softmax semantics).
        s = jnp.where(col < vl, s_s[...], -1e6)
        s = s - jnp.max(s, axis=-1, keepdims=True)
        p = jnp.exp(s)
        p = p * pl.reciprocal(jnp.sum(p, axis=-1, keepdims=True), approx=True)
        p = p.astype(mm_dtype)                        # bf16-capable PV operands

        # Per-head PV, written straight into the head-concat attention scratch.
        for h in range(H):
            attn_s[pl.ds(row, S), h * dh:(h + 1) * dh] = jnp.dot(
                p[h * S:(h + 1) * S, :],
                vb[:, h * dh:(h + 1) * dh],
                preferred_element_type=jnp.float32)
        return carry

    lax.fori_loop(0, Bb, attn_body, 0)

    # --- Output projection: ONE lane-dense (R, D) @ (D, D) matmul ---
    attn = jnp.dot(attn_s[...].astype(mm_dtype), wo_ref[...],
                   preferred_element_type=jnp.float32)

    # --- AddNorm 1 (dropout = identity) ---
    y = attn + x_ref[...]
    mu = jnp.mean(y, axis=-1, keepdims=True)
    var = jnp.mean((y - mu) ** 2, axis=-1, keepdims=True)
    y = (y - mu) * lax.rsqrt(var + eps) * g1_ref[...] + be1_ref[...]

    # --- Position-wise FFN (whole row block at once) ---
    h1 = jnp.dot(y.astype(mm_dtype), w1_ref[...],
                 preferred_element_type=jnp.float32) + b1_ref[...]
    h1 = jnp.maximum(h1, 0.0)
    f = jnp.dot(h1.astype(mm_dtype), w2_ref[...],
                preferred_element_type=jnp.float32) + b2_ref[...]

    # --- AddNorm 2 ---
    z = f + y
    mu2 = jnp.mean(z, axis=-1, keepdims=True)
    var2 = jnp.mean((z - mu2) ** 2, axis=-1, keepdims=True)
    o_ref[...] = (z - mu2) * lax.rsqrt(var2 + eps) * g2_ref[...] + be2_ref[...]


def _pick_batch_block(B, S, target_rows=512):
    """Largest batch tile dividing B with ~target_rows rows, keeping >= 2 grid
    steps so both v7x TensorCores get work via the 'parallel' grid axis."""
    bb = max(1, min(B, target_rows // max(S, 1)))
    bb = min(bb, max(1, B // 2))
    while B % bb != 0:
        bb -= 1
    return bb


def encoder_block(x, valid_lens, params, *, num_heads,
                  matmul_dtype=jnp.bfloat16):
    """x: (B, S, D) f32, valid_lens: (B,) int32."""
    B, S, D = x.shape
    H = num_heads
    wq, wk, wv, wo, w1, b1, w2, b2, g1, be1, g2, be2 = params
    F = w1.shape[1]

    Bb = _pick_batch_block(B, S)
    R = Bb * S
    grid = (B // Bb,)

    x2 = x.reshape(B * S, D)                      # free contiguous reshape in XLA
    mmw = lambda w: w.astype(matmul_dtype)        # halves weight DMA/VMEM when bf16

    kernel = functools.partial(
        encoder_block_kernel, num_heads=H, seq_len=S, hidden=D, batch_block=Bb)

    def build(single_buffer_weights):
        wkw = ({"pipeline_mode": pl.Buffered(1)} if single_buffer_weights else {})
        full = lambda shape: pl.BlockSpec(shape, lambda i: (0,) * len(shape), **wkw)

        # VMEM budget computed from actual block / scratch sizes (+2x margin),
        # clamped so it also fits v7x's 64 MiB VMEM per TensorCore.
        mm_bytes = jnp.dtype(matmul_dtype).itemsize
        w_copies = 1 if single_buffer_weights else 2
        need = (2 * 2 * R * D * 4                                  # x + out (2-buf)
                + (4 * D * D + 2 * D * F) * mm_bytes * w_copies    # big weights
                + (F + 5 * D) * 4 * 2                              # biases / LN params
                + 3 * R * D * mm_bytes                             # q/k/v scratch
                + H * S * S * 4 + R * D * 4)                       # scores + attn
        vmem_limit = int(min(max(2 * need, 16 * 1024 * 1024), 40 * 1024 * 1024))

        return pl.pallas_call(
            kernel,
            out_shape=jax.ShapeDtypeStruct((B * S, D), jnp.float32),
            grid=grid,
            in_specs=[
                pl.BlockSpec(memory_space=pltpu.SMEM),          # valid_lens (full)
                pl.BlockSpec((R, D), lambda i: (i, 0)),         # x row block
                full((D, D)), full((D, D)), full((D, D)), full((D, D)),  # Wq Wk Wv Wo
                full((D, F)), full((1, F)),                     # ffn dense1
                full((F, D)), full((1, D)),                     # ffn dense2
                full((1, D)), full((1, D)),                     # ln1 gamma/beta
                full((1, D)), full((1, D)),                     # ln2 gamma/beta
            ],
            out_specs=pl.BlockSpec((R, D), lambda i: (i, 0)),
            scratch_shapes=[
                pltpu.VMEM((R, D), matmul_dtype),               # q (scaled)
                pltpu.VMEM((R, D), matmul_dtype),               # k
                pltpu.VMEM((R, D), matmul_dtype),               # v
                pltpu.VMEM((H * S, S), jnp.float32),            # per-batch scores
                pltpu.VMEM((R, D), jnp.float32),                # head-concat attention
            ],
            compiler_params=pltpu.CompilerParams(
                dimension_semantics=("parallel",),
                vmem_limit_bytes=vmem_limit),
        )(valid_lens, x2,
          mmw(wq), mmw(wk), mmw(wv), mmw(wo),
          mmw(w1), b1, mmw(w2), b2,
          g1, be1, g2, be2)

    try:
        out2 = build(True)
    except Exception:
        # Fallback if single-buffered weight specs (pl.Buffered(1)) are not
        # supported by this JAX build; default double-buffering is still correct.
        out2 = build(False)
    return out2.reshape(B, S, D)


def ref_encoder_block(x, valid_lens, params, *, num_heads, eps=1e-5):
    """Pure-JAX reference mirroring the PyTorch EncoderBlock (eval mode)."""
    wq, wk, wv, wo, w1, b1, w2, b2, g1, be1, g2, be2 = params
    B, S, D = x.shape
    H = num_heads
    dh = D // H

    def layernorm(v, g, be):
        mu = jnp.mean(v, axis=-1, keepdims=True)
        var = jnp.mean((v - mu) ** 2, axis=-1, keepdims=True)
        return (v - mu) / jnp.sqrt(var + eps) * g.reshape(-1) + be.reshape(-1)

    q = (x @ wq).reshape(B, S, H, dh).transpose(0, 2, 1, 3)
    k = (x @ wk).reshape(B, S, H, dh).transpose(0, 2, 1, 3)
    v = (x @ wv).reshape(B, S, H, dh).transpose(0, 2, 1, 3)
    scores = jnp.einsum("bhqd,bhkd->bhqk", q, k) / math.sqrt(dh)
    col = jnp.arange(S)[None, None, None, :]
    scores = jnp.where(col < valid_lens[:, None, None, None], scores, -1e6)
    p = jax.nn.softmax(scores, axis=-1)
    attn = jnp.einsum("bhqk,bhkd->bhqd", p, v).transpose(0, 2, 1, 3).reshape(B, S, D)
    attn = attn @ wo

    y = layernorm(attn + x, g1, be1)
    f = jnp.maximum(y @ w1 + b1.reshape(-1), 0.0) @ w2 + b2.reshape(-1)
    return layernorm(f + y, g2, be2)


if __name__ == "__main__":
    # key_size = query_size = value_size = num_hiddens = 32, norm_shape = 32,
    # ffn_num_input = 32, ffn_num_hiddens = 64, num_heads = 4, use_bias=False.
    B, S, D, H, F = 2, 8, 32, 4, 64

    key = jax.random.PRNGKey(0)
    ks = jax.random.split(key, 16)
    init = lambda k, shape: (0.1 * jax.random.normal(k, shape)).astype(jnp.float32)

    params = (
        init(ks[0], (D, D)),   # W_q  (use_bias=False)
        init(ks[1], (D, D)),   # W_k
        init(ks[2], (D, D)),   # W_v
        init(ks[3], (D, D)),   # W_o
        init(ks[4], (D, F)),   # ffn dense1 weight
        init(ks[5], (1, F)),   # ffn dense1 bias
        init(ks[6], (F, D)),   # ffn dense2 weight
        init(ks[7], (1, D)),   # ffn dense2 bias
        jnp.ones((1, D), jnp.float32),    # ln1 gamma
        jnp.zeros((1, D), jnp.float32),   # ln1 beta
        jnp.ones((1, D), jnp.float32),    # ln2 gamma
        jnp.zeros((1, D), jnp.float32),   # ln2 beta
    )

    x = jax.random.normal(ks[8], (B, S, D), dtype=jnp.float32)
    valid_lens = jnp.array([8, 5], dtype=jnp.int32)

    ref = ref_encoder_block(x, valid_lens, params, num_heads=H)

    # f32 MXU operands: tight check (only approx-reciprocal softmax differs).
    out_f32 = jax.block_until_ready(
        encoder_block(x, valid_lens, params, num_heads=H,
                      matmul_dtype=jnp.float32))
    assert out_f32.shape == (B, S, D)
    assert jnp.allclose(out_f32, ref, atol=2e-3, rtol=2e-3), (
        f"f32 mismatch: max abs err = {jnp.max(jnp.abs(out_f32 - ref))}")

    # bf16 MXU operands everywhere (incl. attention core), f32 accumulation.
    out_bf16 = jax.block_until_ready(
        encoder_block(x, valid_lens, params, num_heads=H,
                      matmul_dtype=jnp.bfloat16))
    assert jnp.allclose(out_bf16, ref, atol=1.5e-1, rtol=1.5e-1), (
        f"bf16 mismatch: max abs err = {jnp.max(jnp.abs(out_bf16 - ref))}")

    print("KERNEL_OK")
</pallas_src>

<mosaic_0001>
module attributes {stable_mosaic.version = 11 : i64} {
  func.func @encoder_block_kernel(%arg0: i32, %arg1: memref<2xi32, #tpu.memory_space<smem>>, %arg2: memref<8x32xf32, #tpu.memory_space<vmem>>, %arg3: memref<32x32xf32, #tpu.memory_space<vmem>>, %arg4: memref<32x32xf32, #tpu.memory_space<vmem>>, %arg5: memref<32x32xf32, #tpu.memory_space<vmem>>, %arg6: memref<32x32xf32, #tpu.memory_space<vmem>>, %arg7: memref<32x64xf32, #tpu.memory_space<vmem>>, %arg8: memref<1x64xf32, #tpu.memory_space<vmem>>, %arg9: memref<64x32xf32, #tpu.memory_space<vmem>>, %arg10: memref<1x32xf32, #tpu.memory_space<vmem>>, %arg11: memref<1x32xf32, #tpu.memory_space<vmem>>, %arg12: memref<1x32xf32, #tpu.memory_space<vmem>>, %arg13: memref<1x32xf32, #tpu.memory_space<vmem>>, %arg14: memref<1x32xf32, #tpu.memory_space<vmem>>, %arg15: memref<8x32xf32, #tpu.memory_space<vmem>>, %arg16: memref<8x32xf32, #tpu.memory_space<vmem>>, %arg17: memref<8x32xf32, #tpu.memory_space<vmem>>, %arg18: memref<8x32xf32, #tpu.memory_space<vmem>>, %arg19: memref<32x8xf32, #tpu.memory_space<vmem>>, %arg20: memref<8x32xf32, #tpu.memory_space<vmem>>) attributes {dimension_semantics = [#tpu.dimension_semantics<parallel>], iteration_bounds = array<i64: 2>, scalar_prefetch = 0 : i64, scratch_operands = 5 : i64, tpu.core_type = #tpu.core_type<tc>, window_params = [{transform_indices = @transform_0, window_bounds = array<i64: 2>}, {transform_indices = @transform_1, window_bounds = array<i64: 8, 32>}, {pipeline_mode = #tpu.pipeline_mode<synchronous>, transform_indices = @transform_2, window_bounds = array<i64: 32, 32>}, {pipeline_mode = #tpu.pipeline_mode<synchronous>, transform_indices = @transform_3, window_bounds = array<i64: 32, 32>}, {pipeline_mode = #tpu.pipeline_mode<synchronous>, transform_indices = @transform_4, window_bounds = array<i64: 32, 32>}, {pipeline_mode = #tpu.pipeline_mode<synchronous>, transform_indices = @transform_5, window_bounds = array<i64: 32, 32>}, {pipeline_mode = #tpu.pipeline_mode<synchronous>, transform_indices = @transform_6, window_bounds = array<i64: 32, 64>}, {pipeline_mode = #tpu.pipeline_mode<synchronous>, transform_indices = @transform_7, window_bounds = array<i64: 1, 64>}, {pipeline_mode = #tpu.pipeline_mode<synchronous>, transform_indices = @transform_8, window_bounds = array<i64: 64, 32>}, {pipeline_mode = #tpu.pipeline_mode<synchronous>, transform_indices = @transform_9, window_bounds = array<i64: 1, 32>}, {pipeline_mode = #tpu.pipeline_mode<synchronous>, transform_indices = @transform_10, window_bounds = array<i64: 1, 32>}, {pipeline_mode = #tpu.pipeline_mode<synchronous>, transform_indices = @transform_11, window_bounds = array<i64: 1, 32>}, {pipeline_mode = #tpu.pipeline_mode<synchronous>, transform_indices = @transform_12, window_bounds = array<i64: 1, 32>}, {pipeline_mode = #tpu.pipeline_mode<synchronous>, transform_indices = @transform_13, window_bounds = array<i64: 1, 32>}, {transform_indices = @transform_14, window_bounds = array<i64: 8, 32>}]} {
    %c0 = arith.constant 0 : index
    %c0_0 = arith.constant 0 : index
    %0 = vector.load %arg2[%c0, %c0_0] : memref<8x32xf32, #tpu.memory_space<vmem>>, vector<8x32xf32>
    %c0_1 = arith.constant 0 : index
    %c0_2 = arith.constant 0 : index
    %1 = vector.load %arg3[%c0_1, %c0_2] : memref<32x32xf32, #tpu.memory_space<vmem>>, vector<32x32xf32>
    %cst = arith.constant dense<0.000000e+00> : vector<8x32xf32>
    %2 = tpu.matmul %0, %1, %cst {dimension_numbers = #tpu.dot_dimension_numbers<[1], [0], [0], [1], [0, 0, 1, 1], [], []>} : vector<8x32xf32>, vector<32x32xf32>, vector<8x32xf32> -> vector<8x32xf32>
    %cst_3 = arith.constant 0.353553385 : f32
    %3 = vector.broadcast %cst_3 : f32 to vector<8x32xf32>
    %4 = arith.mulf %2, %3 : vector<8x32xf32>
    %c0_4 = arith.constant 0 : index
    %c0_5 = arith.constant 0 : index
    %5 = vector.load %arg16[%c0_4, %c0_5] : memref<8x32xf32, #tpu.memory_space<vmem>>, vector<8x32xf32>
    tpu.vector_store %arg16[%c0_4, %c0_5], %4 {strides = array<i32>} : memref<8x32xf32, #tpu.memory_space<vmem>>, vector<8x32xf32>,
    %c0_6 = arith.constant 0 : index
    %c0_7 = arith.constant 0 : index
    %6 = vector.load %arg4[%c0_6, %c0_7] : memref<32x32xf32, #tpu.memory_space<vmem>>, vector<32x32xf32>
    %cst_8 = arith.constant dense<0.000000e+00> : vector<8x32xf32>
    %7 = tpu.matmul %0, %6, %cst_8 {dimension_numbers = #tpu.dot_dimension_numbers<[1], [0], [0], [1], [0, 0, 1, 1], [], []>} : vector<8x32xf32>, vector<32x32xf32>, vector<8x32xf32> -> vector<8x32xf32>
    %c0_9 = arith.constant 0 : index
    %c0_10 = arith.constant 0 : index
    %8 = vector.load %arg17[%c0_9, %c0_10] : memref<8x32xf32, #tpu.memory_space<vmem>>, vector<8x32xf32>
    tpu.vector_store %arg17[%c0_9, %c0_10], %7 {strides = array<i32>} : memref<8x32xf32, #tpu.memory_space<vmem>>, vector<8x32xf32>,
    %c0_11 = arith.constant 0 : index
    %c0_12 = arith.constant 0 : index
    %9 = vector.load %arg5[%c0_11, %c0_12] : memref<32x32xf32, #tpu.memory_space<vmem>>, vector<32x32xf32>
    %cst_13 = arith.constant dense<0.000000e+00> : vector<8x32xf32>
    %10 = tpu.matmul %0, %9, %cst_13 {dimension_numbers = #tpu.dot_dimension_numbers<[1], [0], [0], [1], [0, 0, 1, 1], [], []>} : vector<8x32xf32>, vector<32x32xf32>, vector<8x32xf32> -> vector<8x32xf32>
    %c0_14 = arith.constant 0 : index
    %c0_15 = arith.constant 0 : index
    %11 = vector.load %arg18[%c0_14, %c0_15] : memref<8x32xf32, #tpu.memory_space<vmem>>, vector<8x32xf32>
    tpu.vector_store %arg18[%c0_14, %c0_15], %10 {strides = array<i32>} : memref<8x32xf32, #tpu.memory_space<vmem>>, vector<8x32xf32>,
    %12 = tpu.iota {dimensions = array<i32: 1>} : vector<32x8xi32>
    %c1_i32 = arith.constant 1 : i32
    %13 = arith.muli %arg0, %c1_i32 : i32
    %c0_i32 = arith.constant 0 : i32
    %14 = arith.addi %13, %c0_i32 : i32
    %15 = arith.index_cast %14 : i32 to index
    %16 = memref.load %arg1[%15] : memref<2xi32, #tpu.memory_space<smem>>
    %c8_i32 = arith.constant 8 : i32
    %17 = arith.muli %c0_i32, %c8_i32 : i32
    %18 = tpu.assume_multiple %17, 8 : i32
    %19 = arith.index_cast %18 : i32 to index
    %c0_16 = arith.constant 0 : index
    %20 = vector.load %arg16[%19, %c0_16] : memref<8x32xf32, #tpu.memory_space<vmem>>, vector<8x32xf32>
    %21 = arith.index_cast %18 : i32 to index
    %c0_17 = arith.constant 0 : index
    %22 = vector.load %arg17[%21, %c0_17] : memref<8x32xf32, #tpu.memory_space<vmem>>, vector<8x32xf32>
    %23 = tpu.transpose %22, [1, 0] : vector<8x32xf32> -> vector<32x8xf32>
    %24 = arith.index_cast %18 : i32 to index
    %c0_18 = arith.constant 0 : index
    %25 = vector.load %arg18[%24, %c0_18] : memref<8x32xf32, #tpu.memory_space<vmem>>, vector<8x32xf32>
    %26 = vector.extract_strided_slice %20 {offsets = [0, 0], sizes = [8, 8], strides = [1, 1]} : vector<8x32xf32> to vector<8x8xf32>
    %27 = vector.extract_strided_slice %23 {offsets = [0, 0], sizes = [8, 8], strides = [1, 1]} : vector<32x8xf32> to vector<8x8xf32>
    %cst_19 = arith.constant dense<0.000000e+00> : vector<8x8xf32>
    %28 = tpu.matmul %26, %27, %cst_19 {dimension_numbers = #tpu.dot_dimension_numbers<[1], [0], [0], [1], [0, 0, 1, 1], [], []>} : vector<8x8xf32>, vector<8x8xf32>, vector<8x8xf32> -> vector<8x8xf32>
    %c0_20 = arith.constant 0 : index
    %c0_21 = arith.constant 0 : index
    %29 = vector.load %arg19[%c0_20, %c0_21] : memref<32x8xf32, #tpu.memory_space<vmem>>, vector<8x8xf32>
    tpu.vector_store %arg19[%c0_20, %c0_21], %28 {strides = array<i32>} : memref<32x8xf32, #tpu.memory_space<vmem>>, vector<8x8xf32>,
    %30 = vector.extract_strided_slice %20 {offsets = [0, 8], sizes = [8, 8], strides = [1, 1]} : vector<8x32xf32> to vector<8x8xf32>
    %31 = vector.extract_strided_slice %23 {offsets = [8, 0], sizes = [8, 8], strides = [1, 1]} : vector<32x8xf32> to vector<8x8xf32>
    %cst_22 = arith.constant dense<0.000000e+00> : vector<8x8xf32>
    %32 = tpu.matmul %30, %31, %cst_22 {dimension_numbers = #tpu.dot_dimension_numbers<[1], [0], [0], [1], [0, 0, 1, 1], [], []>} : vector<8x8xf32>, vector<8x8xf32>, vector<8x8xf32> -> vector<8x8xf32>
    %c8 = arith.constant 8 : index
    %c0_23 = arith.constant 0 : index
    %33 = vector.load %arg19[%c8, %c0_23] : memref<32x8xf32, #tpu.memory_space<vmem>>, vector<8x8xf32>
    tpu.vector_store %arg19[%c8, %c0_23], %32 {strides = array<i32>} : memref<32x8xf32, #tpu.memory_space<vmem>>, vector<8x8xf32>,
    %34 = vector.extract_strided_slice %20 {offsets = [0, 16], sizes = [8, 8], strides = [1, 1]} : vector<8x32xf32> to vector<8x8xf32>
    %35 = vector.extract_strided_slice %23 {offsets = [16, 0], sizes = [8, 8], strides = [1, 1]} : vector<32x8xf32> to vector<8x8xf32>
    %cst_24 = arith.constant dense<0.000000e+00> : vector<8x8xf32>
    %36 = tpu.matmul %34, %35, %cst_24 {dimension_numbers = #tpu.dot_dimension_numbers<[1], [0], [0], [1], [0, 0, 1, 1], [], []>} : vector<8x8xf32>, vector<8x8xf32>, vector<8x8xf32> -> vector<8x8xf32>
    %c16 = arith.constant 16 : index
    %c0_25 = arith.constant 0 : index
    %37 = vector.load %arg19[%c16, %c0_25] : memref<32x8xf32, #tpu.memory_space<vmem>>, vector<8x8xf32>
    tpu.vector_store %arg19[%c16, %c0_25], %36 {strides = array<i32>} : memref<32x8xf32, #tpu.memory_space<vmem>>, vector<8x8xf32>,
    %38 = vector.extract_strided_slice %20 {offsets = [0, 24], sizes = [8, 8], strides = [1, 1]} : vector<8x32xf32> to vector<8x8xf32>
    %39 = vector.extract_strided_slice %23 {offsets = [24, 0], sizes = [8, 8], strides = [1, 1]} : vector<32x8xf32> to vector<8x8xf32>
    %cst_26 = arith.constant dense<0.000000e+00> : vector<8x8xf32>
    %40 = tpu.matmul %38, %39, %cst_26 {dimension_numbers = #tpu.dot_dimension_numbers<[1], [0], [0], [1], [0, 0, 1, 1], [], []>} : vector<8x8xf32>, vector<8x8xf32>, vector<8x8xf32> -> vector<8x8xf32>
    %c24 = arith.constant 24 : index
    %c0_27 = arith.constant 0 : index
    %41 = vector.load %arg19[%c24, %c0_27] : memref<32x8xf32, #tpu.memory_space<vmem>>, vector<8x8xf32>
    tpu.vector_store %arg19[%c24, %c0_27], %40 {strides = array<i32>} : memref<32x8xf32, #tpu.memory_space<vmem>>, vector<8x8xf32>,
    %42 = vector.broadcast %16 : i32 to vector<32x8xi32>
    %43 = arith.cmpi slt, %12, %42 : vector<32x8xi32>
    %c0_28 = arith.constant 0 : index
    %c0_29 = arith.constant 0 : index
    %44 = vector.load %arg19[%c0_28, %c0_29] : memref<32x8xf32, #tpu.memory_space<vmem>>, vector<32x8xf32>
    %cst_30 = arith.constant -1.000000e+06 : f32
    %45 = vector.broadcast %cst_30 : f32 to vector<32x8xf32>
    %46 = arith.select %43, %44, %45 : vector<32x8xi1>, vector<32x8xf32>
    %cst_31 = arith.constant dense<0xFF800000> : vector<32xf32>
    %47 = vector.multi_reduction <maximumf>, %46, %cst_31 [1] : vector<32x8xf32> to vector<32xf32>
    %48 = vector.shape_cast %47 : vector<32xf32> to vector<32x1xf32>
    %49 = vector.broadcast %48 : vector<32x1xf32> to vector<32x8xf32>
    %50 = arith.subf %46, %49 : vector<32x8xf32>
    %51 = math.exp %50 : vector<32x8xf32>
    %cst_32 = arith.constant dense<0.000000e+00> : vector<32xf32>
    %52 = vector.multi_reduction <add>, %51, %cst_32 [1] : vector<32x8xf32> to vector<32xf32>
    %53 = vector.shape_cast %52 : vector<32xf32> to vector<32x1xf32>
    %54 = tpu.reciprocal %53 {approx = true} : vector<32x1xf32> -> vector<32x1xf32>
    %55 = vector.broadcast %54 : vector<32x1xf32> to vector<32x8xf32>
    %56 = arith.mulf %51, %55 : vector<32x8xf32>
    %57 = vector.extract_strided_slice %56 {offsets = [0, 0], sizes = [8, 8], strides = [1, 1]} : vector<32x8xf32> to vector<8x8xf32>
    %58 = vector.extract_strided_slice %25 {offsets = [0, 0], sizes = [8, 8], strides = [1, 1]} : vector<8x32xf32> to vector<8x8xf32>
    %cst_33 = arith.constant dense<0.000000e+00> : vector<8x8xf32>
    %59 = tpu.matmul %57, %58, %cst_33 {dimension_numbers = #tpu.dot_dimension_numbers<[1], [0], [0], [1], [0, 0, 1, 1], [], []>} : vector<8x8xf32>, vector<8x8xf32>, vector<8x8xf32> -> vector<8x8xf32>
    %60 = arith.index_cast %18 : i32 to index
    %c0_34 = arith.constant 0 : index
    %61 = vector.load %arg20[%60, %c0_34] : memref<8x32xf32, #tpu.memory_space<vmem>>, vector<8x8xf32>
    tpu.vector_store %arg20[%60, %c0_34], %59 {strides = array<i32>} : memref<8x32xf32, #tpu.memory_space<vmem>>, vector<8x8xf32>,
    %62 = vector.extract_strided_slice %56 {offsets = [8, 0], sizes = [8, 8], strides = [1, 1]} : vector<32x8xf32> to vector<8x8xf32>
    %63 = vector.extract_strided_slice %25 {offsets = [0, 8], sizes = [8, 8], strides = [1, 1]} : vector<8x32xf32> to vector<8x8xf32>
    %cst_35 = arith.constant dense<0.000000e+00> : vector<8x8xf32>
    %64 = tpu.matmul %62, %63, %cst_35 {dimension_numbers = #tpu.dot_dimension_numbers<[1], [0], [0], [1], [0, 0, 1, 1], [], []>} : vector<8x8xf32>, vector<8x8xf32>, vector<8x8xf32> -> vector<8x8xf32>
    %65 = arith.index_cast %18 : i32 to index
    %c8_36 = arith.constant 8 : index
    %66 = vector.load %arg20[%65, %c8_36] : memref<8x32xf32, #tpu.memory_space<vmem>>, vector<8x8xf32>
    tpu.vector_store %arg20[%65, %c8_36], %64 {strides = array<i32>} : memref<8x32xf32, #tpu.memory_space<vmem>>, vector<8x8xf32>,
    %67 = vector.extract_strided_slice %56 {offsets = [16, 0], sizes = [8, 8], strides = [1, 1]} : vector<32x8xf32> to vector<8x8xf32>
    %68 = vector.extract_strided_slice %25 {offsets = [0, 16], sizes = [8, 8], strides = [1, 1]} : vector<8x32xf32> to vector<8x8xf32>
    %cst_37 = arith.constant dense<0.000000e+00> : vector<8x8xf32>
    %69 = tpu.matmul %67, %68, %cst_37 {dimension_numbers = #tpu.dot_dimension_numbers<[1], [0], [0], [1], [0, 0, 1, 1], [], []>} : vector<8x8xf32>, vector<8x8xf32>, vector<8x8xf32> -> vector<8x8xf32>
    %70 = arith.index_cast %18 : i32 to index
    %c16_38 = arith.constant 16 : index
    %71 = vector.load %arg20[%70, %c16_38] : memref<8x32xf32, #tpu.memory_space<vmem>>, vector<8x8xf32>
    tpu.vector_store %arg20[%70, %c16_38], %69 {strides = array<i32>} : memref<8x32xf32, #tpu.memory_space<vmem>>, vector<8x8xf32>,
    %72 = vector.extract_strided_slice %56 {offsets = [24, 0], sizes = [8, 8], strides = [1, 1]} : vector<32x8xf32> to vector<8x8xf32>
    %73 = vector.extract_strided_slice %25 {offsets = [0, 24], sizes = [8, 8], strides = [1, 1]} : vector<8x32xf32> to vector<8x8xf32>
    %cst_39 = arith.constant dense<0.000000e+00> : vector<8x8xf32>
    %74 = tpu.matmul %72, %73, %cst_39 {dimension_numbers = #tpu.dot_dimension_numbers<[1], [0], [0], [1], [0, 0, 1, 1], [], []>} : vector<8x8xf32>, vector<8x8xf32>, vector<8x8xf32> -> vector<8x8xf32>
    %75 = arith.index_cast %18 : i32 to index
    %c24_40 = arith.constant 24 : index
    %76 = vector.load %arg20[%75, %c24_40] : memref<8x32xf32, #tpu.memory_space<vmem>>, vector<8x8xf32>
    tpu.vector_store %arg20[%75, %c24_40], %74 {strides = array<i32>} : memref<8x32xf32, #tpu.memory_space<vmem>>, vector<8x8xf32>,
    %c1_i32_41 = arith.constant 1 : i32
    %c0_42 = arith.constant 0 : index
    %c0_43 = arith.constant 0 : index
    %77 = vector.load %arg20[%c0_42, %c0_43] : memref<8x32xf32, #tpu.memory_space<vmem>>, vector<8x32xf32>
    %c0_44 = arith.constant 0 : index
    %c0_45 = arith.constant 0 : index
    %78 = vector.load %arg6[%c0_44, %c0_45] : memref<32x32xf32, #tpu.memory_space<vmem>>, vector<32x32xf32>
    %cst_46 = arith.constant dense<0.000000e+00> : vector<8x32xf32>
    %79 = tpu.matmul %77, %78, %cst_46 {dimension_numbers = #tpu.dot_dimension_numbers<[1], [0], [0], [1], [0, 0, 1, 1], [], []>} : vector<8x32xf32>, vector<32x32xf32>, vector<8x32xf32> -> vector<8x32xf32>
    %c0_47 = arith.constant 0 : index
    %c0_48 = arith.constant 0 : index
    %80 = vector.load %arg2[%c0_47, %c0_48] : memref<8x32xf32, #tpu.memory_space<vmem>>, vector<8x32xf32>
    %81 = arith.addf %79, %80 : vector<8x32xf32>
    %cst_49 = arith.constant dense<0.000000e+00> : vector<8xf32>
    %82 = vector.multi_reduction <add>, %81, %cst_49 [1] : vector<8x32xf32> to vector<8xf32>
    %83 = vector.shape_cast %82 : vector<8xf32> to vector<8x1xf32>
    %cst_50 = arith.constant 3.200000e+01 : f32
    %84 = vector.broadcast %cst_50 : f32 to vector<8x1xf32>
    %85 = arith.divf %83, %84 : vector<8x1xf32>
    %86 = vector.broadcast %85 : vector<8x1xf32> to vector<8x32xf32>
    %87 = arith.subf %81, %86 : vector<8x32xf32>
    %88 = arith.mulf %87, %87 : vector<8x32xf32>
    %cst_51 = arith.constant dense<0.000000e+00> : vector<8xf32>
    %89 = vector.multi_reduction <add>, %88, %cst_51 [1] : vector<8x32xf32> to vector<8xf32>
    %90 = vector.shape_cast %89 : vector<8xf32> to vector<8x1xf32>
    %cst_52 = arith.constant 3.200000e+01 : f32
    %91 = vector.broadcast %cst_52 : f32 to vector<8x1xf32>
    %92 = arith.divf %90, %91 : vector<8x1xf32>
    %93 = vector.broadcast %85 : vector<8x1xf32> to vector<8x32xf32>
    %94 = arith.subf %81, %93 : vector<8x32xf32>
    %cst_53 = arith.constant 9.99999974E-6 : f32
    %95 = vector.broadcast %cst_53 : f32 to vector<8x1xf32>
    %96 = arith.addf %92, %95 : vector<8x1xf32>
    %97 = math.rsqrt %96 : vector<8x1xf32>
    %98 = vector.broadcast %97 : vector<8x1xf32> to vector<8x32xf32>
    %99 = arith.mulf %94, %98 : vector<8x32xf32>
    %c0_54 = arith.constant 0 : index
    %c0_55 = arith.constant 0 : index
    %100 = vector.load %arg11[%c0_54, %c0_55] : memref<1x32xf32, #tpu.memory_space<vmem>>, vector<1x32xf32>
    %101 = vector.broadcast %100 : vector<1x32xf32> to vector<8x32xf32>
    %102 = arith.mulf %99, %101 : vector<8x32xf32>
    %c0_56 = arith.constant 0 : index
    %c0_57 = arith.constant 0 : index
    %103 = vector.load %arg12[%c0_56, %c0_57] : memref<1x32xf32, #tpu.memory_space<vmem>>, vector<1x32xf32>
    %104 = vector.broadcast %103 : vector<1x32xf32> to vector<8x32xf32>
    %105 = arith.addf %102, %104 : vector<8x32xf32>
    %c0_58 = arith.constant 0 : index
    %c0_59 = arith.constant 0 : index
    %106 = vector.load %arg7[%c0_58, %c0_59] : memref<32x64xf32, #tpu.memory_space<vmem>>, vector<32x64xf32>
    %cst_60 = arith.constant dense<0.000000e+00> : vector<8x64xf32>
    %107 = tpu.matmul %105, %106, %cst_60 {dimension_numbers = #tpu.dot_dimension_numbers<[1], [0], [0], [1], [0, 0, 1, 1], [], []>} : vector<8x32xf32>, vector<32x64xf32>, vector<8x64xf32> -> vector<8x64xf32>
    %c0_61 = arith.constant 0 : index
    %c0_62 = arith.constant 0 : index
    %108 = vector.load %arg8[%c0_61, %c0_62] : memref<1x64xf32, #tpu.memory_space<vmem>>, vector<1x64xf32>
    %109 = vector.broadcast %108 : vector<1x64xf32> to vector<8x64xf32>
    %110 = arith.addf %107, %109 : vector<8x64xf32>
    %cst_63 = arith.constant 0.000000e+00 : f32
    %111 = vector.broadcast %cst_63 : f32 to vector<8x64xf32>
    %112 = arith.maximumf %110, %111 : vector<8x64xf32>
    %c0_64 = arith.constant 0 : index
    %c0_65 = arith.constant 0 : index
    %113 = vector.load %arg9[%c0_64, %c0_65] : memref<64x32xf32, #tpu.memory_space<vmem>>, vector<64x32xf32>
    %cst_66 = arith.constant dense<0.000000e+00> : vector<8x32xf32>
    %114 = tpu.matmul %112, %113, %cst_66 {dimension_numbers = #tpu.dot_dimension_numbers<[1], [0], [0], [1], [0, 0, 1, 1], [], []>} : vector<8x64xf32>, vector<64x32xf32>, vector<8x32xf32> -> vector<8x32xf32>
    %c0_67 = arith.constant 0 : index
    %c0_68 = arith.constant 0 : index
    %115 = vector.load %arg10[%c0_67, %c0_68] : memref<1x32xf32, #tpu.memory_space<vmem>>, vector<1x32xf32>
    %116 = vector.broadcast %115 : vector<1x32xf32> to vector<8x32xf32>
    %117 = arith.addf %114, %116 : vector<8x32xf32>
    %118 = arith.addf %117, %105 : vector<8x32xf32>
    %cst_69 = arith.constant dense<0.000000e+00> : vector<8xf32>
    %119 = vector.multi_reduction <add>, %118, %cst_69 [1] : vector<8x32xf32> to vector<8xf32>
    %120 = vector.shape_cast %119 : vector<8xf32> to vector<8x1xf32>
    %cst_70 = arith.constant 3.200000e+01 : f32
    %121 = vector.broadcast %cst_70 : f32 to vector<8x1xf32>
    %122 = arith.divf %120, %121 : vector<8x1xf32>
    %123 = vector.broadcast %122 : vector<8x1xf32> to vector<8x32xf32>
    %124 = arith.subf %118, %123 : vector<8x32xf32>
    %125 = arith.mulf %124, %124 : vector<8x32xf32>
    %cst_71 = arith.constant dense<0.000000e+00> : vector<8xf32>
    %126 = vector.multi_reduction <add>, %125, %cst_71 [1] : vector<8x32xf32> to vector<8xf32>
    %127 = vector.shape_cast %126 : vector<8xf32> to vector<8x1xf32>
    %cst_72 = arith.constant 3.200000e+01 : f32
    %128 = vector.broadcast %cst_72 : f32 to vector<8x1xf32>
    %129 = arith.divf %127, %128 : vector<8x1xf32>
    %130 = vector.broadcast %122 : vector<8x1xf32> to vector<8x32xf32>
    %131 = arith.subf %118, %130 : vector<8x32xf32>
    %cst_73 = arith.constant 9.99999974E-6 : f32
    %132 = vector.broadcast %cst_73 : f32 to vector<8x1xf32>
    %133 = arith.addf %129, %132 : vector<8x1xf32>
    %134 = math.rsqrt %133 : vector<8x1xf32>
    %135 = vector.broadcast %134 : vector<8x1xf32> to vector<8x32xf32>
    %136 = arith.mulf %131, %135 : vector<8x32xf32>
    %c0_74 = arith.constant 0 : index
    %c0_75 = arith.constant 0 : index
    %137 = vector.load %arg13[%c0_74, %c0_75] : memref<1x32xf32, #tpu.memory_space<vmem>>, vector<1x32xf32>
    %138 = vector.broadcast %137 : vector<1x32xf32> to vector<8x32xf32>
    %139 = arith.mulf %136, %138 : vector<8x32xf32>
    %c0_76 = arith.constant 0 : index
    %c0_77 = arith.constant 0 : index
    %140 = vector.load %arg14[%c0_76, %c0_77] : memref<1x32xf32, #tpu.memory_space<vmem>>, vector<1x32xf32>
    %141 = vector.broadcast %140 : vector<1x32xf32> to vector<8x32xf32>
    %142 = arith.addf %139, %141 : vector<8x32xf32>
    %c0_78 = arith.constant 0 : index
    %c0_79 = arith.constant 0 : index
    %143 = vector.load %arg15[%c0_78, %c0_79] : memref<8x32xf32, #tpu.memory_space<vmem>>, vector<8x32xf32>
    tpu.vector_store %arg15[%c0_78, %c0_79], %142 {strides = array<i32>} : memref<8x32xf32, #tpu.memory_space<vmem>>, vector<8x32xf32>,
    return
  }
  func.func @transform_0(%arg0: i32) -> i32 {
    %c0_i32 = arith.constant 0 : i32
    %c0_i32_0 = arith.constant 0 : i32
    return %c0_i32 : i32
  }
  func.func @transform_1(%arg0: i32) -> (i32, i32) {
    %c0_i32 = arith.constant 0 : i32
    %c0_i32_0 = arith.constant 0 : i32
    return %arg0, %c0_i32 : i32, i32
  }
  func.func @transform_2(%arg0: i32) -> (i32, i32) {
    %c0_i32 = arith.constant 0 : i32
    %c0_i32_0 = arith.constant 0 : i32
    %c0_i32_1 = arith.constant 0 : i32
    return %c0_i32, %c0_i32_0 : i32, i32
  }
  func.func @transform_3(%arg0: i32) -> (i32, i32) {
    %c0_i32 = arith.constant 0 : i32
    %c0_i32_0 = arith.constant 0 : i32
    %c0_i32_1 = arith.constant 0 : i32
    return %c0_i32, %c0_i32_0 : i32, i32
  }
  func.func @transform_4(%arg0: i32) -> (i32, i32) {
    %c0_i32 = arith.constant 0 : i32
    %c0_i32_0 = arith.constant 0 : i32
    %c0_i32_1 = arith.constant 0 : i32
    return %c0_i32, %c0_i32_0 : i32, i32
  }
  func.func @transform_5(%arg0: i32) -> (i32, i32) {
    %c0_i32 = arith.constant 0 : i32
    %c0_i32_0 = arith.constant 0 : i32
    %c0_i32_1 = arith.constant 0 : i32
    return %c0_i32, %c0_i32_0 : i32, i32
  }
  func.func @transform_6(%arg0: i32) -> (i32, i32) {
    %c0_i32 = arith.constant 0 : i32
    %c0_i32_0 = arith.constant 0 : i32
    %c0_i32_1 = arith.constant 0 : i32
    return %c0_i32, %c0_i32_0 : i32, i32
  }
  func.func @transform_7(%arg0: i32) -> (i32, i32) {
    %c0_i32 = arith.constant 0 : i32
    %c0_i32_0 = arith.constant 0 : i32
    %c0_i32_1 = arith.constant 0 : i32
    return %c0_i32, %c0_i32_0 : i32, i32
  }
  func.func @transform_8(%arg0: i32) -> (i32, i32) {
    %c0_i32 = arith.constant 0 : i32
    %c0_i32_0 = arith.constant 0 : i32
    %c0_i32_1 = arith.constant 0 : i32
    return %c0_i32, %c0_i32_0 : i32, i32
  }
  func.func @transform_9(%arg0: i32) -> (i32, i32) {
    %c0_i32 = arith.constant 0 : i32
    %c0_i32_0 = arith.constant 0 : i32
    %c0_i32_1 = arith.constant 0 : i32
    return %c0_i32, %c0_i32_0 : i32, i32
  }
  func.func @transform_10(%arg0: i32) -> (i32, i32) {
    %c0_i32 = arith.constant 0 : i32
    %c0_i32_0 = arith.constant 0 : i32
    %c0_i32_1 = arith.constant 0 : i32
    return %c0_i32, %c0_i32_0 : i32, i32
  }
  func.func @transform_11(%arg0: i32) -> (i32, i32) {
    %c0_i32 = arith.constant 0 : i32
    %c0_i32_0 = arith.constant 0 : i32
    %c0_i32_1 = arith.constant 0 : i32
    return %c0_i32, %c0_i32_0 : i32, i32
  }
  func.func @transform_12(%arg0: i32) -> (i32, i32) {
    %c0_i32 = arith.constant 0 : i32
    %c0_i32_0 = arith.constant 0 : i32
    %c0_i32_1 = arith.constant 0 : i32
    return %c0_i32, %c0_i32_0 : i32, i32
  }
  func.func @transform_13(%arg0: i32) -> (i32, i32) {
    %c0_i32 = arith.constant 0 : i32
    %c0_i32_0 = arith.constant 0 : i32
    %c0_i32_1 = arith.constant 0 : i32
    return %c0_i32, %c0_i32_0 : i32, i32
  }
  func.func @transform_14(%arg0: i32) -> (i32, i32) {
    %c0_i32 = arith.constant 0 : i32
    %c0_i32_0 = arith.constant 0 : i32
    return %arg0, %c0_i32 : i32, i32
  }
}

module attributes {stable_mosaic.version = 11 : i64} {
  func.func @encoder_block_kernel(%arg0: i32, %arg1: memref<2xi32, #tpu.memory_space<smem>>, %arg2: memref<8x32xf32, #tpu.memory_space<vmem>>, %arg3: memref<32x32xf32, #tpu.memory_space<vmem>>, %arg4: memref<32x32xf32, #tpu.memory_space<vmem>>, %arg5: memref<32x32xf32, #tpu.memory_space<vmem>>, %arg6: memref<32x32xf32, #tpu.memory_space<vmem>>, %arg7: memref<32x64xf32, #tpu.memory_space<vmem>>, %arg8: memref<1x64xf32, #tpu.memory_space<vmem>>, %arg9: memref<64x32xf32, #tpu.memory_space<vmem>>, %arg10: memref<1x32xf32, #tpu.memory_space<vmem>>, %arg11: memref<1x32xf32, #tpu.memory_space<vmem>>, %arg12: memref<1x32xf32, #tpu.memory_space<vmem>>, %arg13: memref<1x32xf32, #tpu.memory_space<vmem>>, %arg14: memref<1x32xf32, #tpu.memory_space<vmem>>, %arg15: memref<8x32xf32, #tpu.memory_space<vmem>>, %arg16: memref<8x32xf32, #tpu.memory_space<vmem>>, %arg17: memref<8x32xf32, #tpu.memory_space<vmem>>, %arg18: memref<8x32xf32, #tpu.memory_space<vmem>>, %arg19: memref<32x8xf32, #tpu.memory_space<vmem>>, %arg20: memref<8x32xf32, #tpu.memory_space<vmem>>) attributes {dimension_semantics = [#tpu.dimension_semantics<parallel>], iteration_bounds = array<i64: 2>, scalar_prefetch = 0 : i64, scratch_operands = 5 : i64, tpu.core_type = #tpu.core_type<tc>, window_params = [{transform_indices = @transform_0, window_bounds = array<i64: 2>}, {transform_indices = @transform_1, window_bounds = array<i64: 8, 32>}, {pipeline_mode = #tpu.pipeline_mode<synchronous>, transform_indices = @transform_2, window_bounds = array<i64: 32, 32>}, {pipeline_mode = #tpu.pipeline_mode<synchronous>, transform_indices = @transform_3, window_bounds = array<i64: 32, 32>}, {pipeline_mode = #tpu.pipeline_mode<synchronous>, transform_indices = @transform_4, window_bounds = array<i64: 32, 32>}, {pipeline_mode = #tpu.pipeline_mode<synchronous>, transform_indices = @transform_5, window_bounds = array<i64: 32, 32>}, {pipeline_mode = #tpu.pipeline_mode<synchronous>, transform_indices = @transform_6, window_bounds = array<i64: 32, 64>}, {pipeline_mode = #tpu.pipeline_mode<synchronous>, transform_indices = @transform_7, window_bounds = array<i64: 1, 64>}, {pipeline_mode = #tpu.pipeline_mode<synchronous>, transform_indices = @transform_8, window_bounds = array<i64: 64, 32>}, {pipeline_mode = #tpu.pipeline_mode<synchronous>, transform_indices = @transform_9, window_bounds = array<i64: 1, 32>}, {pipeline_mode = #tpu.pipeline_mode<synchronous>, transform_indices = @transform_10, window_bounds = array<i64: 1, 32>}, {pipeline_mode = #tpu.pipeline_mode<synchronous>, transform_indices = @transform_11, window_bounds = array<i64: 1, 32>}, {pipeline_mode = #tpu.pipeline_mode<synchronous>, transform_indices = @transform_12, window_bounds = array<i64: 1, 32>}, {pipeline_mode = #tpu.pipeline_mode<synchronous>, transform_indices = @transform_13, window_bounds = array<i64: 1, 32>}, {transform_indices = @transform_14, window_bounds = array<i64: 8, 32>}]} {
    %c0 = arith.constant 0 : index
    %c0_0 = arith.constant 0 : index
    %0 = vector.load %arg2[%c0, %c0_0] : memref<8x32xf32, #tpu.memory_space<vmem>>, vector<8x32xf32>
    %c0_1 = arith.constant 0 : index
    %c0_2 = arith.constant 0 : index
    %1 = vector.load %arg3[%c0_1, %c0_2] : memref<32x32xf32, #tpu.memory_space<vmem>>, vector<32x32xf32>
    %cst = arith.constant dense<0.000000e+00> : vector<8x32xf32>
    %2 = tpu.matmul %0, %1, %cst {dimension_numbers = #tpu.dot_dimension_numbers<[1], [0], [0], [1], [0, 0, 1, 1], [], []>} : vector<8x32xf32>, vector<32x32xf32>, vector<8x32xf32> -> vector<8x32xf32>
    %cst_3 = arith.constant 0.353553385 : f32
    %3 = vector.broadcast %cst_3 : f32 to vector<8x32xf32>
    %4 = arith.mulf %2, %3 : vector<8x32xf32>
    %c0_4 = arith.constant 0 : index
    %c0_5 = arith.constant 0 : index
    %5 = vector.load %arg16[%c0_4, %c0_5] : memref<8x32xf32, #tpu.memory_space<vmem>>, vector<8x32xf32>
    tpu.vector_store %arg16[%c0_4, %c0_5], %4 {strides = array<i32>} : memref<8x32xf32, #tpu.memory_space<vmem>>, vector<8x32xf32>,
    %c0_6 = arith.constant 0 : index
    %c0_7 = arith.constant 0 : index
    %6 = vector.load %arg4[%c0_6, %c0_7] : memref<32x32xf32, #tpu.memory_space<vmem>>, vector<32x32xf32>
    %cst_8 = arith.constant dense<0.000000e+00> : vector<8x32xf32>
    %7 = tpu.matmul %0, %6, %cst_8 {dimension_numbers = #tpu.dot_dimension_numbers<[1], [0], [0], [1], [0, 0, 1, 1], [], []>} : vector<8x32xf32>, vector<32x32xf32>, vector<8x32xf32> -> vector<8x32xf32>
    %c0_9 = arith.constant 0 : index
    %c0_10 = arith.constant 0 : index
    %8 = vector.load %arg17[%c0_9, %c0_10] : memref<8x32xf32, #tpu.memory_space<vmem>>, vector<8x32xf32>
    tpu.vector_store %arg17[%c0_9, %c0_10], %7 {strides = array<i32>} : memref<8x32xf32, #tpu.memory_space<vmem>>, vector<8x32xf32>,
    %c0_11 = arith.constant 0 : index
    %c0_12 = arith.constant 0 : index
    %9 = vector.load %arg5[%c0_11, %c0_12] : memref<32x32xf32, #tpu.memory_space<vmem>>, vector<32x32xf32>
    %cst_13 = arith.constant dense<0.000000e+00> : vector<8x32xf32>
    %10 = tpu.matmul %0, %9, %cst_13 {dimension_numbers = #tpu.dot_dimension_numbers<[1], [0], [0], [1], [0, 0, 1, 1], [], []>} : vector<8x32xf32>, vector<32x32xf32>, vector<8x32xf32> -> vector<8x32xf32>
    %c0_14 = arith.constant 0 : index
    %c0_15 = arith.constant 0 : index
    %11 = vector.load %arg18[%c0_14, %c0_15] : memref<8x32xf32, #tpu.memory_space<vmem>>, vector<8x32xf32>
    tpu.vector_store %arg18[%c0_14, %c0_15], %10 {strides = array<i32>} : memref<8x32xf32, #tpu.memory_space<vmem>>, vector<8x32xf32>,
    %12 = tpu.iota {dimensions = array<i32: 1>} : vector<32x8xi32>
    %c1_i32 = arith.constant 1 : i32
    %13 = arith.muli %arg0, %c1_i32 : i32
    %c0_i32 = arith.constant 0 : i32
    %14 = arith.addi %13, %c0_i32 : i32
    %15 = arith.index_cast %14 : i32 to index
    %16 = memref.load %arg1[%15] : memref<2xi32, #tpu.memory_space<smem>>
    %c8_i32 = arith.constant 8 : i32
    %17 = arith.muli %c0_i32, %c8_i32 : i32
    %18 = tpu.assume_multiple %17, 8 : i32
    %19 = arith.index_cast %18 : i32 to index
    %c0_16 = arith.constant 0 : index
    %20 = vector.load %arg16[%19, %c0_16] : memref<8x32xf32, #tpu.memory_space<vmem>>, vector<8x32xf32>
    %21 = arith.index_cast %18 : i32 to index
    %c0_17 = arith.constant 0 : index
    %22 = vector.load %arg17[%21, %c0_17] : memref<8x32xf32, #tpu.memory_space<vmem>>, vector<8x32xf32>
    %23 = tpu.transpose %22, [1, 0] : vector<8x32xf32> -> vector<32x8xf32>
    %24 = arith.index_cast %18 : i32 to index
    %c0_18 = arith.constant 0 : index
    %25 = vector.load %arg18[%24, %c0_18] : memref<8x32xf32, #tpu.memory_space<vmem>>, vector<8x32xf32>
    %26 = vector.extract_strided_slice %20 {offsets = [0, 0], sizes = [8, 8], strides = [1, 1]} : vector<8x32xf32> to vector<8x8xf32>
    %27 = vector.extract_strided_slice %23 {offsets = [0, 0], sizes = [8, 8], strides = [1, 1]} : vector<32x8xf32> to vector<8x8xf32>
    %cst_19 = arith.constant dense<0.000000e+00> : vector<8x8xf32>
    %28 = tpu.matmul %26, %27, %cst_19 {dimension_numbers = #tpu.dot_dimension_numbers<[1], [0], [0], [1], [0, 0, 1, 1], [], []>} : vector<8x8xf32>, vector<8x8xf32>, vector<8x8xf32> -> vector<8x8xf32>
    %c0_20 = arith.constant 0 : index
    %c0_21 = arith.constant 0 : index
    %29 = vector.load %arg19[%c0_20, %c0_21] : memref<32x8xf32, #tpu.memory_space<vmem>>, vector<8x8xf32>
    tpu.vector_store %arg19[%c0_20, %c0_21], %28 {strides = array<i32>} : memref<32x8xf32, #tpu.memory_space<vmem>>, vector<8x8xf32>,
    %30 = vector.extract_strided_slice %20 {offsets = [0, 8], sizes = [8, 8], strides = [1, 1]} : vector<8x32xf32> to vector<8x8xf32>
    %31 = vector.extract_strided_slice %23 {offsets = [8, 0], sizes = [8, 8], strides = [1, 1]} : vector<32x8xf32> to vector<8x8xf32>
    %cst_22 = arith.constant dense<0.000000e+00> : vector<8x8xf32>
    %32 = tpu.matmul %30, %31, %cst_22 {dimension_numbers = #tpu.dot_dimension_numbers<[1], [0], [0], [1], [0, 0, 1, 1], [], []>} : vector<8x8xf32>, vector<8x8xf32>, vector<8x8xf32> -> vector<8x8xf32>
    %c8 = arith.constant 8 : index
    %c0_23 = arith.constant 0 : index
    %33 = vector.load %arg19[%c8, %c0_23] : memref<32x8xf32, #tpu.memory_space<vmem>>, vector<8x8xf32>
    tpu.vector_store %arg19[%c8, %c0_23], %32 {strides = array<i32>} : memref<32x8xf32, #tpu.memory_space<vmem>>, vector<8x8xf32>,
    %34 = vector.extract_strided_slice %20 {offsets = [0, 16], sizes = [8, 8], strides = [1, 1]} : vector<8x32xf32> to vector<8x8xf32>
    %35 = vector.extract_strided_slice %23 {offsets = [16, 0], sizes = [8, 8], strides = [1, 1]} : vector<32x8xf32> to vector<8x8xf32>
    %cst_24 = arith.constant dense<0.000000e+00> : vector<8x8xf32>
    %36 = tpu.matmul %34, %35, %cst_24 {dimension_numbers = #tpu.dot_dimension_numbers<[1], [0], [0], [1], [0, 0, 1, 1], [], []>} : vector<8x8xf32>, vector<8x8xf32>, vector<8x8xf32> -> vector<8x8xf32>
    %c16 = arith.constant 16 : index
    %c0_25 = arith.constant 0 : index
    %37 = vector.load %arg19[%c16, %c0_25] : memref<32x8xf32, #tpu.memory_space<vmem>>, vector<8x8xf32>
    tpu.vector_store %arg19[%c16, %c0_25], %36 {strides = array<i32>} : memref<32x8xf32, #tpu.memory_space<vmem>>, vector<8x8xf32>,
    %38 = vector.extract_strided_slice %20 {offsets = [0, 24], sizes = [8, 8], strides = [1, 1]} : vector<8x32xf32> to vector<8x8xf32>
    %39 = vector.extract_strided_slice %23 {offsets = [24, 0], sizes = [8, 8], strides = [1, 1]} : vector<32x8xf32> to vector<8x8xf32>
    %cst_26 = arith.constant dense<0.000000e+00> : vector<8x8xf32>
    %40 = tpu.matmul %38, %39, %cst_26 {dimension_numbers = #tpu.dot_dimension_numbers<[1], [0], [0], [1], [0, 0, 1, 1], [], []>} : vector<8x8xf32>, vector<8x8xf32>, vector<8x8xf32> -> vector<8x8xf32>
    %c24 = arith.constant 24 : index
    %c0_27 = arith.constant 0 : index
    %41 = vector.load %arg19[%c24, %c0_27] : memref<32x8xf32, #tpu.memory_space<vmem>>, vector<8x8xf32>
    tpu.vector_store %arg19[%c24, %c0_27], %40 {strides = array<i32>} : memref<32x8xf32, #tpu.memory_space<vmem>>, vector<8x8xf32>,
    %42 = vector.broadcast %16 : i32 to vector<32x8xi32>
    %43 = arith.cmpi slt, %12, %42 : vector<32x8xi32>
    %c0_28 = arith.constant 0 : index
    %c0_29 = arith.constant 0 : index
    %44 = vector.load %arg19[%c0_28, %c0_29] : memref<32x8xf32, #tpu.memory_space<vmem>>, vector<32x8xf32>
    %cst_30 = arith.constant -1.000000e+06 : f32
    %45 = vector.broadcast %cst_30 : f32 to vector<32x8xf32>
    %46 = arith.select %43, %44, %45 : vector<32x8xi1>, vector<32x8xf32>
    %cst_31 = arith.constant dense<0xFF800000> : vector<32xf32>
    %47 = vector.multi_reduction <maximumf>, %46, %cst_31 [1] : vector<32x8xf32> to vector<32xf32>
    %48 = vector.shape_cast %47 : vector<32xf32> to vector<32x1xf32>
    %49 = vector.broadcast %48 : vector<32x1xf32> to vector<32x8xf32>
    %50 = arith.subf %46, %49 : vector<32x8xf32>
    %51 = math.exp %50 : vector<32x8xf32>
    %cst_32 = arith.constant dense<0.000000e+00> : vector<32xf32>
    %52 = vector.multi_reduction <add>, %51, %cst_32 [1] : vector<32x8xf32> to vector<32xf32>
    %53 = vector.shape_cast %52 : vector<32xf32> to vector<32x1xf32>
    %54 = tpu.reciprocal %53 {approx = true} : vector<32x1xf32> -> vector<32x1xf32>
    %55 = vector.broadcast %54 : vector<32x1xf32> to vector<32x8xf32>
    %56 = arith.mulf %51, %55 : vector<32x8xf32>
    %57 = vector.extract_strided_slice %56 {offsets = [0, 0], sizes = [8, 8], strides = [1, 1]} : vector<32x8xf32> to vector<8x8xf32>
    %58 = vector.extract_strided_slice %25 {offsets = [0, 0], sizes = [8, 8], strides = [1, 1]} : vector<8x32xf32> to vector<8x8xf32>
    %cst_33 = arith.constant dense<0.000000e+00> : vector<8x8xf32>
    %59 = tpu.matmul %57, %58, %cst_33 {dimension_numbers = #tpu.dot_dimension_numbers<[1], [0], [0], [1], [0, 0, 1, 1], [], []>} : vector<8x8xf32>, vector<8x8xf32>, vector<8x8xf32> -> vector<8x8xf32>
    %60 = arith.index_cast %18 : i32 to index
    %c0_34 = arith.constant 0 : index
    %61 = vector.load %arg20[%60, %c0_34] : memref<8x32xf32, #tpu.memory_space<vmem>>, vector<8x8xf32>
    tpu.vector_store %arg20[%60, %c0_34], %59 {strides = array<i32>} : memref<8x32xf32, #tpu.memory_space<vmem>>, vector<8x8xf32>,
    %62 = vector.extract_strided_slice %56 {offsets = [8, 0], sizes = [8, 8], strides = [1, 1]} : vector<32x8xf32> to vector<8x8xf32>
    %63 = vector.extract_strided_slice %25 {offsets = [0, 8], sizes = [8, 8], strides = [1, 1]} : vector<8x32xf32> to vector<8x8xf32>
    %cst_35 = arith.constant dense<0.000000e+00> : vector<8x8xf32>
    %64 = tpu.matmul %62, %63, %cst_35 {dimension_numbers = #tpu.dot_dimension_numbers<[1], [0], [0], [1], [0, 0, 1, 1], [], []>} : vector<8x8xf32>, vector<8x8xf32>, vector<8x8xf32> -> vector<8x8xf32>
    %65 = arith.index_cast %18 : i32 to index
    %c8_36 = arith.constant 8 : index
    %66 = vector.load %arg20[%65, %c8_36] : memref<8x32xf32, #tpu.memory_space<vmem>>, vector<8x8xf32>
    tpu.vector_store %arg20[%65, %c8_36], %64 {strides = array<i32>} : memref<8x32xf32, #tpu.memory_space<vmem>>, vector<8x8xf32>,
    %67 = vector.extract_strided_slice %56 {offsets = [16, 0], sizes = [8, 8], strides = [1, 1]} : vector<32x8xf32> to vector<8x8xf32>
    %68 = vector.extract_strided_slice %25 {offsets = [0, 16], sizes = [8, 8], strides = [1, 1]} : vector<8x32xf32> to vector<8x8xf32>
    %cst_37 = arith.constant dense<0.000000e+00> : vector<8x8xf32>
    %69 = tpu.matmul %67, %68, %cst_37 {dimension_numbers = #tpu.dot_dimension_numbers<[1], [0], [0], [1], [0, 0, 1, 1], [], []>} : vector<8x8xf32>, vector<8x8xf32>, vector<8x8xf32> -> vector<8x8xf32>
    %70 = arith.index_cast %18 : i32 to index
    %c16_38 = arith.constant 16 : index
    %71 = vector.load %arg20[%70, %c16_38] : memref<8x32xf32, #tpu.memory_space<vmem>>, vector<8x8xf32>
    tpu.vector_store %arg20[%70, %c16_38], %69 {strides = array<i32>} : memref<8x32xf32, #tpu.memory_space<vmem>>, vector<8x8xf32>,
    %72 = vector.extract_strided_slice %56 {offsets = [24, 0], sizes = [8, 8], strides = [1, 1]} : vector<32x8xf32> to vector<8x8xf32>
    %73 = vector.extract_strided_slice %25 {offsets = [0, 24], sizes = [8, 8], strides = [1, 1]} : vector<8x32xf32> to vector<8x8xf32>
    %cst_39 = arith.constant dense<0.000000e+00> : vector<8x8xf32>
    %74 = tpu.matmul %72, %73, %cst_39 {dimension_numbers = #tpu.dot_dimension_numbers<[1], [0], [0], [1], [0, 0, 1, 1], [], []>} : vector<8x8xf32>, vector<8x8xf32>, vector<8x8xf32> -> vector<8x8xf32>
    %75 = arith.index_cast %18 : i32 to index
    %c24_40 = arith.constant 24 : index
    %76 = vector.load %arg20[%75, %c24_40] : memref<8x32xf32, #tpu.memory_space<vmem>>, vector<8x8xf32>
    tpu.vector_store %arg20[%75, %c24_40], %74 {strides = array<i32>} : memref<8x32xf32, #tpu.memory_space<vmem>>, vector<8x8xf32>,
    %c1_i32_41 = arith.constant 1 : i32
    %c0_42 = arith.constant 0 : index
    %c0_43 = arith.constant 0 : index
    %77 = vector.load %arg20[%c0_42, %c0_43] : memref<8x32xf32, #tpu.memory_space<vmem>>, vector<8x32xf32>
    %c0_44 = arith.constant 0 : index
    %c0_45 = arith.constant 0 : index
    %78 = vector.load %arg6[%c0_44, %c0_45] : memref<32x32xf32, #tpu.memory_space<vmem>>, vector<32x32xf32>
    %cst_46 = arith.constant dense<0.000000e+00> : vector<8x32xf32>
    %79 = tpu.matmul %77, %78, %cst_46 {dimension_numbers = #tpu.dot_dimension_numbers<[1], [0], [0], [1], [0, 0, 1, 1], [], []>} : vector<8x32xf32>, vector<32x32xf32>, vector<8x32xf32> -> vector<8x32xf32>
    %c0_47 = arith.constant 0 : index
    %c0_48 = arith.constant 0 : index
    %80 = vector.load %arg2[%c0_47, %c0_48] : memref<8x32xf32, #tpu.memory_space<vmem>>, vector<8x32xf32>
    %81 = arith.addf %79, %80 : vector<8x32xf32>
    %cst_49 = arith.constant dense<0.000000e+00> : vector<8xf32>
    %82 = vector.multi_reduction <add>, %81, %cst_49 [1] : vector<8x32xf32> to vector<8xf32>
    %83 = vector.shape_cast %82 : vector<8xf32> to vector<8x1xf32>
    %cst_50 = arith.constant 3.200000e+01 : f32
    %84 = vector.broadcast %cst_50 : f32 to vector<8x1xf32>
    %85 = arith.divf %83, %84 : vector<8x1xf32>
    %86 = vector.broadcast %85 : vector<8x1xf32> to vector<8x32xf32>
    %87 = arith.subf %81, %86 : vector<8x32xf32>
    %88 = arith.mulf %87, %87 : vector<8x32xf32>
    %cst_51 = arith.constant dense<0.000000e+00> : vector<8xf32>
    %89 = vector.multi_reduction <add>, %88, %cst_51 [1] : vector<8x32xf32> to vector<8xf32>
    %90 = vector.shape_cast %89 : vector<8xf32> to vector<8x1xf32>
    %cst_52 = arith.constant 3.200000e+01 : f32
    %91 = vector.broadcast %cst_52 : f32 to vector<8x1xf32>
    %92 = arith.divf %90, %91 : vector<8x1xf32>
    %93 = vector.broadcast %85 : vector<8x1xf32> to vector<8x32xf32>
    %94 = arith.subf %81, %93 : vector<8x32xf32>
    %cst_53 = arith.constant 9.99999974E-6 : f32
    %95 = vector.broadcast %cst_53 : f32 to vector<8x1xf32>
    %96 = arith.addf %92, %95 : vector<8x1xf32>
    %97 = math.rsqrt %96 : vector<8x1xf32>
    %98 = vector.broadcast %97 : vector<8x1xf32> to vector<8x32xf32>
    %99 = arith.mulf %94, %98 : vector<8x32xf32>
    %c0_54 = arith.constant 0 : index
    %c0_55 = arith.constant 0 : index
    %100 = vector.load %arg11[%c0_54, %c0_55] : memref<1x32xf32, #tpu.memory_space<vmem>>, vector<1x32xf32>
    %101 = vector.broadcast %100 : vector<1x32xf32> to vector<8x32xf32>
    %102 = arith.mulf %99, %101 : vector<8x32xf32>
    %c0_56 = arith.constant 0 : index
    %c0_57 = arith.constant 0 : index
    %103 = vector.load %arg12[%c0_56, %c0_57] : memref<1x32xf32, #tpu.memory_space<vmem>>, vector<1x32xf32>
    %104 = vector.broadcast %103 : vector<1x32xf32> to vector<8x32xf32>
    %105 = arith.addf %102, %104 : vector<8x32xf32>
    %c0_58 = arith.constant 0 : index
    %c0_59 = arith.constant 0 : index
    %106 = vector.load %arg7[%c0_58, %c0_59] : memref<32x64xf32, #tpu.memory_space<vmem>>, vector<32x64xf32>
    %cst_60 = arith.constant dense<0.000000e+00> : vector<8x64xf32>
    %107 = tpu.matmul %105, %106, %cst_60 {dimension_numbers = #tpu.dot_dimension_numbers<[1], [0], [0], [1], [0, 0, 1, 1], [], []>} : vector<8x32xf32>, vector<32x64xf32>, vector<8x64xf32> -> vector<8x64xf32>
    %c0_61 = arith.constant 0 : index
    %c0_62 = arith.constant 0 : index
    %108 = vector.load %arg8[%c0_61, %c0_62] : memref<1x64xf32, #tpu.memory_space<vmem>>, vector<1x64xf32>
    %109 = vector.broadcast %108 : vector<1x64xf32> to vector<8x64xf32>
    %110 = arith.addf %107, %109 : vector<8x64xf32>
    %cst_63 = arith.constant 0.000000e+00 : f32
    %111 = vector.broadcast %cst_63 : f32 to vector<8x64xf32>
    %112 = arith.maximumf %110, %111 : vector<8x64xf32>
    %c0_64 = arith.constant 0 : index
    %c0_65 = arith.constant 0 : index
    %113 = vector.load %arg9[%c0_64, %c0_65] : memref<64x32xf32, #tpu.memory_space<vmem>>, vector<64x32xf32>
    %cst_66 = arith.constant dense<0.000000e+00> : vector<8x32xf32>
    %114 = tpu.matmul %112, %113, %cst_66 {dimension_numbers = #tpu.dot_dimension_numbers<[1], [0], [0], [1], [0, 0, 1, 1], [], []>} : vector<8x64xf32>, vector<64x32xf32>, vector<8x32xf32> -> vector<8x32xf32>
    %c0_67 = arith.constant 0 : index
    %c0_68 = arith.constant 0 : index
    %115 = vector.load %arg10[%c0_67, %c0_68] : memref<1x32xf32, #tpu.memory_space<vmem>>, vector<1x32xf32>
    %116 = vector.broadcast %115 : vector<1x32xf32> to vector<8x32xf32>
    %117 = arith.addf %114, %116 : vector<8x32xf32>
    %118 = arith.addf %117, %105 : vector<8x32xf32>
    %cst_69 = arith.constant dense<0.000000e+00> : vector<8xf32>
    %119 = vector.multi_reduction <add>, %118, %cst_69 [1] : vector<8x32xf32> to vector<8xf32>
    %120 = vector.shape_cast %119 : vector<8xf32> to vector<8x1xf32>
    %cst_70 = arith.constant 3.200000e+01 : f32
    %121 = vector.broadcast %cst_70 : f32 to vector<8x1xf32>
    %122 = arith.divf %120, %121 : vector<8x1xf32>
    %123 = vector.broadcast %122 : vector<8x1xf32> to vector<8x32xf32>
    %124 = arith.subf %118, %123 : vector<8x32xf32>
    %125 = arith.mulf %124, %124 : vector<8x32xf32>
    %cst_71 = arith.constant dense<0.000000e+00> : vector<8xf32>
    %126 = vector.multi_reduction <add>, %125, %cst_71 [1] : vector<8x32xf32> to vector<8xf32>
    %127 = vector.shape_cast %126 : vector<8xf32> to vector<8x1xf32>
    %cst_72 = arith.constant 3.200000e+01 : f32
    %128 = vector.broadcast %cst_72 : f32 to vector<8x1xf32>
    %129 = arith.divf %127, %128 : vector<8x1xf32>
    %130 = vector.broadcast %122 : vector<8x1xf32> to vector<8x32xf32>
    %131 = arith.subf %118, %130 : vector<8x32xf32>
    %cst_73 = arith.constant 9.99999974E-6 : f32
    %132 = vector.broadcast %cst_73 : f32 to vector<8x1xf32>
    %133 = arith.addf %129, %132 : vector<8x1xf32>
    %134 = math.rsqrt %133 : vector<8x1xf32>
    %135 = vector.broadcast %134 : vector<8x1xf32> to vector<8x32xf32>
    %136 = arith.mulf %131, %135 : vector<8x32xf32>
    %c0_74 = arith.constant 0 : index
    %c0_75 = arith.constant 0 : index
    %137 = vector.load %arg13[%c0_74, %c0_75] : memref<1x32xf32, #tpu.memory_space<vmem>>, vector<1x32xf32>
    %138 = vector.broadcast %137 : vector<1x32xf32> to vector<8x32xf32>
    %139 = arith.mulf %136, %138 : vector<8x32xf32>
    %c0_76 = arith.constant 0 : index
    %c0_77 = arith.constant 0 : index
    %140 = vector.load %arg14[%c0_76, %c0_77] : memref<1x32xf32, #tpu.memory_space<vmem>>, vector<1x32xf32>
    %141 = vector.broadcast %140 : vector<1x32xf32> to vector<8x32xf32>
    %142 = arith.addf %139, %141 : vector<8x32xf32>
    %c0_78 = arith.constant 0 : index
    %c0_79 = arith.constant 0 : index
    %143 = vector.load %arg15[%c0_78, %c0_79] : memref<8x32xf32, #tpu.memory_space<vmem>>, vector<8x32xf32>
    tpu.vector_store %arg15[%c0_78, %c0_79], %142 {strides = array<i32>} : memref<8x32xf32, #tpu.memory_space<vmem>>, vector<8x32xf32>,
    return
  }
  func.func @transform_0(%arg0: i32) -> i32 {
    %c0_i32 = arith.constant 0 : i32
    %c0_i32_0 = arith.constant 0 : i32
    return %c0_i32 : i32
  }
  func.func @transform_1(%arg0: i32) -> (i32, i32) {
    %c0_i32 = arith.constant 0 : i32
    %c0_i32_0 = arith.constant 0 : i32
    return %arg0, %c0_i32 : i32, i32
  }
  func.func @transform_2(%arg0: i32) -> (i32, i32) {
    %c0_i32 = arith.constant 0 : i32
    %c0_i32_0 = arith.constant 0 : i32
    %c0_i32_1 = arith.constant 0 : i32
    return %c0_i32, %c0_i32_0 : i32, i32
  }
  func.func @transform_3(%arg0: i32) -> (i32, i32) {
    %c0_i32 = arith.constant 0 : i32
    %c0_i32_0 = arith.constant 0 : i32
    %c0_i32_1 = arith.constant 0 : i32
    return %c0_i32, %c0_i32_0 : i32, i32
  }
  func.func @transform_4(%arg0: i32) -> (i32, i32) {
    %c0_i32 = arith.constant 0 : i32
    %c0_i32_0 = arith.constant 0 : i32
    %c0_i32_1 = arith.constant 0 : i32
    return %c0_i32, %c0_i32_0 : i32, i32
  }
  func.func @transform_5(%arg0: i32) -> (i32, i32) {
    %c0_i32 = arith.constant 0 : i32
    %c0_i32_0 = arith.constant 0 : i32
    %c0_i32_1 = arith.constant 0 : i32
    return %c0_i32, %c0_i32_0 : i32, i32
  }
  func.func @transform_6(%arg0: i32) -> (i32, i32) {
    %c0_i32 = arith.constant 0 : i32
    %c0_i32_0 = arith.constant 0 : i32
    %c0_i32_1 = arith.constant 0 : i32
    return %c0_i32, %c0_i32_0 : i32, i32
  }
  func.func @transform_7(%arg0: i32) -> (i32, i32) {
    %c0_i32 = arith.constant 0 : i32
    %c0_i32_0 = arith.constant 0 : i32
    %c0_i32_1 = arith.constant 0 : i32
    return %c0_i32, %c0_i32_0 : i32, i32
  }
  func.func @transform_8(%arg0: i32) -> (i32, i32) {
    %c0_i32 = arith.constant 0 : i32
    %c0_i32_0 = arith.constant 0 : i32
    %c0_i32_1 = arith.constant 0 : i32
    return %c0_i32, %c0_i32_0 : i32, i32
  }
  func.func @transform_9(%arg0: i32) -> (i32, i32) {
    %c0_i32 = arith.constant 0 : i32
    %c0_i32_0 = arith.constant 0 : i32
    %c0_i32_1 = arith.constant 0 : i32
    return %c0_i32, %c0_i32_0 : i32, i32
  }
  func.func @transform_10(%arg0: i32) -> (i32, i32) {
    %c0_i32 = arith.constant 0 : i32
    %c0_i32_0 = arith.constant 0 : i32
    %c0_i32_1 = arith.constant 0 : i32
    return %c0_i32, %c0_i32_0 : i32, i32
  }
  func.func @transform_11(%arg0: i32) -> (i32, i32) {
    %c0_i32 = arith.constant 0 : i32
    %c0_i32_0 = arith.constant 0 : i32
    %c0_i32_1 = arith.constant 0 : i32
    return %c0_i32, %c0_i32_0 : i32, i32
  }
  func.func @transform_12(%arg0: i32) -> (i32, i32) {
    %c0_i32 = arith.constant 0 : i32
    %c0_i32_0 = arith.constant 0 : i32
    %c0_i32_1 = arith.constant 0 : i32
    return %c0_i32, %c0_i32_0 : i32, i32
  }
  func.func @transform_13(%arg0: i32) -> (i32, i32) {
    %c0_i32 = arith.constant 0 : i32
    %c0_i32_0 = arith.constant 0 : i32
    %c0_i32_1 = arith.constant 0 : i32
    return %c0_i32, %c0_i32_0 : i32, i32
  }
  func.func @transform_14(%arg0: i32) -> (i32, i32) {
    %c0_i32 = arith.constant 0 : i32
    %c0_i32_0 = arith.constant 0 : i32
    return %arg0, %c0_i32 : i32, i32
  }
}

</mosaic_0001>

<llo_original>
// kernel: tpu_custom_call.1
$region0: #{tpu_custom_call.1}
  #allocation0 [shape = 'u32[]', space=smem, size = 0x4, offset = 0x4, fixed_abs, tag = 'smem constant byte address 0x4 - core index']
  #allocation1 [shape = 'u32[144,128]{1,0:T(1,128)}', space=vmem, size = 0x12000, scoped, tag = 'internal scratch']
  #allocation2 [shape = 'f32[8,32]{1,0:T(8,128)}', space=vmem, size = 0x1000, scoped, tag = 'scratch operand']
  #allocation3 [shape = 'f32[8,32]{1,0:T(8,128)}', space=vmem, size = 0x1000, scoped, tag = 'scratch operand']
  #allocation4 [shape = 'f32[8,32]{1,0:T(8,128)}', space=vmem, size = 0x1000, scoped, tag = 'scratch operand']
  #allocation5 [shape = 'f32[32,8]{1,0:T(8,128)}', space=vmem, size = 0x4000, scoped, tag = 'scratch operand']
  #allocation6 [shape = 'f32[8,32]{1,0:T(8,128)}', space=vmem, size = 0x1000, scoped, tag = 'scratch operand']
  %s0 = inlined_call_operand.hbm [shape: s32[2], index: 0, kind: input, shape index: {}]
  %s1 = inlined_call_operand.hbm [shape: f32[16,32], index: 1, kind: input, shape index: {}]
  %s2 = inlined_call_operand.vmem [shape: f32[32,32], index: 2, kind: input, shape index: {}]
  %s3 = inlined_call_operand.vmem [shape: f32[32,32], index: 3, kind: input, shape index: {}]
  %s4 = inlined_call_operand.vmem [shape: f32[32,32], index: 4, kind: input, shape index: {}]
  %s5 = inlined_call_operand.hbm [shape: f32[32,32], index: 5, kind: input, shape index: {}]
  %s6 = inlined_call_operand.hbm [shape: f32[32,64], index: 6, kind: input, shape index: {}]
  %s7 = inlined_call_operand.vmem [shape: f32[1,64], index: 7, kind: input, shape index: {}]
  %s8 = inlined_call_operand.vmem [shape: f32[64,32], index: 8, kind: input, shape index: {}]
  %s9 = inlined_call_operand.vmem [shape: f32[1,32], index: 9, kind: input, shape index: {}]
  %s10 = inlined_call_operand.vmem [shape: f32[1,32], index: 10, kind: input, shape index: {}]
  %s11 = inlined_call_operand.vmem [shape: f32[1,32], index: 11, kind: input, shape index: {}]
  %s12 = inlined_call_operand.vmem [shape: f32[1,32], index: 12, kind: input, shape index: {}]
  %s13 = inlined_call_operand.vmem [shape: f32[1,32], index: 13, kind: input, shape index: {}]
  %s14 = inlined_call_operand.hbm [shape: f32[16,32], index: 14, kind: output, shape index: {}]
  %s15 = sld [smem:[#allocation0]]
  $region105: #{tpu_custom_call.1} parent=0
    _
  %s17 = ssub.s32 1, %s15
  %s18 = scalar_select 0, %s17, %s15
  $region1: #{tpu_custom_call.1} parent=0
    #allocation7 [shape = 'u8[512]{0}', space=smem, size = 0x200, scoped, tag = 'input window, operand 0, single buffered']
    #allocation8 [shape = 's32[2]{0}', space=sflag, size = 0x8, scoped, tag = 'scoped memory for tpu_custom_call.1']
    #allocation9 [shape = 's32[2]{0}', space=sflag, size = 0x8, scoped, tag = 'scoped memory for tpu_custom_call.1']
    #allocation10 [shape = 's32[2]{0}', space=sflag, size = 0x8, scoped, tag = 'scoped memory for tpu_custom_call.1']
    #allocation11 [shape = 'u8[8192]{0}', space=vmem, size = 0x2000, scoped, tag = 'input window, operand 1']
    #allocation12 [shape = 'u8[16384]{0}', space=vmem, size = 0x4000, scoped, tag = 'input window, operand 5, single buffered']
    #allocation13 [shape = 's32[1]{0}', space=sflag, size = 0x4, scoped, tag = 'scoped memory for tpu_custom_call.1']
    #allocation14 [shape = 'u8[16384]{0}', space=vmem, size = 0x4000, scoped, tag = 'input window, operand 6, single buffered']
    #allocation15 [shape = 'u8[8192]{0}', space=vmem, size = 0x2000, scoped, tag = 'output window, operand 0']
    %19 = vsyncpa [#allocation10], 0
    %20 = vsyncpa [#allocation8], 0
    %s21 = scalar_lea.sflag [#allocation8], 1
    %22 = vsyncpa %s21, 0
    %23 = vsyncpa [#allocation13], 0
    %24 = vsyncpa [#allocation9], 0
    %s25 = scalar_lea.sflag [#allocation9], 1
    %26 = vsyncpa %s25, 0
    loop: start=0, step=1, limit=4
    $region2: #{tpu_custom_call.1} parent=1 // loop_pre_header
      _
    $region3: #{tpu_custom_call.1} parent=1 // loop_header
      %s28 = sphi 0, %s32
      %p29 = scmp.ge.s32.totalorder %s28, 4
      %s36 = sphi 0, %s36
      %s38 = sphi 0, %s36
      %s39 = sphi 0, %s38
      %s53 = sphi 0, %s39
      %s59 = sphi 0, %s61
      %s62 = sphi 0, %s59
      %s63 = sphi 0, %s62
      %s79 = sphi 0, %s63
      %s83 = sphi 0, %s83
      %s85 = sphi 0, %s83
      %s86 = sphi 0, %s85
      %s100 = sphi 0, %s86
      %s104 = sphi 0, %s104
      %s106 = sphi 0, %s104
      %s107 = sphi 0, %s106
      %s121 = sphi 0, %s107
      %s125 = sphi 0, %s125
      %s127 = sphi 0, %s125
      %s128 = sphi 0, %s127
      %s142 = sphi 0, %s128
      %s146 = sphi 0, %s146
      %s148 = sphi 0, %s146
      %s149 = sphi 0, %s148
      %s163 = sphi 0, %s149
      %s167 = sphi 0, %s167
      %s169 = sphi 0, %s167
      %s170 = sphi 0, %s169
      %s184 = sphi 0, %s170
      %s188 = sphi 0, %s188
      %s190 = sphi 0, %s188
      %s191 = sphi 0, %s190
      %s205 = sphi 0, %s191
      %s209 = sphi 0, %s209
      %s211 = sphi 0, %s209
      %s212 = sphi 0, %s211
      %s226 = sphi 0, %s212
      %s230 = sphi 0, %s230
      %s232 = sphi 0, %s230
      %s233 = sphi 0, %s232
      %s247 = sphi 0, %s233
      %s251 = sphi 0, %s251
      %s253 = sphi 0, %s251
      %s254 = sphi 0, %s253
      %s268 = sphi 0, %s254
      %s272 = sphi 0, %s272
      %s274 = sphi 0, %s272
      %s275 = sphi 0, %s274
      %s289 = sphi 0, %s275
      %s293 = sphi 0, %s293
      %s295 = sphi 0, %s293
      %s296 = sphi 0, %s295
      %s310 = sphi 0, %s296
      %s314 = sphi 0, %s314
      %s316 = sphi 0, %s314
      %s317 = sphi 0, %s316
      %s331 = sphi 0, %s317
      %s337 = sphi 0, %s339
      %s340 = sphi 0, %s337
      %s341 = sphi 0, %s340
      %s357 = sphi 0, %s341
    $region4: #{tpu_custom_call.1} parent=1 // loop_header_branch
      %31 = sbr.rel (%p29) target = $region8
    $region5: #{tpu_custom_call.1} parent=1 // loop_body
      %s33 = ssub.s32 %s28, 1
      %s34 = ssub.s32 %s28, 2
      %s35 = sadd.s32 %s28, 1
      %s37 = sadd.s32 %s36, 1
      %p40 = scmp.eq.s32.totalorder %s28, 1
      %p41 = scmp.ne.s32.totalorder %s36, %s38
      %p42 = scmp.eq.s32.totalorder %s28, 0
      %p43 = por %p41, %p42
      %p44 = scmp.ne.s32.totalorder %s36, %s38
      %p45 = scmp.eq.s32.totalorder %s33, 1
      %p46 = por %p44, %p45
      %p47 = scmp.ne.s32.totalorder %s38, %s39
      %p48 = scmp.eq.s32.totalorder %s33, 0
      %p49 = por %p47, %p48
      %p50 = scmp.ne.s32.totalorder %s38, %s39
      %p51 = scmp.eq.s32.totalorder %s34, 1
      %p52 = por %p50, %p51
      %p54 = scmp.ne.s32.totalorder %s39, %s53
      %p55 = scmp.eq.s32.totalorder %s34, 0
      %p56 = por %p54, %p55
      %s57 = ssub.s32 %s28, %s35
      %p58 = scmp.eq.s32.totalorder %s57, 0
      %s60 = sadd.s32 %s59, 1
      %s61 = scalar_select %p58, %s59, %s60
      %p64 = pneg %p58
      %p65 = scmp.eq.s32.totalorder %s28, 1
      %p66 = por %p64, %p65
      %p67 = scmp.ne.s32.totalorder %s59, %s62
      %p68 = scmp.eq.s32.totalorder %s28, 0
      %p69 = por %p67, %p68
      %p70 = scmp.ne.s32.totalorder %s59, %s62
      %p71 = scmp.eq.s32.totalorder %s33, 1
      %p72 = por %p70, %p71
      %p73 = scmp.ne.s32.totalorder %s62, %s63
      %p74 = scmp.eq.s32.totalorder %s33, 0
      %p75 = por %p73, %p74
      %p76 = scmp.ne.s32.totalorder %s62, %s63
      %p77 = scmp.eq.s32.totalorder %s34, 1
      %p78 = por %p76, %p77
      %p80 = scmp.ne.s32.totalorder %s63, %s79
      %p81 = scmp.eq.s32.totalorder %s34, 0
      %p82 = por %p80, %p81
      %s84 = sadd.s32 %s83, 1
      %p87 = scmp.eq.s32.totalorder %s28, 1
      %p88 = scmp.ne.s32.totalorder %s83, %s85
      %p89 = scmp.eq.s32.totalorder %s28, 0
      %p90 = por %p88, %p89
      %p91 = scmp.ne.s32.totalorder %s83, %s85
      %p92 = scmp.eq.s32.totalorder %s33, 1
      %p93 = por %p91, %p92
      %p94 = scmp.ne.s32.totalorder %s85, %s86
      %p95 = scmp.eq.s32.totalorder %s33, 0
      %p96 = por %p94, %p95
      %p97 = scmp.ne.s32.totalorder %s85, %s86
      %p98 = scmp.eq.s32.totalorder %s34, 1
      %p99 = por %p97, %p98
      %p101 = scmp.ne.s32.totalorder %s86, %s100
      %p102 = scmp.eq.s32.totalorder %s34, 0
      %p103 = por %p101, %p102
      %s105 = sadd.s32 %s104, 1
      %p108 = scmp.eq.s32.totalorder %s28, 1
      %p109 = scmp.ne.s32.totalorder %s104, %s106
      %p110 = scmp.eq.s32.totalorder %s28, 0
      %p111 = por %p109, %p110
      %p112 = scmp.ne.s32.totalorder %s104, %s106
      %p113 = scmp.eq.s32.totalorder %s33, 1
      %p114 = por %p112, %p113
      %p115 = scmp.ne.s32.totalorder %s106, %s107
      %p116 = scmp.eq.s32.totalorder %s33, 0
      %p117 = por %p115, %p116
      %p118 = scmp.ne.s32.totalorder %s106, %s107
      %p119 = scmp.eq.s32.totalorder %s34, 1
      %p120 = por %p118, %p119
      %p122 = scmp.ne.s32.totalorder %s107, %s121
      %p123 = scmp.eq.s32.totalorder %s34, 0
      %p124 = por %p122, %p123
      %s126 = sadd.s32 %s125, 1
      %p129 = scmp.eq.s32.totalorder %s28, 1
      %p130 = scmp.ne.s32.totalorder %s125, %s127
      %p131 = scmp.eq.s32.totalorder %s28, 0
      %p132 = por %p130, %p131
      %p133 = scmp.ne.s32.totalorder %s125, %s127
      %p134 = scmp.eq.s32.totalorder %s33, 1
      %p135 = por %p133, %p134
      %p136 = scmp.ne.s32.totalorder %s127, %s128
      %p137 = scmp.eq.s32.totalorder %s33, 0
      %p138 = por %p136, %p137
      %p139 = scmp.ne.s32.totalorder %s127, %s128
      %p140 = scmp.eq.s32.totalorder %s34, 1
      %p141 = por %p139, %p140
      %p143 = scmp.ne.s32.totalorder %s128, %s142
      %p144 = scmp.eq.s32.totalorder %s34, 0
      %p145 = por %p143, %p144
      %s147 = sadd.s32 %s146, 1
      %p150 = scmp.eq.s32.totalorder %s28, 1
      %p151 = scmp.ne.s32.totalorder %s146, %s148
      %p152 = scmp.eq.s32.totalorder %s28, 0
      %p153 = por %p151, %p152
      %p154 = scmp.ne.s32.totalorder %s146, %s148
      %p155 = scmp.eq.s32.totalorder %s33, 1
      %p156 = por %p154, %p155
      %p157 = scmp.ne.s32.totalorder %s148, %s149
      %p158 = scmp.eq.s32.totalorder %s33, 0
      %p159 = por %p157, %p158
      %p160 = scmp.ne.s32.totalorder %s148, %s149
      %p161 = scmp.eq.s32.totalorder %s34, 1
      %p162 = por %p160, %p161
      %p164 = scmp.ne.s32.totalorder %s149, %s163
      %p165 = scmp.eq.s32.totalorder %s34, 0
      %p166 = por %p164, %p165
      %s168 = sadd.s32 %s167, 1
      %p171 = scmp.eq.s32.totalorder %s28, 1
      %p172 = scmp.ne.s32.totalorder %s167, %s169
      %p173 = scmp.eq.s32.totalorder %s28, 0
      %p174 = por %p172, %p173
      %p175 = scmp.ne.s32.totalorder %s167, %s169
      %p176 = scmp.eq.s32.totalorder %s33, 1
      %p177 = por %p175, %p176
      %p178 = scmp.ne.s32.totalorder %s169, %s170
      %p179 = scmp.eq.s32.totalorder %s33, 0
      %p180 = por %p178, %p179
      %p181 = scmp.ne.s32.totalorder %s169, %s170
      %p182 = scmp.eq.s32.totalorder %s34, 1
      %p183 = por %p181, %p182
      %p185 = scmp.ne.s32.totalorder %s170, %s184
      %p186 = scmp.eq.s32.totalorder %s34, 0
      %p187 = por %p185, %p186
      %s189 = sadd.s32 %s188, 1
      %p192 = scmp.eq.s32.totalorder %s28, 1
      %p193 = scmp.ne.s32.totalorder %s188, %s190
      %p194 = scmp.eq.s32.totalorder %s28, 0
      %p195 = por %p193, %p194
      %p196 = scmp.ne.s32.totalorder %s188, %s190
      %p197 = scmp.eq.s32.totalorder %s33, 1
      %p198 = por %p196, %p197
      %p199 = scmp.ne.s32.totalorder %s190, %s191
      %p200 = scmp.eq.s32.totalorder %s33, 0
      %p201 = por %p199, %p200
      %p202 = scmp.ne.s32.totalorder %s190, %s191
      %p203 = scmp.eq.s32.totalorder %s34, 1
      %p204 = por %p202, %p203
      %p206 = scmp.ne.s32.totalorder %s191, %s205
      %p207 = scmp.eq.s32.totalorder %s34, 0
      %p208 = por %p206, %p207
      %s210 = sadd.s32 %s209, 1
      %p213 = scmp.eq.s32.totalorder %s28, 1
      %p214 = scmp.ne.s32.totalorder %s209, %s211
      %p215 = scmp.eq.s32.totalorder %s28, 0
      %p216 = por %p214, %p215
      %p217 = scmp.ne.s32.totalorder %s209, %s211
      %p218 = scmp.eq.s32.totalorder %s33, 1
      %p219 = por %p217, %p218
      %p220 = scmp.ne.s32.totalorder %s211, %s212
      %p221 = scmp.eq.s32.totalorder %s33, 0
      %p222 = por %p220, %p221
      %p223 = scmp.ne.s32.totalorder %s211, %s212
      %p224 = scmp.eq.s32.totalorder %s34, 1
      %p225 = por %p223, %p224
      %p227 = scmp.ne.s32.totalorder %s212, %s226
      %p228 = scmp.eq.s32.totalorder %s34, 0
      %p229 = por %p227, %p228
      %s231 = sadd.s32 %s230, 1
      %p234 = scmp.eq.s32.totalorder %s28, 1
      %p235 = scmp.ne.s32.totalorder %s230, %s232
      %p236 = scmp.eq.s32.totalorder %s28, 0
      %p237 = por %p235, %p236
      %p238 = scmp.ne.s32.totalorder %s230, %s232
      %p239 = scmp.eq.s32.totalorder %s33, 1
      %p240 = por %p238, %p239
      %p241 = scmp.ne.s32.totalorder %s232, %s233
      %p242 = scmp.eq.s32.totalorder %s33, 0
      %p243 = por %p241, %p242
      %p244 = scmp.ne.s32.totalorder %s232, %s233
      %p245 = scmp.eq.s32.totalorder %s34, 1
      %p246 = por %p244, %p245
      %p248 = scmp.ne.s32.totalorder %s233, %s247
      %p249 = scmp.eq.s32.totalorder %s34, 0
      %p250 = por %p248, %p249
      %s252 = sadd.s32 %s251, 1
      %p255 = scmp.eq.s32.totalorder %s28, 1
      %p256 = scmp.ne.s32.totalorder %s251, %s253
      %p257 = scmp.eq.s32.totalorder %s28, 0
      %p258 = por %p256, %p257
      %p259 = scmp.ne.s32.totalorder %s251, %s253
      %p260 = scmp.eq.s32.totalorder %s33, 1
      %p261 = por %p259, %p260
      %p262 = scmp.ne.s32.totalorder %s253, %s254
      %p263 = scmp.eq.s32.totalorder %s33, 0
      %p264 = por %p262, %p263
      %p265 = scmp.ne.s32.totalorder %s253, %s254
      %p266 = scmp.eq.s32.totalorder %s34, 1
      %p267 = por %p265, %p266
      %p269 = scmp.ne.s32.totalorder %s254, %s268
      %p270 = scmp.eq.s32.totalorder %s34, 0
      %p271 = por %p269, %p270
      %s273 = sadd.s32 %s272, 1
      %p276 = scmp.eq.s32.totalorder %s28, 1
      %p277 = scmp.ne.s32.totalorder %s272, %s274
      %p278 = scmp.eq.s32.totalorder %s28, 0
      %p279 = por %p277, %p278
      %p280 = scmp.ne.s32.totalorder %s272, %s274
      %p281 = scmp.eq.s32.totalorder %s33, 1
      %p282 = por %p280, %p281
      %p283 = scmp.ne.s32.totalorder %s274, %s275
      %p284 = scmp.eq.s32.totalorder %s33, 0
      %p285 = por %p283, %p284
      %p286 = scmp.ne.s32.totalorder %s274, %s275
      %p287 = scmp.eq.s32.totalorder %s34, 1
      %p288 = por %p286, %p287
      %p290 = scmp.ne.s32.totalorder %s275, %s289
      %p291 = scmp.eq.s32.totalorder %s34, 0
      %p292 = por %p290, %p291
      %s294 = sadd.s32 %s293, 1
      %p297 = scmp.eq.s32.totalorder %s28, 1
      %p298 = scmp.ne.s32.totalorder %s293, %s295
      %p299 = scmp.eq.s32.totalorder %s28, 0
      %p300 = por %p298, %p299
      %p301 = scmp.ne.s32.totalorder %s293, %s295
      %p302 = scmp.eq.s32.totalorder %s33, 1
      %p303 = por %p301, %p302
      %p304 = scmp.ne.s32.totalorder %s295, %s296
      %p305 = scmp.eq.s32.totalorder %s33, 0
      %p306 = por %p304, %p305
      %p307 = scmp.ne.s32.totalorder %s295, %s296
      %p308 = scmp.eq.s32.totalorder %s34, 1
      %p309 = por %p307, %p308
      %p311 = scmp.ne.s32.totalorder %s296, %s310
      %p312 = scmp.eq.s32.totalorder %s34, 0
      %p313 = por %p311, %p312
      %s315 = sadd.s32 %s314, 1
      %p318 = scmp.eq.s32.totalorder %s28, 1
      %p319 = scmp.ne.s32.totalorder %s314, %s316
      %p320 = scmp.eq.s32.totalorder %s28, 0
      %p321 = por %p319, %p320
      %p322 = scmp.ne.s32.totalorder %s314, %s316
      %p323 = scmp.eq.s32.totalorder %s33, 1
      %p324 = por %p322, %p323
      %p325 = scmp.ne.s32.totalorder %s316, %s317
      %p326 = scmp.eq.s32.totalorder %s33, 0
      %p327 = por %p325, %p326
      %p328 = scmp.ne.s32.totalorder %s316, %s317
      %p329 = scmp.eq.s32.totalorder %s34, 1
      %p330 = por %p328, %p329
      %p332 = scmp.ne.s32.totalorder %s317, %s331
      %p333 = scmp.eq.s32.totalorder %s34, 0
      %p334 = por %p332, %p333
      %s335 = ssub.s32 %s28, %s35
      %p336 = scmp.eq.s32.totalorder %s335, 0
      %s338 = sadd.s32 %s337, 1
      %s339 = scalar_select %p336, %s337, %s338
      %p342 = pneg %p336
      %p343 = scmp.eq.s32.totalorder %s28, 1
      %p344 = por %p342, %p343
      %p345 = scmp.ne.s32.totalorder %s337, %s340
      %p346 = scmp.eq.s32.totalorder %s28, 0
      %p347 = por %p345, %p346
      %p348 = scmp.ne.s32.totalorder %s337, %s340
      %p349 = scmp.eq.s32.totalorder %s33, 1
      %p350 = por %p348, %p349
      %p351 = scmp.ne.s32.totalorder %s340, %s341
      %p352 = scmp.eq.s32.totalorder %s33, 0
      %p353 = por %p351, %p352
      %p354 = scmp.ne.s32.totalorder %s340, %s341
      %p355 = scmp.eq.s32.totalorder %s34, 1
      %p356 = por %p354, %p355
      %p358 = scmp.ne.s32.totalorder %s341, %s357
      %p359 = scmp.eq.s32.totalorder %s34, 0
      %p360 = por %p358, %p359
      %p361 = scmp.le.s32.totalorder 1, %s28
      %p362 = scmp.lt.s32.totalorder %s28, 3
      %p363 = pnand %p361, %p362
      %p364 = pneg %p363
      // Predicated region
      $region9: #{tpu_custom_call.1} parent=5 // pred_check
        _
      $region10: #{tpu_custom_call.1} parent=5 // pred_check_branch
        %366 = sbr.rel (%p363) target = $region12
      $region11: #{tpu_custom_call.1} parent=5 // pred_region
        %s367 = ssub.s32 %s28, 1
        // Predicated region
        $region13: #{tpu_custom_call.1} parent=11 // pred_check
          %p368 = pneg %p49
        $region14: #{tpu_custom_call.1} parent=11 // pred_check_branch
          %370 = sbr.rel (%p368) target = $region16
        $region15: #{tpu_custom_call.1} parent=11 // pred_region
          %s372 = ssub.s32 16, 16
          %373 = vsyncadd [#allocation10], %s372
          %376 = dma.hbm_to_smem %s0, 16, [#allocation7], [#allocation10]
        $region16: #{tpu_custom_call.1} parent=11 // pred_fallthru
          _
        // Predicated region
        $region17: #{tpu_custom_call.1} parent=11 // pred_check
          %p377 = pneg %p96
        $region18: #{tpu_custom_call.1} parent=11 // pred_check_branch
          %379 = sbr.rel (%p377) target = $region20
        $region19: #{tpu_custom_call.1} parent=11 // pred_region
          _
        $region20: #{tpu_custom_call.1} parent=11 // pred_fallthru
          _
        // Predicated region
        $region21: #{tpu_custom_call.1} parent=11 // pred_check
          %p380 = pneg %p117
        $region22: #{tpu_custom_call.1} parent=11 // pred_check_branch
          %382 = sbr.rel (%p380) target = $region24
        $region23: #{tpu_custom_call.1} parent=11 // pred_region
          _
        $region24: #{tpu_custom_call.1} parent=11 // pred_fallthru
          _
        // Predicated region
        $region25: #{tpu_custom_call.1} parent=11 // pred_check
          %p383 = pneg %p138
        $region26: #{tpu_custom_call.1} parent=11 // pred_check_branch
          %385 = sbr.rel (%p383) target = $region28
        $region27: #{tpu_custom_call.1} parent=11 // pred_region
          _
        $region28: #{tpu_custom_call.1} parent=11 // pred_fallthru
          _
        // Predicated region
        $region29: #{tpu_custom_call.1} parent=11 // pred_check
          %p386 = pneg %p159
        $region30: #{tpu_custom_call.1} parent=11 // pred_check_branch
          %388 = sbr.rel (%p386) target = $region32
        $region31: #{tpu_custom_call.1} parent=11 // pred_region
          %s390 = ssub.s32 512, 512
          %391 = vsyncadd [#allocation13], %s390
          %s392 = sshll.u32 [#allocation12], 4
          %s393 = int_to_ptr.vmem [resolvable:$true] %s392
          %398 = dma.hbm_to_vmem [thread:$0]  %s5, 512, %s393, [#allocation13], 128, 128, 8
        $region32: #{tpu_custom_call.1} parent=11 // pred_fallthru
          _
        // Predicated region
        $region33: #{tpu_custom_call.1} parent=11 // pred_check
          %p399 = pneg %p180
        $region34: #{tpu_custom_call.1} parent=11 // pred_check_branch
          %401 = sbr.rel (%p399) target = $region36
        $region35: #{tpu_custom_call.1} parent=11 // pred_region
          %s403 = ssub.s32 512, 512
          %404 = vsyncadd [#allocation13], %s403
          %s405 = sshll.u32 [#allocation14], 4
          %s406 = int_to_ptr.vmem [resolvable:$true] %s405
          %411 = dma.hbm_to_vmem [thread:$0]  %s6, 512, %s406, [#allocation13], 128, 128, 8
        $region36: #{tpu_custom_call.1} parent=11 // pred_fallthru
          _
        // Predicated region
        $region37: #{tpu_custom_call.1} parent=11 // pred_check
          %p412 = pneg %p201
        $region38: #{tpu_custom_call.1} parent=11 // pred_check_branch
          %414 = sbr.rel (%p412) target = $region40
        $region39: #{tpu_custom_call.1} parent=11 // pred_region
          _
        $region40: #{tpu_custom_call.1} parent=11 // pred_fallthru
          _
        // Predicated region
        $region41: #{tpu_custom_call.1} parent=11 // pred_check
          %p415 = pneg %p222
        $region42: #{tpu_custom_call.1} parent=11 // pred_check_branch
          %417 = sbr.rel (%p415) target = $region44
        $region43: #{tpu_custom_call.1} parent=11 // pred_region
          _
        $region44: #{tpu_custom_call.1} parent=11 // pred_fallthru
          _
        // Predicated region
        $region45: #{tpu_custom_call.1} parent=11 // pred_check
          %p418 = pneg %p243
        $region46: #{tpu_custom_call.1} parent=11 // pred_check_branch
          %420 = sbr.rel (%p418) target = $region48
        $region47: #{tpu_custom_call.1} parent=11 // pred_region
          _
        $region48: #{tpu_custom_call.1} parent=11 // pred_fallthru
          _
        // Predicated region
        $region49: #{tpu_custom_call.1} parent=11 // pred_check
          %p421 = pneg %p264
        $region50: #{tpu_custom_call.1} parent=11 // pred_check_branch
          %423 = sbr.rel (%p421) target = $region52
        $region51: #{tpu_custom_call.1} parent=11 // pred_region
          _
        $region52: #{tpu_custom_call.1} parent=11 // pred_fallthru
          _
        // Predicated region
        $region53: #{tpu_custom_call.1} parent=11 // pred_check
          %p424 = pneg %p285
        $region54: #{tpu_custom_call.1} parent=11 // pred_check_branch
          %426 = sbr.rel (%p424) target = $region56
        $region55: #{tpu_custom_call.1} parent=11 // pred_region
          _
        $region56: #{tpu_custom_call.1} parent=11 // pred_fallthru
          _
        // Predicated region
        $region57: #{tpu_custom_call.1} parent=11 // pred_check
          %p427 = pneg %p306
        $region58: #{tpu_custom_call.1} parent=11 // pred_check_branch
          %429 = sbr.rel (%p427) target = $region60
        $region59: #{tpu_custom_call.1} parent=11 // pred_region
          _
        $region60: #{tpu_custom_call.1} parent=11 // pred_fallthru
          _
        // Predicated region
        $region61: #{tpu_custom_call.1} parent=11 // pred_check
          %p430 = pneg %p327
        $region62: #{tpu_custom_call.1} parent=11 // pred_check_branch
          %432 = sbr.rel (%p430) target = $region64
        $region63: #{tpu_custom_call.1} parent=11 // pred_region
          _
        $region64: #{tpu_custom_call.1} parent=11 // pred_fallthru
          _
      $region12: #{tpu_custom_call.1} parent=5 // pred_fallthru
        _
      %p433 = scmp.lt.s32.totalorder %s28, 2
      // Predicated region
      $region65: #{tpu_custom_call.1} parent=5 // pred_check
        %p434 = pneg %p433
      $region66: #{tpu_custom_call.1} parent=5 // pred_check_branch
        %436 = sbr.rel (%p434) target = $region68
      $region67: #{tpu_custom_call.1} parent=5 // pred_region
        // Predicated region
        $region69: #{tpu_custom_call.1} parent=67 // pred_check
          %p437 = pneg %p69
        $region70: #{tpu_custom_call.1} parent=67 // pred_check_branch
          %439 = sbr.rel (%p437) target = $region72
        $region71: #{tpu_custom_call.1} parent=67 // pred_region
          %s440 = sand.u32 %s59, 1
          %s441 = scalar_lea.sflag [#allocation8], %s440
          %s442 = sand.u32 %s59, 1
          %s443 = smul.addr %s442, 8
          %s444 = scalar_lea.vmem [#allocation11], %s443
          %s446 = ssub.s32 128, 128
          %447 = vsyncadd %s441, %s446
          %s448 = smul.addr %s28, 128
          %s449 = scalar_lea.hbm %s1, %s448
          %s451 = sshll.u32 %s444, 4
          %s452 = int_to_ptr.vmem [resolvable:$true] %s451
          %454 = dma.hbm_to_vmem [thread:$0]  %s449, 128, %s452, %s441
        $region72: #{tpu_custom_call.1} parent=67 // pred_fallthru
          _
      $region68: #{tpu_custom_call.1} parent=5 // pred_fallthru
        _
      %p455 = scmp.le.s32.totalorder 1, %s28
      %p456 = scmp.lt.s32.totalorder %s28, 3
      %p457 = pnand %p455, %p456
      %p458 = pneg %p457
      // Predicated region
      $region73: #{tpu_custom_call.1} parent=5 // pred_check
        _
      $region74: #{tpu_custom_call.1} parent=5 // pred_check_branch
        %460 = sbr.rel (%p457) target = $region76
      $region75: #{tpu_custom_call.1} parent=5 // pred_region
        %s461 = ssub.s32 %s28, 1
        // Predicated region
        $region77: #{tpu_custom_call.1} parent=75 // pred_check
          %p462 = pneg %p49
        $region78: #{tpu_custom_call.1} parent=75 // pred_check_branch
          %464 = sbr.rel (%p462) target = $region80
        $region79: #{tpu_custom_call.1} parent=75 // pred_region
          %465 = dma.done [#allocation10], 16
        $region80: #{tpu_custom_call.1} parent=75 // pred_fallthru
          _
        %s466 = sand.u32 %s62, 1
        %s467 = scalar_lea.sflag [#allocation8], %s466
        %s468 = sand.u32 %s62, 1
        %s469 = smul.addr %s468, 8
        %s470 = scalar_lea.vmem [#allocation11], %s469
        // Predicated region
        $region81: #{tpu_custom_call.1} parent=75 // pred_check
          %p471 = pneg %p75
        $region82: #{tpu_custom_call.1} parent=75 // pred_check_branch
          %473 = sbr.rel (%p471) target = $region84
        $region83: #{tpu_custom_call.1} parent=75 // pred_region
          %474 = dma.done %s467, 128
        $region84: #{tpu_custom_call.1} parent=75 // pred_fallthru
          _
        // Predicated region
        $region85: #{tpu_custom_call.1} parent=75 // pred_check
          %p475 = pneg %p159
        $region86: #{tpu_custom_call.1} parent=75 // pred_check_branch
          %477 = sbr.rel (%p475) target = $region88
        $region87: #{tpu_custom_call.1} parent=75 // pred_region
          %478 = dma.done [#allocation13], 512
        $region88: #{tpu_custom_call.1} parent=75 // pred_fallthru
          _
        // Predicated region
        $region89: #{tpu_custom_call.1} parent=75 // pred_check
          %p479 = pneg %p180
        $region90: #{tpu_custom_call.1} parent=75 // pred_check_branch
          %481 = sbr.rel (%p479) target = $region92
        $region91: #{tpu_custom_call.1} parent=75 // pred_region
          %482 = dma.done [#allocation13], 512
        $region92: #{tpu_custom_call.1} parent=75 // pred_fallthru
          _
        %483 = sfence
        %p484 = pneg %p49
        %p485 = pneg %p46
        %s486 = sand.u32 %s62, 1
        %s487 = scalar_lea.sflag [#allocation8], %s486
        %s488 = sand.u32 %s62, 1
        %s489 = smul.addr %s488, 8
        %s490 = scalar_lea.vmem [#allocation11], %s489
        %p491 = pneg %p75
        %p492 = pneg %p72
        %p493 = pneg %p96
        %p494 = pneg %p93
        %p495 = pneg %p117
        %p496 = pneg %p114
        %p497 = pneg %p138
        %p498 = pneg %p135
        %p499 = pneg %p159
        %p500 = pneg %p156
        %p501 = pneg %p180
        %p502 = pneg %p177
        %p503 = pneg %p201
        %p504 = pneg %p198
        %p505 = pneg %p222
        %p506 = pneg %p219
        %p507 = pneg %p243
        %p508 = pneg %p240
        %p509 = pneg %p264
        %p510 = pneg %p261
        %p511 = pneg %p285
        %p512 = pneg %p282
        %p513 = pneg %p306
        %p514 = pneg %p303
        %p515 = pneg %p327
        %p516 = pneg %p324
        %p517 = pneg %p353
        %p518 = pneg %p350
        %s519 = sand.u32 %s340, 1
        %s520 = scalar_lea.sflag [#allocation9], %s519
        %s521 = sand.u32 %s340, 1
        %s522 = smul.addr %s521, 8
        %s523 = scalar_lea.vmem [#allocation15], %s522
        %v524 = vld [vmem:[%s470] sm:$0xff]
        %v525 = vld [vmem:[%s2] sm:$0xff]
        %v526 = vld [vmem:[%s2 + $0x8] sm:$0xff]
        %v527 = vld [vmem:[%s2 + $0x10] sm:$0xff]
        %v528 = vld [vmem:[%s2 + $0x18] sm:$0xff]
        %vm529 = vcmask 261120
        %v531 = vsel %vm529, %v524, 0
        %533 = vmatprep.subr.mxu0 0.0
        %534 = vmatpush1.msra.mxu0 %v525
        %535 = vmatprep.subr.mxu0 0.0
        %536 = vmatpush1.msra.mxu0 %v526
        %537 = vmatprep.subr.mxu0 0.0
        %538 = vmatpush1.msra.mxu0 %v527
        %539 = vmatprep.subr.mxu0 0.0
        %540 = vmatpush1.msra.mxu0 %v528
        %541 = vmatprep.subr.mxu0 0.0
        %542 = vmatpush1.msra.mxu0 0.0
        %543 = vmatprep.subr.mxu0 0.0
        %544 = vmatpush1.msra.mxu0 0.0
        %545 = vmatprep.subr.mxu0 0.0
        %546 = vmatpush1.msra.mxu0 0.0
        %547 = vmatprep.subr.mxu0 0.0
        %548 = vmatpush1.msra.mxu0 0.0
        %549 = vmatprep.subr.mxu0 0.0
        %550 = vmatpush1.msra.mxu0 0.0
        %551 = vmatprep.subr.mxu0 0.0
        %552 = vmatpush1.msra.mxu0 0.0
        %553 = vmatprep.subr.mxu0 0.0
        %554 = vmatpush1.msra.mxu0 0.0
        %555 = vmatprep.subr.mxu0 0.0
        %556 = vmatpush1.msra.mxu0 0.0
        %557 = vmatprep.subr.mxu0 0.0
        %558 = vmatpush1.msra.mxu0 0.0
        %559 = vmatprep.subr.mxu0 0.0
        %560 = vmatpush1.msra.mxu0 0.0
        %561 = vmatprep.subr.mxu0 0.0
        %562 = vmatpush1.msra.mxu0 0.0
        %563 = vmatprep.subr.mxu0 0.0
        %564 = vmatpush1.msra.mxu0 0.0
        %565 = vmatprep.subr.mxu0 0.0
        %566 = vmatpush1.msra.mxu0 0.0
        %567 = vmatprep.subr.mxu0 0.0
        %568 = vmatpush1.msra.mxu0 0.0
        %569 = vmatprep.subr.mxu0 0.0
        %570 = vmatpush1.msra.mxu0 0.0
        %571 = vmatprep.subr.mxu0 0.0
        %572 = vmatpush1.msra.mxu0 0.0
        %573 = vmatprep.subr.mxu0 0.0
        %574 = vmatpush1.msra.mxu0 0.0
        %575 = vmatprep.subr.mxu0 0.0
        %576 = vmatpush1.msra.mxu0 0.0
        %577 = vmatprep.subr.mxu0 0.0
        %578 = vmatpush1.msra.mxu0 0.0
        %579 = vmatprep.subr.mxu0 0.0
        %580 = vmatpush1.msra.mxu0 0.0
        %581 = vmatprep.subr.mxu0 0.0
        %582 = vmatpush1.msra.mxu0 0.0
        %583 = vmatprep.subr.mxu0 0.0
        %584 = vmatpush1.msra.mxu0 0.0
        %585 = vmatprep.subr.mxu0 0.0
        %586 = vmatpush1.msra.mxu0 0.0
        %587 = vmatprep.subr.mxu0 0.0
        %588 = vmatpush1.msra.mxu0 0.0
        %589 = vmatprep.subr.mxu0 0.0
        %590 = vmatpush1.msra.mxu0 0.0
        %591 = vmatprep.subr.mxu0 0.0
        %592 = vmatpush1.msra.mxu0 0.0
        %593 = vmatprep.subr.mxu0 0.0
        %594 = vmatpush1.msra.mxu0 0.0
        %595 = vmatprep.subr.mxu0 0.0
        %596 = vmatpush1.msra.mxu0 0.0
        %597 = vmatprep.mubr.f32.mxu0 0.0
        %598 = vmatmul.mubr.f32.gmra.mrb[0].mxu0 %v531
        %v599 = vpop.f32.mrb[0].mxu0
        %v600 = vadd.f32 0.0, %v599
        %v601 = vpop.f32.mrb[0].mxu0
        %602 = vdwg.mxu0
        %v603 = vmul.f32 %v600, 0.35355338
        %604 = vst.msk [vmem:[#allocation2] sm:$0xff] %vm529, %v603
        %v605 = vld [vmem:[%s3] sm:$0xff]
        %v606 = vld [vmem:[%s3 + $0x8] sm:$0xff]
        %v607 = vld [vmem:[%s3 + $0x10] sm:$0xff]
        %v608 = vld [vmem:[%s3 + $0x18] sm:$0xff]
        %609 = vmatprep.subr.mxu0 0.0
        %610 = vmatpush1.msra.mxu0 %v605
        %611 = vmatprep.subr.mxu0 0.0
        %612 = vmatpush1.msra.mxu0 %v606
        %613 = vmatprep.subr.mxu0 0.0
        %614 = vmatpush1.msra.mxu0 %v607
        %615 = vmatprep.subr.mxu0 0.0
        %616 = vmatpush1.msra.mxu0 %v608
        %617 = vmatprep.subr.mxu0 0.0
        %618 = vmatpush1.msra.mxu0 0.0
        %619 = vmatprep.subr.mxu0 0.0
        %620 = vmatpush1.msra.mxu0 0.0
        %621 = vmatprep.subr.mxu0 0.0
        %622 = vmatpush1.msra.mxu0 0.0
        %623 = vmatprep.subr.mxu0 0.0
        %624 = vmatpush1.msra.mxu0 0.0
        %625 = vmatprep.subr.mxu0 0.0
        %626 = vmatpush1.msra.mxu0 0.0
        %627 = vmatprep.subr.mxu0 0.0
        %628 = vmatpush1.msra.mxu0 0.0
        %629 = vmatprep.subr.mxu0 0.0
        %630 = vmatpush1.msra.mxu0 0.0
        %631 = vmatprep.subr.mxu0 0.0
        %632 = vmatpush1.msra.mxu0 0.0
        %633 = vmatprep.subr.mxu0 0.0
        %634 = vmatpush1.msra.mxu0 0.0
        %635 = vmatprep.subr.mxu0 0.0
        %636 = vmatpush1.msra.mxu0 0.0
        %637 = vmatprep.subr.mxu0 0.0
        %638 = vmatpush1.msra.mxu0 0.0
        %639 = vmatprep.subr.mxu0 0.0
        %640 = vmatpush1.msra.mxu0 0.0
        %641 = vmatprep.subr.mxu0 0.0
        %642 = vmatpush1.msra.mxu0 0.0
        %643 = vmatprep.subr.mxu0 0.0
        %644 = vmatpush1.msra.mxu0 0.0
        %645 = vmatprep.subr.mxu0 0.0
        %646 = vmatpush1.msra.mxu0 0.0
        %647 = vmatprep.subr.mxu0 0.0
        %648 = vmatpush1.msra.mxu0 0.0
        %649 = vmatprep.subr.mxu0 0.0
        %650 = vmatpush1.msra.mxu0 0.0
        %651 = vmatprep.subr.mxu0 0.0
        %652 = vmatpush1.msra.mxu0 0.0
        %653 = vmatprep.subr.mxu0 0.0
        %654 = vmatpush1.msra.mxu0 0.0
        %655 = vmatprep.subr.mxu0 0.0
        %656 = vmatpush1.msra.mxu0 0.0
        %657 = vmatprep.subr.mxu0 0.0
        %658 = vmatpush1.msra.mxu0 0.0
        %659 = vmatprep.subr.mxu0 0.0
        %660 = vmatpush1.msra.mxu0 0.0
        %661 = vmatprep.subr.mxu0 0.0
        %662 = vmatpush1.msra.mxu0 0.0
        %663 = vmatprep.subr.mxu0 0.0
        %664 = vmatpush1.msra.mxu0 0.0
        %665 = vmatprep.subr.mxu0 0.0
        %666 = vmatpush1.msra.mxu0 0.0
        %667 = vmatprep.subr.mxu0 0.0
        %668 = vmatpush1.msra.mxu0 0.0
        %669 = vmatprep.subr.mxu0 0.0
        %670 = vmatpush1.msra.mxu0 0.0
        %671 = vmatprep.subr.mxu0 0.0
        %672 = vmatpush1.msra.mxu0 0.0
        %673 = vmatprep.mubr.f32.mxu0 0.0
        %674 = vmatmul.mubr.f32.gmra.mrb[0].mxu0 %v531
        %v675 = vpop.f32.mrb[0].mxu0
        %v676 = vadd.f32 0.0, %v675
        %v677 = vpop.f32.mrb[0].mxu0
        %678 = vdwg.mxu0
        %679 = vst.msk [vmem:[#allocation3] sm:$0xff] %vm529, %v676
        %v680 = vld [vmem:[%s4] sm:$0xff]
        %v681 = vld [vmem:[%s4 + $0x8] sm:$0xff]
        %v682 = vld [vmem:[%s4 + $0x10] sm:$0xff]
        %v683 = vld [vmem:[%s4 + $0x18] sm:$0xff]
        %684 = vmatprep.subr.mxu0 0.0
        %685 = vmatpush1.msra.mxu0 %v680
        %686 = vmatprep.subr.mxu0 0.0
        %687 = vmatpush1.msra.mxu0 %v681
        %688 = vmatprep.subr.mxu0 0.0
        %689 = vmatpush1.msra.mxu0 %v682
        %690 = vmatprep.subr.mxu0 0.0
        %691 = vmatpush1.msra.mxu0 %v683
        %692 = vmatprep.subr.mxu0 0.0
        %693 = vmatpush1.msra.mxu0 0.0
        %694 = vmatprep.subr.mxu0 0.0
        %695 = vmatpush1.msra.mxu0 0.0
        %696 = vmatprep.subr.mxu0 0.0
        %697 = vmatpush1.msra.mxu0 0.0
        %698 = vmatprep.subr.mxu0 0.0
        %699 = vmatpush1.msra.mxu0 0.0
        %700 = vmatprep.subr.mxu0 0.0
        %701 = vmatpush1.msra.mxu0 0.0
        %702 = vmatprep.subr.mxu0 0.0
        %703 = vmatpush1.msra.mxu0 0.0
        %704 = vmatprep.subr.mxu0 0.0
        %705 = vmatpush1.msra.mxu0 0.0
        %706 = vmatprep.subr.mxu0 0.0
        %707 = vmatpush1.msra.mxu0 0.0
        %708 = vmatprep.subr.mxu0 0.0
        %709 = vmatpush1.msra.mxu0 0.0
        %710 = vmatprep.subr.mxu0 0.0
        %711 = vmatpush1.msra.mxu0 0.0
        %712 = vmatprep.subr.mxu0 0.0
        %713 = vmatpush1.msra.mxu0 0.0
        %714 = vmatprep.subr.mxu0 0.0
        %715 = vmatpush1.msra.mxu0 0.0
        %716 = vmatprep.subr.mxu0 0.0
        %717 = vmatpush1.msra.mxu0 0.0
        %718 = vmatprep.subr.mxu0 0.0
        %719 = vmatpush1.msra.mxu0 0.0
        %720 = vmatprep.subr.mxu0 0.0
        %721 = vmatpush1.msra.mxu0 0.0
        %722 = vmatprep.subr.mxu0 0.0
        %723 = vmatpush1.msra.mxu0 0.0
        %724 = vmatprep.subr.mxu0 0.0
        %725 = vmatpush1.msra.mxu0 0.0
        %726 = vmatprep.subr.mxu0 0.0
        %727 = vmatpush1.msra.mxu0 0.0
        %728 = vmatprep.subr.mxu0 0.0
        %729 = vmatpush1.msra.mxu0 0.0
        %730 = vmatprep.subr.mxu0 0.0
        %731 = vmatpush1.msra.mxu0 0.0
        %732 = vmatprep.subr.mxu0 0.0
        %733 = vmatpush1.msra.mxu0 0.0
        %734 = vmatprep.subr.mxu0 0.0
        %735 = vmatpush1.msra.mxu0 0.0
        %736 = vmatprep.subr.mxu0 0.0
        %737 = vmatpush1.msra.mxu0 0.0
        %738 = vmatprep.subr.mxu0 0.0
        %739 = vmatpush1.msra.mxu0 0.0
        %740 = vmatprep.subr.mxu0 0.0
        %741 = vmatpush1.msra.mxu0 0.0
        %742 = vmatprep.subr.mxu0 0.0
        %743 = vmatpush1.msra.mxu0 0.0
        %744 = vmatprep.subr.mxu0 0.0
        %745 = vmatpush1.msra.mxu0 0.0
        %746 = vmatprep.subr.mxu0 0.0
        %747 = vmatpush1.msra.mxu0 0.0
        %748 = vmatprep.mubr.f32.mxu0 0.0
        %749 = vmatmul.mubr.f32.gmra.mrb[0].mxu0 %v531
        %v750 = vpop.f32.mrb[0].mxu0
        %v751 = vadd.f32 0.0, %v750
        %v752 = vpop.f32.mrb[0].mxu0
        %753 = vdwg.mxu0
        %754 = vst.msk [vmem:[#allocation4] sm:$0xff] %vm529, %v751
        %v755 = vlaneseq
        %v756 = vand.u32 %v755, 127
        %s757 = sld [smem:[#allocation7 + %s33]]
        %v758 = vld [vmem:[#allocation2] sm:$0xff]
        %v759 = vld [vmem:[#allocation3] sm:$0xff]
        %v760 = vld [vmem:[#allocation4] sm:$0xff]
        %vm761 = vcmask 64512
        %v763 = vsel %vm761, %v758, 0
        %v766 = vsel %vm761, %v759, 0
        %768 = vmatprep.subr.mxu0 0.0
        %769 = vmatpush1.xpose.msra.mxu0 %v766
        %770 = vmatprep.subr.mxu0 0.0
        %771 = vmatpush1.xpose.msra.mxu0 0.0
        %772 = vmatprep.subr.mxu0 0.0
        %773 = vmatpush1.xpose.msra.mxu0 0.0
        %774 = vmatprep.subr.mxu0 0.0
        %775 = vmatpush1.xpose.msra.mxu0 0.0
        %776 = vmatprep.subr.mxu0 0.0
        %777 = vmatpush1.xpose.msra.mxu0 0.0
        %778 = vmatprep.subr.mxu0 0.0
        %779 = vmatpush1.xpose.msra.mxu0 0.0
        %780 = vmatprep.subr.mxu0 0.0
        %781 = vmatpush1.xpose.msra.mxu0 0.0
        %782 = vmatprep.subr.mxu0 0.0
        %783 = vmatpush1.xpose.msra.mxu0 0.0
        %784 = vmatprep.subr.mxu0 0.0
        %785 = vmatpush1.xpose.msra.mxu0 0.0
        %786 = vmatprep.subr.mxu0 0.0
        %787 = vmatpush1.xpose.msra.mxu0 0.0
        %788 = vmatprep.subr.mxu0 0.0
        %789 = vmatpush1.xpose.msra.mxu0 0.0
        %790 = vmatprep.subr.mxu0 0.0
        %791 = vmatpush1.xpose.msra.mxu0 0.0
        %792 = vmatprep.subr.mxu0 0.0
        %793 = vmatpush1.xpose.msra.mxu0 0.0
        %794 = vmatprep.subr.mxu0 0.0
        %795 = vmatpush1.xpose.msra.mxu0 0.0
        %796 = vmatprep.subr.mxu0 0.0
        %797 = vmatpush1.xpose.msra.mxu0 0.0
        %798 = vmatprep.subr.mxu0 0.0
        %799 = vmatpush1.xpose.msra.mxu0 0.0
        %800 = vmatprep.subr.mxu0 0.0
        %801 = vmatpush1.xpose.msra.mxu0 0.0
        %802 = vmatprep.subr.mxu0 0.0
        %803 = vmatpush1.xpose.msra.mxu0 0.0
        %804 = vmatprep.subr.mxu0 0.0
        %805 = vmatpush1.xpose.msra.mxu0 0.0
        %806 = vmatprep.subr.mxu0 0.0
        %807 = vmatpush1.xpose.msra.mxu0 0.0
        %808 = vmatprep.subr.mxu0 0.0
        %809 = vmatpush1.xpose.msra.mxu0 0.0
        %810 = vmatprep.subr.mxu0 0.0
        %811 = vmatpush1.xpose.msra.mxu0 0.0
        %812 = vmatprep.subr.mxu0 0.0
        %813 = vmatpush1.xpose.msra.mxu0 0.0
        %814 = vmatprep.subr.mxu0 0.0
        %815 = vmatpush1.xpose.msra.mxu0 0.0
        %816 = vmatprep.subr.mxu0 0.0
        %817 = vmatpush1.xpose.msra.mxu0 0.0
        %818 = vmatprep.subr.mxu0 0.0
        %819 = vmatpush1.xpose.msra.mxu0 0.0
        %820 = vmatprep.subr.mxu0 0.0
        %821 = vmatpush1.xpose.msra.mxu0 0.0
        %822 = vmatprep.subr.mxu0 0.0
        %823 = vmatpush1.xpose.msra.mxu0 0.0
        %824 = vmatprep.subr.mxu0 0.0
        %825 = vmatpush1.xpose.msra.mxu0 0.0
        %826 = vmatprep.subr.mxu0 0.0
        %827 = vmatpush1.xpose.msra.mxu0 0.0
        %828 = vmatprep.subr.mxu0 0.0
        %829 = vmatpush1.xpose.msra.mxu0 0.0
        %830 = vmatprep.subr.mxu0 0.0
        %831 = vmatpush1.xpose.msra.mxu0 0.0
        %832 = vmatprep.mubr.f32.mxu0 0.0
        %833 = vmatmul.mubr.f32.gmra.mrb[0].mxu0 %v763
        %v834 = vpop.f32.mrb[0].mxu0
        %v835 = vadd.f32 0.0, %v834
        %v836 = vpop.f32.mrb[0].mxu0
        %837 = vdwg.mxu0
        %838 = vst.msk [vmem:[#allocation5] sm:$0xff] %vm761, %v835
        %839 = vrot.lane.b32.xlu0 %v758, 120
        %v840 = vpop.permute.xlu0 %839
        %841 = vrot.lane.b32.xlu0 %v759, 120
        %v842 = vpop.permute.xlu0 %841
        %v843 = vsel %vm761, %v840, 0
        %v845 = vsel %vm761, %v842, 0
        %847 = vmatprep.subr.mxu0 0.0
        %848 = vmatpush1.xpose.msra.mxu0 %v845
        %849 = vmatprep.subr.mxu0 0.0
        %850 = vmatpush1.xpose.msra.mxu0 0.0
        %851 = vmatprep.subr.mxu0 0.0
        %852 = vmatpush1.xpose.msra.mxu0 0.0
        %853 = vmatprep.subr.mxu0 0.0
        %854 = vmatpush1.xpose.msra.mxu0 0.0
        %855 = vmatprep.subr.mxu0 0.0
        %856 = vmatpush1.xpose.msra.mxu0 0.0
        %857 = vmatprep.subr.mxu0 0.0
        %858 = vmatpush1.xpose.msra.mxu0 0.0
        %859 = vmatprep.subr.mxu0 0.0
        %860 = vmatpush1.xpose.msra.mxu0 0.0
        %861 = vmatprep.subr.mxu0 0.0
        %862 = vmatpush1.xpose.msra.mxu0 0.0
        %863 = vmatprep.subr.mxu0 0.0
        %864 = vmatpush1.xpose.msra.mxu0 0.0
        %865 = vmatprep.subr.mxu0 0.0
        %866 = vmatpush1.xpose.msra.mxu0 0.0
        %867 = vmatprep.subr.mxu0 0.0
        %868 = vmatpush1.xpose.msra.mxu0 0.0
        %869 = vmatprep.subr.mxu0 0.0
        %870 = vmatpush1.xpose.msra.mxu0 0.0
        %871 = vmatprep.subr.mxu0 0.0
        %872 = vmatpush1.xpose.msra.mxu0 0.0
        %873 = vmatprep.subr.mxu0 0.0
        %874 = vmatpush1.xpose.msra.mxu0 0.0
        %875 = vmatprep.subr.mxu0 0.0
        %876 = vmatpush1.xpose.msra.mxu0 0.0
        %877 = vmatprep.subr.mxu0 0.0
        %878 = vmatpush1.xpose.msra.mxu0 0.0
        %879 = vmatprep.subr.mxu0 0.0
        %880 = vmatpush1.xpose.msra.mxu0 0.0
        %881 = vmatprep.subr.mxu0 0.0
        %882 = vmatpush1.xpose.msra.mxu0 0.0
        %883 = vmatprep.subr.mxu0 0.0
        %884 = vmatpush1.xpose.msra.mxu0 0.0
        %885 = vmatprep.subr.mxu0 0.0
        %886 = vmatpush1.xpose.msra.mxu0 0.0
        %887 = vmatprep.subr.mxu0 0.0
        %888 = vmatpush1.xpose.msra.mxu0 0.0
        %889 = vmatprep.subr.mxu0 0.0
        %890 = vmatpush1.xpose.msra.mxu0 0.0
        %891 = vmatprep.subr.mxu0 0.0
        %892 = vmatpush1.xpose.msra.mxu0 0.0
        %893 = vmatprep.subr.mxu0 0.0
        %894 = vmatpush1.xpose.msra.mxu0 0.0
        %895 = vmatprep.subr.mxu0 0.0
        %896 = vmatpush1.xpose.msra.mxu0 0.0
        %897 = vmatprep.subr.mxu0 0.0
        %898 = vmatpush1.xpose.msra.mxu0 0.0
        %899 = vmatprep.subr.mxu0 0.0
        %900 = vmatpush1.xpose.msra.mxu0 0.0
        %901 = vmatprep.subr.mxu0 0.0
        %902 = vmatpush1.xpose.msra.mxu0 0.0
        %903 = vmatprep.subr.mxu0 0.0
        %904 = vmatpush1.xpose.msra.mxu0 0.0
        %905 = vmatprep.subr.mxu0 0.0
        %906 = vmatpush1.xpose.msra.mxu0 0.0
        %907 = vmatprep.subr.mxu0 0.0
        %908 = vmatpush1.xpose.msra.mxu0 0.0
        %909 = vmatprep.subr.mxu0 0.0
        %910 = vmatpush1.xpose.msra.mxu0 0.0
        %911 = vmatprep.mubr.f32.mxu0 0.0
        %912 = vmatmul.mubr.f32.gmra.mrb[0].mxu0 %v843
        %v913 = vpop.f32.mrb[0].mxu0
        %v914 = vadd.f32 0.0, %v913
        %v915 = vpop.f32.mrb[0].mxu0
        %916 = vdwg.mxu0
        %917 = vst.msk [vmem:[#allocation5 + $0x8] sm:$0xff] %vm761, %v914
        %918 = vrot.lane.b32.xlu0 %v758, 112
        %v919 = vpop.permute.xlu0 %918
        %920 = vrot.lane.b32.xlu0 %v759, 112
        %v921 = vpop.permute.xlu0 %920
        %v922 = vsel %vm761, %v919, 0
        %v924 = vsel %vm761, %v921, 0
        %926 = vmatprep.subr.mxu0 0.0
        %927 = vmatpush1.xpose.msra.mxu0 %v924
        %928 = vmatprep.subr.mxu0 0.0
        %929 = vmatpush1.xpose.msra.mxu0 0.0
        %930 = vmatprep.subr.mxu0 0.0
        %931 = vmatpush1.xpose.msra.mxu0 0.0
        %932 = vmatprep.subr.mxu0 0.0
        %933 = vmatpush1.xpose.msra.mxu0 0.0
        %934 = vmatprep.subr.mxu0 0.0
        %935 = vmatpush1.xpose.msra.mxu0 0.0
        %936 = vmatprep.subr.mxu0 0.0
        %937 = vmatpush1.xpose.msra.mxu0 0.0
        %938 = vmatprep.subr.mxu0 0.0
        %939 = vmatpush1.xpose.msra.mxu0 0.0
        %940 = vmatprep.subr.mxu0 0.0
        %941 = vmatpush1.xpose.msra.mxu0 0.0
        %942 = vmatprep.subr.mxu0 0.0
        %943 = vmatpush1.xpose.msra.mxu0 0.0
        %944 = vmatprep.subr.mxu0 0.0
        %945 = vmatpush1.xpose.msra.mxu0 0.0
        %946 = vmatprep.subr.mxu0 0.0
        %947 = vmatpush1.xpose.msra.mxu0 0.0
        %948 = vmatprep.subr.mxu0 0.0
        %949 = vmatpush1.xpose.msra.mxu0 0.0
        %950 = vmatprep.subr.mxu0 0.0
        %951 = vmatpush1.xpose.msra.mxu0 0.0
        %952 = vmatprep.subr.mxu0 0.0
        %953 = vmatpush1.xpose.msra.mxu0 0.0
        %954 = vmatprep.subr.mxu0 0.0
        %955 = vmatpush1.xpose.msra.mxu0 0.0
        %956 = vmatprep.subr.mxu0 0.0
        %957 = vmatpush1.xpose.msra.mxu0 0.0
        %958 = vmatprep.subr.mxu0 0.0
        %959 = vmatpush1.xpose.msra.mxu0 0.0
        %960 = vmatprep.subr.mxu0 0.0
        %961 = vmatpush1.xpose.msra.mxu0 0.0
        %962 = vmatprep.subr.mxu0 0.0
        %963 = vmatpush1.xpose.msra.mxu0 0.0
        %964 = vmatprep.subr.mxu0 0.0
        %965 = vmatpush1.xpose.msra.mxu0 0.0
        %966 = vmatprep.subr.mxu0 0.0
        %967 = vmatpush1.xpose.msra.mxu0 0.0
        %968 = vmatprep.subr.mxu0 0.0
        %969 = vmatpush1.xpose.msra.mxu0 0.0
        %970 = vmatprep.subr.mxu0 0.0
        %971 = vmatpush1.xpose.msra.mxu0 0.0
        %972 = vmatprep.subr.mxu0 0.0
        %973 = vmatpush1.xpose.msra.mxu0 0.0
        %974 = vmatprep.subr.mxu0 0.0
        %975 = vmatpush1.xpose.msra.mxu0 0.0
        %976 = vmatprep.subr.mxu0 0.0
        %977 = vmatpush1.xpose.msra.mxu0 0.0
        %978 = vmatprep.subr.mxu0 0.0
        %979 = vmatpush1.xpose.msra.mxu0 0.0
        %980 = vmatprep.subr.mxu0 0.0
        %981 = vmatpush1.xpose.msra.mxu0 0.0
        %982 = vmatprep.subr.mxu0 0.0
        %983 = vmatpush1.xpose.msra.mxu0 0.0
        %984 = vmatprep.subr.mxu0 0.0
        %985 = vmatpush1.xpose.msra.mxu0 0.0
        %986 = vmatprep.subr.mxu0 0.0
        %987 = vmatpush1.xpose.msra.mxu0 0.0
        %988 = vmatprep.subr.mxu0 0.0
        %989 = vmatpush1.xpose.msra.mxu0 0.0
        %990 = vmatprep.mubr.f32.mxu0 0.0
        %991 = vmatmul.mubr.f32.gmra.mrb[0].mxu0 %v922
        %v992 = vpop.f32.mrb[0].mxu0
        %v993 = vadd.f32 0.0, %v992
        %v994 = vpop.f32.mrb[0].mxu0
        %995 = vdwg.mxu0
        %996 = vst.msk [vmem:[#allocation5 + $0x10] sm:$0xff] %vm761, %v993
        %997 = vrot.lane.b32.xlu0 %v758, 104
        %v998 = vpop.permute.xlu0 %997
        %999 = vrot.lane.b32.xlu0 %v759, 104
        %v1000 = vpop.permute.xlu0 %999
        %v1001 = vsel %vm761, %v998, 0
        %v1003 = vsel %vm761, %v1000, 0
        %1005 = vmatprep.subr.mxu0 0.0
        %1006 = vmatpush1.xpose.msra.mxu0 %v1003
        %1007 = vmatprep.subr.mxu0 0.0
        %1008 = vmatpush1.xpose.msra.mxu0 0.0
        %1009 = vmatprep.subr.mxu0 0.0
        %1010 = vmatpush1.xpose.msra.mxu0 0.0
        %1011 = vmatprep.subr.mxu0 0.0
        %1012 = vmatpush1.xpose.msra.mxu0 0.0
        %1013 = vmatprep.subr.mxu0 0.0
        %1014 = vmatpush1.xpose.msra.mxu0 0.0
        %1015 = vmatprep.subr.mxu0 0.0
        %1016 = vmatpush1.xpose.msra.mxu0 0.0
        %1017 = vmatprep.subr.mxu0 0.0
        %1018 = vmatpush1.xpose.msra.mxu0 0.0
        %1019 = vmatprep.subr.mxu0 0.0
        %1020 = vmatpush1.xpose.msra.mxu0 0.0
        %1021 = vmatprep.subr.mxu0 0.0
        %1022 = vmatpush1.xpose.msra.mxu0 0.0
        %1023 = vmatprep.subr.mxu0 0.0
        %1024 = vmatpush1.xpose.msra.mxu0 0.0
        %1025 = vmatprep.subr.mxu0 0.0
        %1026 = vmatpush1.xpose.msra.mxu0 0.0
        %1027 = vmatprep.subr.mxu0 0.0
        %1028 = vmatpush1.xpose.msra.mxu0 0.0
        %1029 = vmatprep.subr.mxu0 0.0
        %1030 = vmatpush1.xpose.msra.mxu0 0.0
        %1031 = vmatprep.subr.mxu0 0.0
        %1032 = vmatpush1.xpose.msra.mxu0 0.0
        %1033 = vmatprep.subr.mxu0 0.0
        %1034 = vmatpush1.xpose.msra.mxu0 0.0
        %1035 = vmatprep.subr.mxu0 0.0
        %1036 = vmatpush1.xpose.msra.mxu0 0.0
        %1037 = vmatprep.subr.mxu0 0.0
        %1038 = vmatpush1.xpose.msra.mxu0 0.0
        %1039 = vmatprep.subr.mxu0 0.0
        %1040 = vmatpush1.xpose.msra.mxu0 0.0
        %1041 = vmatprep.subr.mxu0 0.0
        %1042 = vmatpush1.xpose.msra.mxu0 0.0
        %1043 = vmatprep.subr.mxu0 0.0
        %1044 = vmatpush1.xpose.msra.mxu0 0.0
        %1045 = vmatprep.subr.mxu0 0.0
        %1046 = vmatpush1.xpose.msra.mxu0 0.0
        %1047 = vmatprep.subr.mxu0 0.0
        %1048 = vmatpush1.xpose.msra.mxu0 0.0
        %1049 = vmatprep.subr.mxu0 0.0
        %1050 = vmatpush1.xpose.msra.mxu0 0.0
        %1051 = vmatprep.subr.mxu0 0.0
        %1052 = vmatpush1.xpose.msra.mxu0 0.0
        %1053 = vmatprep.subr.mxu0 0.0
        %1054 = vmatpush1.xpose.msra.mxu0 0.0
        %1055 = vmatprep.subr.mxu0 0.0
        %1056 = vmatpush1.xpose.msra.mxu0 0.0
        %1057 = vmatprep.subr.mxu0 0.0
        %1058 = vmatpush1.xpose.msra.mxu0 0.0
        %1059 = vmatprep.subr.mxu0 0.0
        %1060 = vmatpush1.xpose.msra.mxu0 0.0
        %1061 = vmatprep.subr.mxu0 0.0
        %1062 = vmatpush1.xpose.msra.mxu0 0.0
        %1063 = vmatprep.subr.mxu0 0.0
        %1064 = vmatpush1.xpose.msra.mxu0 0.0
        %1065 = vmatprep.subr.mxu0 0.0
        %1066 = vmatpush1.xpose.msra.mxu0 0.0
        %1067 = vmatprep.subr.mxu0 0.0
        %1068 = vmatpush1.xpose.msra.mxu0 0.0
        %1069 = vmatprep.mubr.f32.mxu0 0.0
        %1070 = vmatmul.mubr.f32.gmra.mrb[0].mxu0 %v1001
        %v1071 = vpop.f32.mrb[0].mxu0
        %v1072 = vadd.f32 0.0, %v1071
        %v1073 = vpop.f32.mrb[0].mxu0
        %1074 = vdwg.mxu0
        %1075 = vst.msk [vmem:[#allocation5 + $0x18] sm:$0xff] %vm761, %v1072
        %v1076 = vstv %s757
        %vm1077 = vcmp.lt.s32.totalorder %v756, %v1076
        %v1078 = vld [vmem:[#allocation5] sm:$0xff]
        %v1079 = vld [vmem:[#allocation5 + $0x8] sm:$0xff]
        %v1080 = vld [vmem:[#allocation5 + $0x10] sm:$0xff]
        %v1081 = vld [vmem:[#allocation5 + $0x18] sm:$0xff]
        %v1082 = vsel %vm1077, %v1078, -1000000.0
        %v1083 = vsel %vm1077, %v1079, -1000000.0
        %v1084 = vsel %vm1077, %v1080, -1000000.0
        %v1085 = vsel %vm1077, %v1081, -1000000.0
        %v1086 = vsel %vm761, %v1082, -inf
        %1087 = vmax.xlane.f32.xlu0 %v1086
        %v1088 = vpop.xlane.xlu0 %1087
        %v1089 = vsel %vm761, %v1083, -inf
        %1090 = vmax.xlane.f32.xlu0 %v1089
        %v1091 = vpop.xlane.xlu0 %1090
        %v1092 = vsel %vm761, %v1084, -inf
        %1093 = vmax.xlane.f32.xlu0 %v1092
        %v1094 = vpop.xlane.xlu0 %1093
        %v1095 = vsel %vm761, %v1085, -inf
        %1096 = vmax.xlane.f32.xlu0 %v1095
        %v1097 = vpop.xlane.xlu0 %1096
        %v1098 = vsub.f32 %v1082, %v1088
        %v1099 = vsub.f32 %v1083, %v1091
        %v1100 = vsub.f32 %v1084, %v1094
        %v1101 = vsub.f32 %v1085, %v1097
        %v1102 = vmul.f32 %v1098, 1.442695
        %v1103 = vpow.pop %v1102
        %v1104 = vmul.f32 %v1099, 1.442695
        %v1105 = vpow.pop %v1104
        %v1106 = vmul.f32 %v1100, 1.442695
        %v1107 = vpow.pop %v1106
        %v1108 = vmul.f32 %v1101, 1.442695
        %v1109 = vpow.pop %v1108
        %v1110 = vsel %vm761, %v1103, 0.0
        %1111 = vadd.xlane.f32.xlu0 %v1110
        %v1112 = vpop.xlane.xlu0 %1111
        %v1113 = vsel %vm761, %v1105, 0.0
        %1114 = vadd.xlane.f32.xlu0 %v1113
        %v1115 = vpop.xlane.xlu0 %1114
        %v1116 = vsel %vm761, %v1107, 0.0
        %1117 = vadd.xlane.f32.xlu0 %v1116
        %v1118 = vpop.xlane.xlu0 %1117
        %v1119 = vsel %vm761, %v1109, 0.0
        %1120 = vadd.xlane.f32.xlu0 %v1119
        %v1121 = vpop.xlane.xlu0 %1120
        %v1122 = vrcp.pop %v1112
        %v1123 = vrcp.pop %v1115
        %v1124 = vrcp.pop %v1118
        %v1125 = vrcp.pop %v1121
        %v1126 = vmul.f32 %v1103, %v1122
        %v1127 = vmul.f32 %v1105, %v1123
        %v1128 = vmul.f32 %v1107, %v1124
        %v1129 = vmul.f32 %v1109, %v1125
        %v1131 = vsel %vm761, %v1126, 0
        %1133 = vmatprep.subr.mxu0 0.0
        %1134 = vmatpush1.msra.mxu0 %v760
        %1135 = vmatprep.subr.mxu0 0.0
        %1136 = vmatpush1.msra.mxu0 0.0
        %1137 = vmatprep.subr.mxu0 0.0
        %1138 = vmatpush1.msra.mxu0 0.0
        %1139 = vmatprep.subr.mxu0 0.0
        %1140 = vmatpush1.msra.mxu0 0.0
        %1141 = vmatprep.subr.mxu0 0.0
        %1142 = vmatpush1.msra.mxu0 0.0
        %1143 = vmatprep.subr.mxu0 0.0
        %1144 = vmatpush1.msra.mxu0 0.0
        %1145 = vmatprep.subr.mxu0 0.0
        %1146 = vmatpush1.msra.mxu0 0.0
        %1147 = vmatprep.subr.mxu0 0.0
        %1148 = vmatpush1.msra.mxu0 0.0
        %1149 = vmatprep.subr.mxu0 0.0
        %1150 = vmatpush1.msra.mxu0 0.0
        %1151 = vmatprep.subr.mxu0 0.0
        %1152 = vmatpush1.msra.mxu0 0.0
        %1153 = vmatprep.subr.mxu0 0.0
        %1154 = vmatpush1.msra.mxu0 0.0
        %1155 = vmatprep.subr.mxu0 0.0
        %1156 = vmatpush1.msra.mxu0 0.0
        %1157 = vmatprep.subr.mxu0 0.0
        %1158 = vmatpush1.msra.mxu0 0.0
        %1159 = vmatprep.subr.mxu0 0.0
        %1160 = vmatpush1.msra.mxu0 0.0
        %1161 = vmatprep.subr.mxu0 0.0
        %1162 = vmatpush1.msra.mxu0 0.0
        %1163 = vmatprep.subr.mxu0 0.0
        %1164 = vmatpush1.msra.mxu0 0.0
        %1165 = vmatprep.subr.mxu0 0.0
        %1166 = vmatpush1.msra.mxu0 0.0
        %1167 = vmatprep.subr.mxu0 0.0
        %1168 = vmatpush1.msra.mxu0 0.0
        %1169 = vmatprep.subr.mxu0 0.0
        %1170 = vmatpush1.msra.mxu0 0.0
        %1171 = vmatprep.subr.mxu0 0.0
        %1172 = vmatpush1.msra.mxu0 0.0
        %1173 = vmatprep.subr.mxu0 0.0
        %1174 = vmatpush1.msra.mxu0 0.0
        %1175 = vmatprep.subr.mxu0 0.0
        %1176 = vmatpush1.msra.mxu0 0.0
        %1177 = vmatprep.subr.mxu0 0.0
        %1178 = vmatpush1.msra.mxu0 0.0
        %1179 = vmatprep.subr.mxu0 0.0
        %1180 = vmatpush1.msra.mxu0 0.0
        %1181 = vmatprep.subr.mxu0 0.0
        %1182 = vmatpush1.msra.mxu0 0.0
        %1183 = vmatprep.subr.mxu0 0.0
        %1184 = vmatpush1.msra.mxu0 0.0
        %1185 = vmatprep.subr.mxu0 0.0
        %1186 = vmatpush1.msra.mxu0 0.0
        %1187 = vmatprep.subr.mxu0 0.0
        %1188 = vmatpush1.msra.mxu0 0.0
        %1189 = vmatprep.subr.mxu0 0.0
        %1190 = vmatpush1.msra.mxu0 0.0
        %1191 = vmatprep.subr.mxu0 0.0
        %1192 = vmatpush1.msra.mxu0 0.0
        %1193 = vmatprep.subr.mxu0 0.0
        %1194 = vmatpush1.msra.mxu0 0.0
        %1195 = vmatprep.subr.mxu0 0.0
        %1196 = vmatpush1.msra.mxu0 0.0
        %1197 = vmatprep.mubr.f32.mxu0 0.0
        %1198 = vmatmul.mubr.f32.gmra.mrb[0].mxu0 %v1131
        %v1199 = vpop.f32.mrb[0].mxu0
        %v1200 = vadd.f32 0.0, %v1199
        %v1201 = vpop.f32.mrb[0].mxu0
        %1202 = vdwg.mxu0
        %1203 = vst.msk [vmem:[#allocation6] sm:$0xff] %vm761, %v1200
        %1205 = vrot.lane.b32.xlu0 %v760, 120
        %v1206 = vpop.permute.xlu0 %1205
        %v1209 = vsel %vm761, %v1127, 0
        %1211 = vmatprep.subr.mxu0 0.0
        %1212 = vmatpush1.msra.mxu0 %v1206
        %1213 = vmatprep.subr.mxu0 0.0
        %1214 = vmatpush1.msra.mxu0 0.0
        %1215 = vmatprep.subr.mxu0 0.0
        %1216 = vmatpush1.msra.mxu0 0.0
        %1217 = vmatprep.subr.mxu0 0.0
        %1218 = vmatpush1.msra.mxu0 0.0
        %1219 = vmatprep.subr.mxu0 0.0
        %1220 = vmatpush1.msra.mxu0 0.0
        %1221 = vmatprep.subr.mxu0 0.0
        %1222 = vmatpush1.msra.mxu0 0.0
        %1223 = vmatprep.subr.mxu0 0.0
        %1224 = vmatpush1.msra.mxu0 0.0
        %1225 = vmatprep.subr.mxu0 0.0
        %1226 = vmatpush1.msra.mxu0 0.0
        %1227 = vmatprep.subr.mxu0 0.0
        %1228 = vmatpush1.msra.mxu0 0.0
        %1229 = vmatprep.subr.mxu0 0.0
        %1230 = vmatpush1.msra.mxu0 0.0
        %1231 = vmatprep.subr.mxu0 0.0
        %1232 = vmatpush1.msra.mxu0 0.0
        %1233 = vmatprep.subr.mxu0 0.0
        %1234 = vmatpush1.msra.mxu0 0.0
        %1235 = vmatprep.subr.mxu0 0.0
        %1236 = vmatpush1.msra.mxu0 0.0
        %1237 = vmatprep.subr.mxu0 0.0
        %1238 = vmatpush1.msra.mxu0 0.0
        %1239 = vmatprep.subr.mxu0 0.0
        %1240 = vmatpush1.msra.mxu0 0.0
        %1241 = vmatprep.subr.mxu0 0.0
        %1242 = vmatpush1.msra.mxu0 0.0
        %1243 = vmatprep.subr.mxu0 0.0
        %1244 = vmatpush1.msra.mxu0 0.0
        %1245 = vmatprep.subr.mxu0 0.0
        %1246 = vmatpush1.msra.mxu0 0.0
        %1247 = vmatprep.subr.mxu0 0.0
        %1248 = vmatpush1.msra.mxu0 0.0
        %1249 = vmatprep.subr.mxu0 0.0
        %1250 = vmatpush1.msra.mxu0 0.0
        %1251 = vmatprep.subr.mxu0 0.0
        %1252 = vmatpush1.msra.mxu0 0.0
        %1253 = vmatprep.subr.mxu0 0.0
        %1254 = vmatpush1.msra.mxu0 0.0
        %1255 = vmatprep.subr.mxu0 0.0
        %1256 = vmatpush1.msra.mxu0 0.0
        %1257 = vmatprep.subr.mxu0 0.0
        %1258 = vmatpush1.msra.mxu0 0.0
        %1259 = vmatprep.subr.mxu0 0.0
        %1260 = vmatpush1.msra.mxu0 0.0
        %1261 = vmatprep.subr.mxu0 0.0
        %1262 = vmatpush1.msra.mxu0 0.0
        %1263 = vmatprep.subr.mxu0 0.0
        %1264 = vmatpush1.msra.mxu0 0.0
        %1265 = vmatprep.subr.mxu0 0.0
        %1266 = vmatpush1.msra.mxu0 0.0
        %1267 = vmatprep.subr.mxu0 0.0
        %1268 = vmatpush1.msra.mxu0 0.0
        %1269 = vmatprep.subr.mxu0 0.0
        %1270 = vmatpush1.msra.mxu0 0.0
        %1271 = vmatprep.subr.mxu0 0.0
        %1272 = vmatpush1.msra.mxu0 0.0
        %1273 = vmatprep.subr.mxu0 0.0
        %1274 = vmatpush1.msra.mxu0 0.0
        %1275 = vmatprep.mubr.f32.mxu0 0.0
        %1276 = vmatmul.mubr.f32.gmra.mrb[0].mxu0 %v1209
        %v1277 = vpop.f32.mrb[0].mxu0
        %v1278 = vadd.f32 0.0, %v1277
        %v1279 = vpop.f32.mrb[0].mxu0
        %1280 = vdwg.mxu0
        %1282 = vrot.lane.b32.xlu0 %v1278, 8
        %v1283 = vpop.permute.xlu0 %1282
        %vm1285 = vcmask 130112
        %1286 = vst.msk [vmem:[#allocation6] sm:$0xff] %vm1285, %v1283
        %1287 = vrot.lane.b32.xlu0 %v760, 112
        %v1288 = vpop.permute.xlu0 %1287
        %v1291 = vsel %vm761, %v1128, 0
        %1293 = vmatprep.subr.mxu0 0.0
        %1294 = vmatpush1.msra.mxu0 %v1288
        %1295 = vmatprep.subr.mxu0 0.0
        %1296 = vmatpush1.msra.mxu0 0.0
        %1297 = vmatprep.subr.mxu0 0.0
        %1298 = vmatpush1.msra.mxu0 0.0
        %1299 = vmatprep.subr.mxu0 0.0
        %1300 = vmatpush1.msra.mxu0 0.0
        %1301 = vmatprep.subr.mxu0 0.0
        %1302 = vmatpush1.msra.mxu0 0.0
        %1303 = vmatprep.subr.mxu0 0.0
        %1304 = vmatpush1.msra.mxu0 0.0
        %1305 = vmatprep.subr.mxu0 0.0
        %1306 = vmatpush1.msra.mxu0 0.0
        %1307 = vmatprep.subr.mxu0 0.0
        %1308 = vmatpush1.msra.mxu0 0.0
        %1309 = vmatprep.subr.mxu0 0.0
        %1310 = vmatpush1.msra.mxu0 0.0
        %1311 = vmatprep.subr.mxu0 0.0
        %1312 = vmatpush1.msra.mxu0 0.0
        %1313 = vmatprep.subr.mxu0 0.0
        %1314 = vmatpush1.msra.mxu0 0.0
        %1315 = vmatprep.subr.mxu0 0.0
        %1316 = vmatpush1.msra.mxu0 0.0
        %1317 = vmatprep.subr.mxu0 0.0
        %1318 = vmatpush1.msra.mxu0 0.0
        %1319 = vmatprep.subr.mxu0 0.0
        %1320 = vmatpush1.msra.mxu0 0.0
        %1321 = vmatprep.subr.mxu0 0.0
        %1322 = vmatpush1.msra.mxu0 0.0
        %1323 = vmatprep.subr.mxu0 0.0
        %1324 = vmatpush1.msra.mxu0 0.0
        %1325 = vmatprep.subr.mxu0 0.0
        %1326 = vmatpush1.msra.mxu0 0.0
        %1327 = vmatprep.subr.mxu0 0.0
        %1328 = vmatpush1.msra.mxu0 0.0
        %1329 = vmatprep.subr.mxu0 0.0
        %1330 = vmatpush1.msra.mxu0 0.0
        %1331 = vmatprep.subr.mxu0 0.0
        %1332 = vmatpush1.msra.mxu0 0.0
        %1333 = vmatprep.subr.mxu0 0.0
        %1334 = vmatpush1.msra.mxu0 0.0
        %1335 = vmatprep.subr.mxu0 0.0
        %1336 = vmatpush1.msra.mxu0 0.0
        %1337 = vmatprep.subr.mxu0 0.0
        %1338 = vmatpush1.msra.mxu0 0.0
        %1339 = vmatprep.subr.mxu0 0.0
        %1340 = vmatpush1.msra.mxu0 0.0
        %1341 = vmatprep.subr.mxu0 0.0
        %1342 = vmatpush1.msra.mxu0 0.0
        %1343 = vmatprep.subr.mxu0 0.0
        %1344 = vmatpush1.msra.mxu0 0.0
        %1345 = vmatprep.subr.mxu0 0.0
        %1346 = vmatpush1.msra.mxu0 0.0
        %1347 = vmatprep.subr.mxu0 0.0
        %1348 = vmatpush1.msra.mxu0 0.0
        %1349 = vmatprep.subr.mxu0 0.0
        %1350 = vmatpush1.msra.mxu0 0.0
        %1351 = vmatprep.subr.mxu0 0.0
        %1352 = vmatpush1.msra.mxu0 0.0
        %1353 = vmatprep.subr.mxu0 0.0
        %1354 = vmatpush1.msra.mxu0 0.0
        %1355 = vmatprep.subr.mxu0 0.0
        %1356 = vmatpush1.msra.mxu0 0.0
        %1357 = vmatprep.mubr.f32.mxu0 0.0
        %1358 = vmatmul.mubr.f32.gmra.mrb[0].mxu0 %v1291
        %v1359 = vpop.f32.mrb[0].mxu0
        %v1360 = vadd.f32 0.0, %v1359
        %v1361 = vpop.f32.mrb[0].mxu0
        %1362 = vdwg.mxu0
        %1364 = vrot.lane.b32.xlu0 %v1360, 16
        %v1365 = vpop.permute.xlu0 %1364
        %vm1367 = vcmask 195712
        %1368 = vst.msk [vmem:[#allocation6] sm:$0xff] %vm1367, %v1365
        %1369 = vrot.lane.b32.xlu0 %v760, 104
        %v1370 = vpop.permute.xlu0 %1369
        %v1373 = vsel %vm761, %v1129, 0
        %1375 = vmatprep.subr.mxu0 0.0
        %1376 = vmatpush1.msra.mxu0 %v1370
        %1377 = vmatprep.subr.mxu0 0.0
        %1378 = vmatpush1.msra.mxu0 0.0
        %1379 = vmatprep.subr.mxu0 0.0
        %1380 = vmatpush1.msra.mxu0 0.0
        %1381 = vmatprep.subr.mxu0 0.0
        %1382 = vmatpush1.msra.mxu0 0.0
        %1383 = vmatprep.subr.mxu0 0.0
        %1384 = vmatpush1.msra.mxu0 0.0
        %1385 = vmatprep.subr.mxu0 0.0
        %1386 = vmatpush1.msra.mxu0 0.0
        %1387 = vmatprep.subr.mxu0 0.0
        %1388 = vmatpush1.msra.mxu0 0.0
        %1389 = vmatprep.subr.mxu0 0.0
        %1390 = vmatpush1.msra.mxu0 0.0
        %1391 = vmatprep.subr.mxu0 0.0
        %1392 = vmatpush1.msra.mxu0 0.0
        %1393 = vmatprep.subr.mxu0 0.0
        %1394 = vmatpush1.msra.mxu0 0.0
        %1395 = vmatprep.subr.mxu0 0.0
        %1396 = vmatpush1.msra.mxu0 0.0
        %1397 = vmatprep.subr.mxu0 0.0
        %1398 = vmatpush1.msra.mxu0 0.0
        %1399 = vmatprep.subr.mxu0 0.0
        %1400 = vmatpush1.msra.mxu0 0.0
        %1401 = vmatprep.subr.mxu0 0.0
        %1402 = vmatpush1.msra.mxu0 0.0
        %1403 = vmatprep.subr.mxu0 0.0
        %1404 = vmatpush1.msra.mxu0 0.0
        %1405 = vmatprep.subr.mxu0 0.0
        %1406 = vmatpush1.msra.mxu0 0.0
        %1407 = vmatprep.subr.mxu0 0.0
        %1408 = vmatpush1.msra.mxu0 0.0
        %1409 = vmatprep.subr.mxu0 0.0
        %1410 = vmatpush1.msra.mxu0 0.0
        %1411 = vmatprep.subr.mxu0 0.0
        %1412 = vmatpush1.msra.mxu0 0.0
        %1413 = vmatprep.subr.mxu0 0.0
        %1414 = vmatpush1.msra.mxu0 0.0
        %1415 = vmatprep.subr.mxu0 0.0
        %1416 = vmatpush1.msra.mxu0 0.0
        %1417 = vmatprep.subr.mxu0 0.0
        %1418 = vmatpush1.msra.mxu0 0.0
        %1419 = vmatprep.subr.mxu0 0.0
        %1420 = vmatpush1.msra.mxu0 0.0
        %1421 = vmatprep.subr.mxu0 0.0
        %1422 = vmatpush1.msra.mxu0 0.0
        %1423 = vmatprep.subr.mxu0 0.0
        %1424 = vmatpush1.msra.mxu0 0.0
        %1425 = vmatprep.subr.mxu0 0.0
        %1426 = vmatpush1.msra.mxu0 0.0
        %1427 = vmatprep.subr.mxu0 0.0
        %1428 = vmatpush1.msra.mxu0 0.0
        %1429 = vmatprep.subr.mxu0 0.0
        %1430 = vmatpush1.msra.mxu0 0.0
        %1431 = vmatprep.subr.mxu0 0.0
        %1432 = vmatpush1.msra.mxu0 0.0
        %1433 = vmatprep.subr.mxu0 0.0
        %1434 = vmatpush1.msra.mxu0 0.0
        %1435 = vmatprep.subr.mxu0 0.0
        %1436 = vmatpush1.msra.mxu0 0.0
        %1437 = vmatprep.subr.mxu0 0.0
        %1438 = vmatpush1.msra.mxu0 0.0
        %1439 = vmatprep.mubr.f32.mxu0 0.0
        %1440 = vmatmul.mubr.f32.gmra.mrb[0].mxu0 %v1373
        %v1441 = vpop.f32.mrb[0].mxu0
        %v1442 = vadd.f32 0.0, %v1441
        %v1443 = vpop.f32.mrb[0].mxu0
        %1444 = vdwg.mxu0
        %1446 = vrot.lane.b32.xlu0 %v1442, 24
        %v1447 = vpop.permute.xlu0 %1446
        %vm1449 = vcmask 261312
        %1450 = vst.msk [vmem:[#allocation6] sm:$0xff] %vm1449, %v1447
        %v1451 = vld [vmem:[#allocation6] sm:$0xff]
        %v1452 = vld [vmem:[#allocation12] sm:$0xff]
        %v1453 = vld [vmem:[#allocation12 + $0x8] sm:$0xff]
        %v1454 = vld [vmem:[#allocation12 + $0x10] sm:$0xff]
        %v1455 = vld [vmem:[#allocation12 + $0x18] sm:$0xff]
        %v1456 = vld [vmem:[%s470] sm:$0xff]
        %v1458 = vsel %vm529, %v1451, 0
        %1460 = vmatprep.subr.mxu0 0.0
        %1461 = vmatpush1.msra.mxu0 %v1452
        %1462 = vmatprep.subr.mxu0 0.0
        %1463 = vmatpush1.msra.mxu0 %v1453
        %1464 = vmatprep.subr.mxu0 0.0
        %1465 = vmatpush1.msra.mxu0 %v1454
        %1466 = vmatprep.subr.mxu0 0.0
        %1467 = vmatpush1.msra.mxu0 %v1455
        %1468 = vmatprep.subr.mxu0 0.0
        %1469 = vmatpush1.msra.mxu0 0.0
        %1470 = vmatprep.subr.mxu0 0.0
        %1471 = vmatpush1.msra.mxu0 0.0
        %1472 = vmatprep.subr.mxu0 0.0
        %1473 = vmatpush1.msra.mxu0 0.0
        %1474 = vmatprep.subr.mxu0 0.0
        %1475 = vmatpush1.msra.mxu0 0.0
        %1476 = vmatprep.subr.mxu0 0.0
        %1477 = vmatpush1.msra.mxu0 0.0
        %1478 = vmatprep.subr.mxu0 0.0
        %1479 = vmatpush1.msra.mxu0 0.0
        %1480 = vmatprep.subr.mxu0 0.0
        %1481 = vmatpush1.msra.mxu0 0.0
        %1482 = vmatprep.subr.mxu0 0.0
        %1483 = vmatpush1.msra.mxu0 0.0
        %1484 = vmatprep.subr.mxu0 0.0
        %1485 = vmatpush1.msra.mxu0 0.0
        %1486 = vmatprep.subr.mxu0 0.0
        %1487 = vmatpush1.msra.mxu0 0.0
        %1488 = vmatprep.subr.mxu0 0.0
        %1489 = vmatpush1.msra.mxu0 0.0
        %1490 = vmatprep.subr.mxu0 0.0
        %1491 = vmatpush1.msra.mxu0 0.0
        %1492 = vmatprep.subr.mxu0 0.0
        %1493 = vmatpush1.msra.mxu0 0.0
        %1494 = vmatprep.subr.mxu0 0.0
        %1495 = vmatpush1.msra.mxu0 0.0
        %1496 = vmatprep.subr.mxu0 0.0
        %1497 = vmatpush1.msra.mxu0 0.0
        %1498 = vmatprep.subr.mxu0 0.0
        %1499 = vmatpush1.msra.mxu0 0.0
        %1500 = vmatprep.subr.mxu0 0.0
        %1501 = vmatpush1.msra.mxu0 0.0
        %1502 = vmatprep.subr.mxu0 0.0
        %1503 = vmatpush1.msra.mxu0 0.0
        %1504 = vmatprep.subr.mxu0 0.0
        %1505 = vmatpush1.msra.mxu0 0.0
        %1506 = vmatprep.subr.mxu0 0.0
        %1507 = vmatpush1.msra.mxu0 0.0
        %1508 = vmatprep.subr.mxu0 0.0
        %1509 = vmatpush1.msra.mxu0 0.0
        %1510 = vmatprep.subr.mxu0 0.0
        %1511 = vmatpush1.msra.mxu0 0.0
        %1512 = vmatprep.subr.mxu0 0.0
        %1513 = vmatpush1.msra.mxu0 0.0
        %1514 = vmatprep.subr.mxu0 0.0
        %1515 = vmatpush1.msra.mxu0 0.0
        %1516 = vmatprep.subr.mxu0 0.0
        %1517 = vmatpush1.msra.mxu0 0.0
        %1518 = vmatprep.subr.mxu0 0.0
        %1519 = vmatpush1.msra.mxu0 0.0
        %1520 = vmatprep.subr.mxu0 0.0
        %1521 = vmatpush1.msra.mxu0 0.0
        %1522 = vmatprep.subr.mxu0 0.0
        %1523 = vmatpush1.msra.mxu0 0.0
        %1524 = vmatprep.mubr.f32.mxu0 0.0
        %1525 = vmatmul.mubr.f32.gmra.mrb[0].mxu0 %v1458
        %v1526 = vpop.f32.mrb[0].mxu0
        %v1527 = vadd.f32 %v1456, %v1526
        %v1528 = vpop.f32.mrb[0].mxu0
        %1529 = vdwg.mxu0
        %v1530 = vsel %vm529, %v1527, 0.0
        %1531 = vadd.xlane.f32.xlu0 %v1530
        %v1532 = vpop.xlane.xlu0 %1531
        %v1533 = vrcp.pop 32.0
        %v1534 = vmul.f32 %v1532, %v1533
        %v1535 = vsub.f32 %v1527, %v1534
        %v1536 = vmul.f32 %v1535, %v1535
        %v1537 = vsel %vm529, %v1536, 0.0
        %1538 = vadd.xlane.f32.xlu0 %v1537
        %v1539 = vpop.xlane.xlu0 %1538
        %v1540 = vmul.f32 %v1539, %v1533
        %v1541 = vadd.f32 %v1540, 1e-05
        %v1542 = vrsqrt.pop %v1541
        %v1543 = vmul.f32 %v1535, %v1542
        %v1544 = vld [vmem:[%s10] sm:$0x1]
        %v1546 = vlaneseq
        %v1547 = vshrl.u32 %v1546, 7
        %v1548 = vsub.s32 0, %v1547
        %v1549 = vrot.slane %v1544, %v1548
        %v1551 = vmul.f32 %v1543, %v1549
        %v1552 = vld [vmem:[%s11] sm:$0x1]
        %v1554 = vlaneseq
        %v1555 = vshrl.u32 %v1554, 7
        %v1556 = vsub.s32 0, %v1555
        %v1557 = vrot.slane %v1552, %v1556
        %v1559 = vadd.f32 %v1551, %v1557
        %v1560 = vld [vmem:[#allocation14] sm:$0xff]
        %v1561 = vld [vmem:[#allocation14 + $0x8] sm:$0xff]
        %v1562 = vld [vmem:[#allocation14 + $0x10] sm:$0xff]
        %v1563 = vld [vmem:[#allocation14 + $0x18] sm:$0xff]
        %v1564 = vld [vmem:[%s7] sm:$0x1]
        %v1566 = vlaneseq
        %v1567 = vshrl.u32 %v1566, 7
        %v1568 = vsub.s32 0, %v1567
        %v1569 = vrot.slane %v1564, %v1568
        %v1572 = vsel %vm529, %v1559, 0
        %1574 = vmatprep.subr.mxu0 0.0
        %1575 = vmatpush1.msra.mxu0 %v1560
        %1576 = vmatprep.subr.mxu0 0.0
        %1577 = vmatpush1.msra.mxu0 %v1561
        %1578 = vmatprep.subr.mxu0 0.0
        %1579 = vmatpush1.msra.mxu0 %v1562
        %1580 = vmatprep.subr.mxu0 0.0
        %1581 = vmatpush1.msra.mxu0 %v1563
        %1582 = vmatprep.subr.mxu0 0.0
        %1583 = vmatpush1.msra.mxu0 0.0
        %1584 = vmatprep.subr.mxu0 0.0
        %1585 = vmatpush1.msra.mxu0 0.0
        %1586 = vmatprep.subr.mxu0 0.0
        %1587 = vmatpush1.msra.mxu0 0.0
        %1588 = vmatprep.subr.mxu0 0.0
        %1589 = vmatpush1.msra.mxu0 0.0
        %1590 = vmatprep.subr.mxu0 0.0
        %1591 = vmatpush1.msra.mxu0 0.0
        %1592 = vmatprep.subr.mxu0 0.0
        %1593 = vmatpush1.msra.mxu0 0.0
        %1594 = vmatprep.subr.mxu0 0.0
        %1595 = vmatpush1.msra.mxu0 0.0
        %1596 = vmatprep.subr.mxu0 0.0
        %1597 = vmatpush1.msra.mxu0 0.0
        %1598 = vmatprep.subr.mxu0 0.0
        %1599 = vmatpush1.msra.mxu0 0.0
        %1600 = vmatprep.subr.mxu0 0.0
        %1601 = vmatpush1.msra.mxu0 0.0
        %1602 = vmatprep.subr.mxu0 0.0
        %1603 = vmatpush1.msra.mxu0 0.0
        %1604 = vmatprep.subr.mxu0 0.0
        %1605 = vmatpush1.msra.mxu0 0.0
        %1606 = vmatprep.subr.mxu0 0.0
        %1607 = vmatpush1.msra.mxu0 0.0
        %1608 = vmatprep.subr.mxu0 0.0
        %1609 = vmatpush1.msra.mxu0 0.0
        %1610 = vmatprep.subr.mxu0 0.0
        %1611 = vmatpush1.msra.mxu0 0.0
        %1612 = vmatprep.subr.mxu0 0.0
        %1613 = vmatpush1.msra.mxu0 0.0
        %1614 = vmatprep.subr.mxu0 0.0
        %1615 = vmatpush1.msra.mxu0 0.0
        %1616 = vmatprep.subr.mxu0 0.0
        %1617 = vmatpush1.msra.mxu0 0.0
        %1618 = vmatprep.subr.mxu0 0.0
        %1619 = vmatpush1.msra.mxu0 0.0
        %1620 = vmatprep.subr.mxu0 0.0
        %1621 = vmatpush1.msra.mxu0 0.0
        %1622 = vmatprep.subr.mxu0 0.0
        %1623 = vmatpush1.msra.mxu0 0.0
        %1624 = vmatprep.subr.mxu0 0.0
        %1625 = vmatpush1.msra.mxu0 0.0
        %1626 = vmatprep.subr.mxu0 0.0
        %1627 = vmatpush1.msra.mxu0 0.0
        %1628 = vmatprep.subr.mxu0 0.0
        %1629 = vmatpush1.msra.mxu0 0.0
        %1630 = vmatprep.subr.mxu0 0.0
        %1631 = vmatpush1.msra.mxu0 0.0
        %1632 = vmatprep.subr.mxu0 0.0
        %1633 = vmatpush1.msra.mxu0 0.0
        %1634 = vmatprep.subr.mxu0 0.0
        %1635 = vmatpush1.msra.mxu0 0.0
        %1636 = vmatprep.subr.mxu0 0.0
        %1637 = vmatpush1.msra.mxu0 0.0
        %1638 = vmatprep.mubr.f32.mxu0 0.0
        %1639 = vmatmul.mubr.f32.gmra.mrb[0].mxu0 %v1572
        %v1640 = vpop.f32.mrb[0].mxu0
        %v1641 = vadd.f32 %v1569, %v1640
        %v1642 = vpop.f32.mrb[0].mxu0
        %1643 = vdwg.mxu0
        %v1644 = vmax.f32 %v1641, 0.0
        %v1645 = vld [vmem:[%s8] sm:$0xff]
        %v1646 = vld [vmem:[%s8 + $0x8] sm:$0xff]
        %v1647 = vld [vmem:[%s8 + $0x10] sm:$0xff]
        %v1648 = vld [vmem:[%s8 + $0x18] sm:$0xff]
        %v1649 = vld [vmem:[%s8 + $0x20] sm:$0xff]
        %v1650 = vld [vmem:[%s8 + $0x28] sm:$0xff]
        %v1651 = vld [vmem:[%s8 + $0x30] sm:$0xff]
        %v1652 = vld [vmem:[%s8 + $0x38] sm:$0xff]
        %v1653 = vld [vmem:[%s9] sm:$0x1]
        %v1655 = vlaneseq
        %v1656 = vshrl.u32 %v1655, 7
        %v1657 = vsub.s32 0, %v1656
        %v1658 = vrot.slane %v1653, %v1657
        %vm1660 = vcmask 523264
        %v1662 = vsel %vm1660, %v1644, 0
        %1664 = vmatprep.subr.mxu0 0.0
        %1665 = vmatpush1.msra.mxu0 %v1645
        %1666 = vmatprep.subr.mxu0 0.0
        %1667 = vmatpush1.msra.mxu0 %v1646
        %1668 = vmatprep.subr.mxu0 0.0
        %1669 = vmatpush1.msra.mxu0 %v1647
        %1670 = vmatprep.subr.mxu0 0.0
        %1671 = vmatpush1.msra.mxu0 %v1648
        %1672 = vmatprep.subr.mxu0 0.0
        %1673 = vmatpush1.msra.mxu0 %v1649
        %1674 = vmatprep.subr.mxu0 0.0
        %1675 = vmatpush1.msra.mxu0 %v1650
        %1676 = vmatprep.subr.mxu0 0.0
        %1677 = vmatpush1.msra.mxu0 %v1651
        %1678 = vmatprep.subr.mxu0 0.0
        %1679 = vmatpush1.msra.mxu0 %v1652
        %1680 = vmatprep.subr.mxu0 0.0
        %1681 = vmatpush1.msra.mxu0 0.0
        %1682 = vmatprep.subr.mxu0 0.0
        %1683 = vmatpush1.msra.mxu0 0.0
        %1684 = vmatprep.subr.mxu0 0.0
        %1685 = vmatpush1.msra.mxu0 0.0
        %1686 = vmatprep.subr.mxu0 0.0
        %1687 = vmatpush1.msra.mxu0 0.0
        %1688 = vmatprep.subr.mxu0 0.0
        %1689 = vmatpush1.msra.mxu0 0.0
        %1690 = vmatprep.subr.mxu0 0.0
        %1691 = vmatpush1.msra.mxu0 0.0
        %1692 = vmatprep.subr.mxu0 0.0
        %1693 = vmatpush1.msra.mxu0 0.0
        %1694 = vmatprep.subr.mxu0 0.0
        %1695 = vmatpush1.msra.mxu0 0.0
        %1696 = vmatprep.subr.mxu0 0.0
        %1697 = vmatpush1.msra.mxu0 0.0
        %1698 = vmatprep.subr.mxu0 0.0
        %1699 = vmatpush1.msra.mxu0 0.0
        %1700 = vmatprep.subr.mxu0 0.0
        %1701 = vmatpush1.msra.mxu0 0.0
        %1702 = vmatprep.subr.mxu0 0.0
        %1703 = vmatpush1.msra.mxu0 0.0
        %1704 = vmatprep.subr.mxu0 0.0
        %1705 = vmatpush1.msra.mxu0 0.0
        %1706 = vmatprep.subr.mxu0 0.0
        %1707 = vmatpush1.msra.mxu0 0.0
        %1708 = vmatprep.subr.mxu0 0.0
        %1709 = vmatpush1.msra.mxu0 0.0
        %1710 = vmatprep.subr.mxu0 0.0
        %1711 = vmatpush1.msra.mxu0 0.0
        %1712 = vmatprep.subr.mxu0 0.0
        %1713 = vmatpush1.msra.mxu0 0.0
        %1714 = vmatprep.subr.mxu0 0.0
        %1715 = vmatpush1.msra.mxu0 0.0
        %1716 = vmatprep.subr.mxu0 0.0
        %1717 = vmatpush1.msra.mxu0 0.0
        %1718 = vmatprep.subr.mxu0 0.0
        %1719 = vmatpush1.msra.mxu0 0.0
        %1720 = vmatprep.subr.mxu0 0.0
        %1721 = vmatpush1.msra.mxu0 0.0
        %1722 = vmatprep.subr.mxu0 0.0
        %1723 = vmatpush1.msra.mxu0 0.0
        %1724 = vmatprep.subr.mxu0 0.0
        %1725 = vmatpush1.msra.mxu0 0.0
        %1726 = vmatprep.subr.mxu0 0.0
        %1727 = vmatpush1.msra.mxu0 0.0
        %1728 = vmatprep.mubr.f32.mxu0 0.0
        %1729 = vmatmul.mubr.f32.gmra.mrb[0].mxu0 %v1662
        %v1730 = vpop.f32.mrb[0].mxu0
        %v1731 = vadd.f32 %v1658, %v1730
        %v1732 = vpop.f32.mrb[0].mxu0
        %1733 = vdwg.mxu0
        %v1734 = vadd.f32 %v1731, %v1559
        %v1735 = vsel %vm529, %v1734, 0.0
        %1736 = vadd.xlane.f32.xlu0 %v1735
        %v1737 = vpop.xlane.xlu0 %1736
        %v1738 = vmul.f32 %v1737, %v1533
        %v1739 = vsub.f32 %v1734, %v1738
        %v1740 = vmul.f32 %v1739, %v1739
        %v1741 = vsel %vm529, %v1740, 0.0
        %1742 = vadd.xlane.f32.xlu0 %v1741
        %v1743 = vpop.xlane.xlu0 %1742
        %v1744 = vmul.f32 %v1743, %v1533
        %v1745 = vadd.f32 %v1744, 1e-05
        %v1746 = vrsqrt.pop %v1745
        %v1747 = vmul.f32 %v1739, %v1746
        %v1748 = vld [vmem:[%s12] sm:$0x1]
        %v1750 = vlaneseq
        %v1751 = vshrl.u32 %v1750, 7
        %v1752 = vsub.s32 0, %v1751
        %v1753 = vrot.slane %v1748, %v1752
        %v1755 = vmul.f32 %v1747, %v1753
        %v1756 = vld [vmem:[%s13] sm:$0x1]
        %v1758 = vlaneseq
        %v1759 = vshrl.u32 %v1758, 7
        %v1760 = vsub.s32 0, %v1759
        %v1761 = vrot.slane %v1756, %v1760
        %v1763 = vadd.f32 %v1755, %v1761
        %1764 = vst.msk [vmem:[%s523] sm:$0xff] %vm529, %v1763
        %s1765 = sand.u32 %s340, 1
        %s1766 = scalar_lea.sflag [#allocation9], %s1765
        %s1767 = sand.u32 %s340, 1
        %s1768 = smul.addr %s1767, 8
        %s1769 = scalar_lea.vmem [#allocation15], %s1768
        // Predicated region
        $region93: #{tpu_custom_call.1} parent=75 // pred_check
          %p1770 = pneg %p350
        $region94: #{tpu_custom_call.1} parent=75 // pred_check_branch
          %1772 = sbr.rel (%p1770) target = $region96
        $region95: #{tpu_custom_call.1} parent=75 // pred_region
          %s1774 = ssub.s32 128, 128
          %1775 = vsyncadd %s1766, %s1774
          %s1776 = smul.addr %s33, 128
          %s1777 = scalar_lea.hbm %s14, %s1776
          %s1779 = sshll.u32 %s1769, 4
          %s1780 = int_to_ptr.vmem [resolvable:$true] %s1779
          %1782 = dma.vmem_to_hbm [thread:$0]  %s1780, 128, %s1777, %s1766
        $region96: #{tpu_custom_call.1} parent=75 // pred_fallthru
          _
      $region76: #{tpu_custom_call.1} parent=5 // pred_fallthru
        _
      %p1783 = scmp.le.s32.totalorder 2, %s28
      // Predicated region
      $region97: #{tpu_custom_call.1} parent=5 // pred_check
        %p1784 = pneg %p1783
      $region98: #{tpu_custom_call.1} parent=5 // pred_check_branch
        %1786 = sbr.rel (%p1784) target = $region100
      $region99: #{tpu_custom_call.1} parent=5 // pred_region
        %s1787 = ssub.s32 %s28, 2
        // Predicated region
        $region101: #{tpu_custom_call.1} parent=99 // pred_check
          %p1788 = pneg %p356
        $region102: #{tpu_custom_call.1} parent=99 // pred_check_branch
          %1790 = sbr.rel (%p1788) target = $region104
        $region103: #{tpu_custom_call.1} parent=99 // pred_region
          %s1791 = sand.u32 %s341, 1
          %s1792 = scalar_lea.sflag [#allocation9], %s1791
          %s1793 = sand.u32 %s341, 1
          %s1794 = smul.addr %s1793, 8
          %s1795 = scalar_lea.vmem [#allocation15], %s1794
          %1796 = dma.done %s1792, 128
        $region104: #{tpu_custom_call.1} parent=99 // pred_fallthru
          _
      $region100: #{tpu_custom_call.1} parent=5 // pred_fallthru
        _
    $region6: #{tpu_custom_call.1} parent=1 // loop_footer
      %s32 = sadd.s32 1, %s28
    $region7: #{tpu_custom_call.1} parent=1 // loop_footer_branch
      %27 = sbr.rel target = $region3
    $region8: #{tpu_custom_call.1} parent=1 // loop_exit
      _
    %1797 = vsyncpa [#allocation8], 1
    %s1798 = scalar_lea.sflag [#allocation8], 1
    %1799 = vsyncpa %s1798, 1
    %1800 = vsyncpa [#allocation13], 1
    %1801 = vsyncpa [#allocation9], 1
    %s1802 = scalar_lea.sflag [#allocation9], 1
    %1803 = vsyncpa %s1802, 1
    %1804 = vsyncpa [#allocation10], 1
    %s1805 = scalar_lea.sflag [#allocation10], 1
    %1806 = vsyncpa %s1805, 1

// kernel: tpu_custom_call.1
$region0: #{tpu_custom_call.1}
  #allocation0 [shape = 'u32[]', space=smem, size = 0x4, offset = 0x4, fixed_abs, tag = 'smem constant byte address 0x4 - core index']
  #allocation1 [shape = 'u32[144,128]{1,0:T(1,128)}', space=vmem, size = 0x12000, scoped, tag = 'internal scratch']
  #allocation2 [shape = 'f32[8,32]{1,0:T(8,128)}', space=vmem, size = 0x1000, scoped, tag = 'scratch operand']
  #allocation3 [shape = 'f32[8,32]{1,0:T(8,128)}', space=vmem, size = 0x1000, scoped, tag = 'scratch operand']
  #allocation4 [shape = 'f32[8,32]{1,0:T(8,128)}', space=vmem, size = 0x1000, scoped, tag = 'scratch operand']
  #allocation5 [shape = 'f32[32,8]{1,0:T(8,128)}', space=vmem, size = 0x4000, scoped, tag = 'scratch operand']
  #allocation6 [shape = 'f32[8,32]{1,0:T(8,128)}', space=vmem, size = 0x1000, scoped, tag = 'scratch operand']
  %s0 = inlined_call_operand.hbm [shape: s32[2], index: 0, kind: input, shape index: {}]
  %s1 = inlined_call_operand.hbm [shape: f32[16,32], index: 1, kind: input, shape index: {}]
  %s2 = inlined_call_operand.vmem [shape: f32[32,32], index: 2, kind: input, shape index: {}]
  %s3 = inlined_call_operand.vmem [shape: f32[32,32], index: 3, kind: input, shape index: {}]
  %s4 = inlined_call_operand.vmem [shape: f32[32,32], index: 4, kind: input, shape index: {}]
  %s5 = inlined_call_operand.hbm [shape: f32[32,32], index: 5, kind: input, shape index: {}]
  %s6 = inlined_call_operand.hbm [shape: f32[32,64], index: 6, kind: input, shape index: {}]
  %s7 = inlined_call_operand.vmem [shape: f32[1,64], index: 7, kind: input, shape index: {}]
  %s8 = inlined_call_operand.vmem [shape: f32[64,32], index: 8, kind: input, shape index: {}]
  %s9 = inlined_call_operand.vmem [shape: f32[1,32], index: 9, kind: input, shape index: {}]
  %s10 = inlined_call_operand.vmem [shape: f32[1,32], index: 10, kind: input, shape index: {}]
  %s11 = inlined_call_operand.vmem [shape: f32[1,32], index: 11, kind: input, shape index: {}]
  %s12 = inlined_call_operand.vmem [shape: f32[1,32], index: 12, kind: input, shape index: {}]
  %s13 = inlined_call_operand.vmem [shape: f32[1,32], index: 13, kind: input, shape index: {}]
  %s14 = inlined_call_operand.hbm [shape: f32[16,32], index: 14, kind: output, shape index: {}]
  %s15 = sld [smem:[#allocation0]]
  $region105: #{tpu_custom_call.1} parent=0
    _
  %s17 = ssub.s32 1, %s15
  %s18 = scalar_select 0, %s17, %s15
  $region1: #{tpu_custom_call.1} parent=0
    #allocation7 [shape = 'u8[512]{0}', space=smem, size = 0x200, scoped, tag = 'input window, operand 0, single buffered']
    #allocation8 [shape = 's32[2]{0}', space=sflag, size = 0x8, scoped, tag = 'scoped memory for tpu_custom_call.1']
    #allocation9 [shape = 's32[2]{0}', space=sflag, size = 0x8, scoped, tag = 'scoped memory for tpu_custom_call.1']
    #allocation10 [shape = 's32[2]{0}', space=sflag, size = 0x8, scoped, tag = 'scoped memory for tpu_custom_call.1']
    #allocation11 [shape = 'u8[8192]{0}', space=vmem, size = 0x2000, scoped, tag = 'input window, operand 1']
    #allocation12 [shape = 'u8[16384]{0}', space=vmem, size = 0x4000, scoped, tag = 'input window, operand 5, single buffered']
    #allocation13 [shape = 's32[1]{0}', space=sflag, size = 0x4, scoped, tag = 'scoped memory for tpu_custom_call.1']
    #allocation14 [shape = 'u8[16384]{0}', space=vmem, size = 0x4000, scoped, tag = 'input window, operand 6, single buffered']
    #allocation15 [shape = 'u8[8192]{0}', space=vmem, size = 0x2000, scoped, tag = 'output window, operand 0']
    %19 = vsyncpa [#allocation10], 0
    %20 = vsyncpa [#allocation8], 0
    %s21 = scalar_lea.sflag [#allocation8], 1
    %22 = vsyncpa %s21, 0
    %23 = vsyncpa [#allocation13], 0
    %24 = vsyncpa [#allocation9], 0
    %s25 = scalar_lea.sflag [#allocation9], 1
    %26 = vsyncpa %s25, 0
    loop: start=0, step=1, limit=4
    $region2: #{tpu_custom_call.1} parent=1 // loop_pre_header
      _
    $region3: #{tpu_custom_call.1} parent=1 // loop_header
      %s28 = sphi 0, %s32
      %p29 = scmp.ge.s32.totalorder %s28, 4
      %s36 = sphi 0, %s36
      %s38 = sphi 0, %s36
      %s39 = sphi 0, %s38
      %s53 = sphi 0, %s39
      %s59 = sphi 0, %s61
      %s62 = sphi 0, %s59
      %s63 = sphi 0, %s62
      %s79 = sphi 0, %s63
      %s83 = sphi 0, %s83
      %s85 = sphi 0, %s83
      %s86 = sphi 0, %s85
      %s100 = sphi 0, %s86
      %s104 = sphi 0, %s104
      %s106 = sphi 0, %s104
      %s107 = sphi 0, %s106
      %s121 = sphi 0, %s107
      %s125 = sphi 0, %s125
      %s127 = sphi 0, %s125
      %s128 = sphi 0, %s127
      %s142 = sphi 0, %s128
      %s146 = sphi 0, %s146
      %s148 = sphi 0, %s146
      %s149 = sphi 0, %s148
      %s163 = sphi 0, %s149
      %s167 = sphi 0, %s167
      %s169 = sphi 0, %s167
      %s170 = sphi 0, %s169
      %s184 = sphi 0, %s170
      %s188 = sphi 0, %s188
      %s190 = sphi 0, %s188
      %s191 = sphi 0, %s190
      %s205 = sphi 0, %s191
      %s209 = sphi 0, %s209
      %s211 = sphi 0, %s209
      %s212 = sphi 0, %s211
      %s226 = sphi 0, %s212
      %s230 = sphi 0, %s230
      %s232 = sphi 0, %s230
      %s233 = sphi 0, %s232
      %s247 = sphi 0, %s233
      %s251 = sphi 0, %s251
      %s253 = sphi 0, %s251
      %s254 = sphi 0, %s253
      %s268 = sphi 0, %s254
      %s272 = sphi 0, %s272
      %s274 = sphi 0, %s272
      %s275 = sphi 0, %s274
      %s289 = sphi 0, %s275
      %s293 = sphi 0, %s293
      %s295 = sphi 0, %s293
      %s296 = sphi 0, %s295
      %s310 = sphi 0, %s296
      %s314 = sphi 0, %s314
      %s316 = sphi 0, %s314
      %s317 = sphi 0, %s316
      %s331 = sphi 0, %s317
      %s337 = sphi 0, %s339
      %s340 = sphi 0, %s337
      %s341 = sphi 0, %s340
      %s357 = sphi 0, %s341
    $region4: #{tpu_custom_call.1} parent=1 // loop_header_branch
      %31 = sbr.rel (%p29) target = $region8
    $region5: #{tpu_custom_call.1} parent=1 // loop_body
      %s33 = ssub.s32 %s28, 1
      %s34 = ssub.s32 %s28, 2
      %s35 = sadd.s32 %s28, 1
      %s37 = sadd.s32 %s36, 1
      %p40 = scmp.eq.s32.totalorder %s28, 1
      %p41 = scmp.ne.s32.totalorder %s36, %s38
      %p42 = scmp.eq.s32.totalorder %s28, 0
      %p43 = por %p41, %p42
      %p44 = scmp.ne.s32.totalorder %s36, %s38
      %p45 = scmp.eq.s32.totalorder %s33, 1
      %p46 = por %p44, %p45
      %p47 = scmp.ne.s32.totalorder %s38, %s39
      %p48 = scmp.eq.s32.totalorder %s33, 0
      %p49 = por %p47, %p48
      %p50 = scmp.ne.s32.totalorder %s38, %s39
      %p51 = scmp.eq.s32.totalorder %s34, 1
      %p52 = por %p50, %p51
      %p54 = scmp.ne.s32.totalorder %s39, %s53
      %p55 = scmp.eq.s32.totalorder %s34, 0
      %p56 = por %p54, %p55
      %s57 = ssub.s32 %s28, %s35
      %p58 = scmp.eq.s32.totalorder %s57, 0
      %s60 = sadd.s32 %s59, 1
      %s61 = scalar_select %p58, %s59, %s60
      %p64 = pneg %p58
      %p65 = scmp.eq.s32.totalorder %s28, 1
      %p66 = por %p64, %p65
      %p67 = scmp.ne.s32.totalorder %s59, %s62
      %p68 = scmp.eq.s32.totalorder %s28, 0
      %p69 = por %p67, %p68
      %p70 = scmp.ne.s32.totalorder %s59, %s62
      %p71 = scmp.eq.s32.totalorder %s33, 1
      %p72 = por %p70, %p71
      %p73 = scmp.ne.s32.totalorder %s62, %s63
      %p74 = scmp.eq.s32.totalorder %s33, 0
      %p75 = por %p73, %p74
      %p76 = scmp.ne.s32.totalorder %s62, %s63
      %p77 = scmp.eq.s32.totalorder %s34, 1
      %p78 = por %p76, %p77
      %p80 = scmp.ne.s32.totalorder %s63, %s79
      %p81 = scmp.eq.s32.totalorder %s34, 0
      %p82 = por %p80, %p81
      %s84 = sadd.s32 %s83, 1
      %p87 = scmp.eq.s32.totalorder %s28, 1
      %p88 = scmp.ne.s32.totalorder %s83, %s85
      %p89 = scmp.eq.s32.totalorder %s28, 0
      %p90 = por %p88, %p89
      %p91 = scmp.ne.s32.totalorder %s83, %s85
      %p92 = scmp.eq.s32.totalorder %s33, 1
      %p93 = por %p91, %p92
      %p94 = scmp.ne.s32.totalorder %s85, %s86
      %p95 = scmp.eq.s32.totalorder %s33, 0
      %p96 = por %p94, %p95
      %p97 = scmp.ne.s32.totalorder %s85, %s86
      %p98 = scmp.eq.s32.totalorder %s34, 1
      %p99 = por %p97, %p98
      %p101 = scmp.ne.s32.totalorder %s86, %s100
      %p102 = scmp.eq.s32.totalorder %s34, 0
      %p103 = por %p101, %p102
      %s105 = sadd.s32 %s104, 1
      %p108 = scmp.eq.s32.totalorder %s28, 1
      %p109 = scmp.ne.s32.totalorder %s104, %s106
      %p110 = scmp.eq.s32.totalorder %s28, 0
      %p111 = por %p109, %p110
      %p112 = scmp.ne.s32.totalorder %s104, %s106
      %p113 = scmp.eq.s32.totalorder %s33, 1
      %p114 = por %p112, %p113
      %p115 = scmp.ne.s32.totalorder %s106, %s107
      %p116 = scmp.eq.s32.totalorder %s33, 0
      %p117 = por %p115, %p116
      %p118 = scmp.ne.s32.totalorder %s106, %s107
      %p119 = scmp.eq.s32.totalorder %s34, 1
      %p120 = por %p118, %p119
      %p122 = scmp.ne.s32.totalorder %s107, %s121
      %p123 = scmp.eq.s32.totalorder %s34, 0
      %p124 = por %p122, %p123
      %s126 = sadd.s32 %s125, 1
      %p129 = scmp.eq.s32.totalorder %s28, 1
      %p130 = scmp.ne.s32.totalorder %s125, %s127
      %p131 = scmp.eq.s32.totalorder %s28, 0
      %p132 = por %p130, %p131
      %p133 = scmp.ne.s32.totalorder %s125, %s127
      %p134 = scmp.eq.s32.totalorder %s33, 1
      %p135 = por %p133, %p134
      %p136 = scmp.ne.s32.totalorder %s127, %s128
      %p137 = scmp.eq.s32.totalorder %s33, 0
      %p138 = por %p136, %p137
      %p139 = scmp.ne.s32.totalorder %s127, %s128
      %p140 = scmp.eq.s32.totalorder %s34, 1
      %p141 = por %p139, %p140
      %p143 = scmp.ne.s32.totalorder %s128, %s142
      %p144 = scmp.eq.s32.totalorder %s34, 0
      %p145 = por %p143, %p144
      %s147 = sadd.s32 %s146, 1
      %p150 = scmp.eq.s32.totalorder %s28, 1
      %p151 = scmp.ne.s32.totalorder %s146, %s148
      %p152 = scmp.eq.s32.totalorder %s28, 0
      %p153 = por %p151, %p152
      %p154 = scmp.ne.s32.totalorder %s146, %s148
      %p155 = scmp.eq.s32.totalorder %s33, 1
      %p156 = por %p154, %p155
      %p157 = scmp.ne.s32.totalorder %s148, %s149
      %p158 = scmp.eq.s32.totalorder %s33, 0
      %p159 = por %p157, %p158
      %p160 = scmp.ne.s32.totalorder %s148, %s149
      %p161 = scmp.eq.s32.totalorder %s34, 1
      %p162 = por %p160, %p161
      %p164 = scmp.ne.s32.totalorder %s149, %s163
      %p165 = scmp.eq.s32.totalorder %s34, 0
      %p166 = por %p164, %p165
      %s168 = sadd.s32 %s167, 1
      %p171 = scmp.eq.s32.totalorder %s28, 1
      %p172 = scmp.ne.s32.totalorder %s167, %s169
      %p173 = scmp.eq.s32.totalorder %s28, 0
      %p174 = por %p172, %p173
      %p175 = scmp.ne.s32.totalorder %s167, %s169
      %p176 = scmp.eq.s32.totalorder %s33, 1
      %p177 = por %p175, %p176
      %p178 = scmp.ne.s32.totalorder %s169, %s170
      %p179 = scmp.eq.s32.totalorder %s33, 0
      %p180 = por %p178, %p179
      %p181 = scmp.ne.s32.totalorder %s169, %s170
      %p182 = scmp.eq.s32.totalorder %s34, 1
      %p183 = por %p181, %p182
      %p185 = scmp.ne.s32.totalorder %s170, %s184
      %p186 = scmp.eq.s32.totalorder %s34, 0
      %p187 = por %p185, %p186
      %s189 = sadd.s32 %s188, 1
      %p192 = scmp.eq.s32.totalorder %s28, 1
      %p193 = scmp.ne.s32.totalorder %s188, %s190
      %p194 = scmp.eq.s32.totalorder %s28, 0
      %p195 = por %p193, %p194
      %p196 = scmp.ne.s32.totalorder %s188, %s190
      %p197 = scmp.eq.s32.totalorder %s33, 1
      %p198 = por %p196, %p197
      %p199 = scmp.ne.s32.totalorder %s190, %s191
      %p200 = scmp.eq.s32.totalorder %s33, 0
      %p201 = por %p199, %p200
      %p202 = scmp.ne.s32.totalorder %s190, %s191
      %p203 = scmp.eq.s32.totalorder %s34, 1
      %p204 = por %p202, %p203
      %p206 = scmp.ne.s32.totalorder %s191, %s205
      %p207 = scmp.eq.s32.totalorder %s34, 0
      %p208 = por %p206, %p207
      %s210 = sadd.s32 %s209, 1
      %p213 = scmp.eq.s32.totalorder %s28, 1
      %p214 = scmp.ne.s32.totalorder %s209, %s211
      %p215 = scmp.eq.s32.totalorder %s28, 0
      %p216 = por %p214, %p215
      %p217 = scmp.ne.s32.totalorder %s209, %s211
      %p218 = scmp.eq.s32.totalorder %s33, 1
      %p219 = por %p217, %p218
      %p220 = scmp.ne.s32.totalorder %s211, %s212
      %p221 = scmp.eq.s32.totalorder %s33, 0
      %p222 = por %p220, %p221
      %p223 = scmp.ne.s32.totalorder %s211, %s212
      %p224 = scmp.eq.s32.totalorder %s34, 1
      %p225 = por %p223, %p224
      %p227 = scmp.ne.s32.totalorder %s212, %s226
      %p228 = scmp.eq.s32.totalorder %s34, 0
      %p229 = por %p227, %p228
      %s231 = sadd.s32 %s230, 1
      %p234 = scmp.eq.s32.totalorder %s28, 1
      %p235 = scmp.ne.s32.totalorder %s230, %s232
      %p236 = scmp.eq.s32.totalorder %s28, 0
      %p237 = por %p235, %p236
      %p238 = scmp.ne.s32.totalorder %s230, %s232
      %p239 = scmp.eq.s32.totalorder %s33, 1
      %p240 = por %p238, %p239
      %p241 = scmp.ne.s32.totalorder %s232, %s233
      %p242 = scmp.eq.s32.totalorder %s33, 0
      %p243 = por %p241, %p242
      %p244 = scmp.ne.s32.totalorder %s232, %s233
      %p245 = scmp.eq.s32.totalorder %s34, 1
      %p246 = por %p244, %p245
      %p248 = scmp.ne.s32.totalorder %s233, %s247
      %p249 = scmp.eq.s32.totalorder %s34, 0
      %p250 = por %p248, %p249
      %s252 = sadd.s32 %s251, 1
      %p255 = scmp.eq.s32.totalorder %s28, 1
      %p256 = scmp.ne.s32.totalorder %s251, %s253
      %p257 = scmp.eq.s32.totalorder %s28, 0
      %p258 = por %p256, %p257
      %p259 = scmp.ne.s32.totalorder %s251, %s253
      %p260 = scmp.eq.s32.totalorder %s33, 1
      %p261 = por %p259, %p260
      %p262 = scmp.ne.s32.totalorder %s253, %s254
      %p263 = scmp.eq.s32.totalorder %s33, 0
      %p264 = por %p262, %p263
      %p265 = scmp.ne.s32.totalorder %s253, %s254
      %p266 = scmp.eq.s32.totalorder %s34, 1
      %p267 = por %p265, %p266
      %p269 = scmp.ne.s32.totalorder %s254, %s268
      %p270 = scmp.eq.s32.totalorder %s34, 0
      %p271 = por %p269, %p270
      %s273 = sadd.s32 %s272, 1
      %p276 = scmp.eq.s32.totalorder %s28, 1
      %p277 = scmp.ne.s32.totalorder %s272, %s274
      %p278 = scmp.eq.s32.totalorder %s28, 0
      %p279 = por %p277, %p278
      %p280 = scmp.ne.s32.totalorder %s272, %s274
      %p281 = scmp.eq.s32.totalorder %s33, 1
      %p282 = por %p280, %p281
      %p283 = scmp.ne.s32.totalorder %s274, %s275
      %p284 = scmp.eq.s32.totalorder %s33, 0
      %p285 = por %p283, %p284
      %p286 = scmp.ne.s32.totalorder %s274, %s275
      %p287 = scmp.eq.s32.totalorder %s34, 1
      %p288 = por %p286, %p287
      %p290 = scmp.ne.s32.totalorder %s275, %s289
      %p291 = scmp.eq.s32.totalorder %s34, 0
      %p292 = por %p290, %p291
      %s294 = sadd.s32 %s293, 1
      %p297 = scmp.eq.s32.totalorder %s28, 1
      %p298 = scmp.ne.s32.totalorder %s293, %s295
      %p299 = scmp.eq.s32.totalorder %s28, 0
      %p300 = por %p298, %p299
      %p301 = scmp.ne.s32.totalorder %s293, %s295
      %p302 = scmp.eq.s32.totalorder %s33, 1
      %p303 = por %p301, %p302
      %p304 = scmp.ne.s32.totalorder %s295, %s296
      %p305 = scmp.eq.s32.totalorder %s33, 0
      %p306 = por %p304, %p305
      %p307 = scmp.ne.s32.totalorder %s295, %s296
      %p308 = scmp.eq.s32.totalorder %s34, 1
      %p309 = por %p307, %p308
      %p311 = scmp.ne.s32.totalorder %s296, %s310
      %p312 = scmp.eq.s32.totalorder %s34, 0
      %p313 = por %p311, %p312
      %s315 = sadd.s32 %s314, 1
      %p318 = scmp.eq.s32.totalorder %s28, 1
      %p319 = scmp.ne.s32.totalorder %s314, %s316
      %p320 = scmp.eq.s32.totalorder %s28, 0
      %p321 = por %p319, %p320
      %p322 = scmp.ne.s32.totalorder %s314, %s316
      %p323 = scmp.eq.s32.totalorder %s33, 1
      %p324 = por %p322, %p323
      %p325 = scmp.ne.s32.totalorder %s316, %s317
      %p326 = scmp.eq.s32.totalorder %s33, 0
      %p327 = por %p325, %p326
      %p328 = scmp.ne.s32.totalorder %s316, %s317
      %p329 = scmp.eq.s32.totalorder %s34, 1
      %p330 = por %p328, %p329
      %p332 = scmp.ne.s32.totalorder %s317, %s331
      %p333 = scmp.eq.s32.totalorder %s34, 0
      %p334 = por %p332, %p333
      %s335 = ssub.s32 %s28, %s35
      %p336 = scmp.eq.s32.totalorder %s335, 0
      %s338 = sadd.s32 %s337, 1
      %s339 = scalar_select %p336, %s337, %s338
      %p342 = pneg %p336
      %p343 = scmp.eq.s32.totalorder %s28, 1
      %p344 = por %p342, %p343
      %p345 = scmp.ne.s32.totalorder %s337, %s340
      %p346 = scmp.eq.s32.totalorder %s28, 0
      %p347 = por %p345, %p346
      %p348 = scmp.ne.s32.totalorder %s337, %s340
      %p349 = scmp.eq.s32.totalorder %s33, 1
      %p350 = por %p348, %p349
      %p351 = scmp.ne.s32.totalorder %s340, %s341
      %p352 = scmp.eq.s32.totalorder %s33, 0
      %p353 = por %p351, %p352
      %p354 = scmp.ne.s32.totalorder %s340, %s341
      %p355 = scmp.eq.s32.totalorder %s34, 1
      %p356 = por %p354, %p355
      %p358 = scmp.ne.s32.totalorder %s341, %s357
      %p359 = scmp.eq.s32.totalorder %s34, 0
      %p360 = por %p358, %p359
      %p361 = scmp.le.s32.totalorder 1, %s28
      %p362 = scmp.lt.s32.totalorder %s28, 3
      %p363 = pnand %p361, %p362
      %p364 = pneg %p363
      // Predicated region
      $region9: #{tpu_custom_call.1} parent=5 // pred_check
        _
      $region10: #{tpu_custom_call.1} parent=5 // pred_check_branch
        %366 = sbr.rel (%p363) target = $region12
      $region11: #{tpu_custom_call.1} parent=5 // pred_region
        %s367 = ssub.s32 %s28, 1
        // Predicated region
        $region13: #{tpu_custom_call.1} parent=11 // pred_check
          %p368 = pneg %p49
        $region14: #{tpu_custom_call.1} parent=11 // pred_check_branch
          %370 = sbr.rel (%p368) target = $region16
        $region15: #{tpu_custom_call.1} parent=11 // pred_region
          %s372 = ssub.s32 16, 16
          %373 = vsyncadd [#allocation10], %s372
          %376 = dma.hbm_to_smem %s0, 16, [#allocation7], [#allocation10]
        $region16: #{tpu_custom_call.1} parent=11 // pred_fallthru
          _
        // Predicated region
        $region17: #{tpu_custom_call.1} parent=11 // pred_check
          %p377 = pneg %p96
        $region18: #{tpu_custom_call.1} parent=11 // pred_check_branch
          %379 = sbr.rel (%p377) target = $region20
        $region19: #{tpu_custom_call.1} parent=11 // pred_region
          _
        $region20: #{tpu_custom_call.1} parent=11 // pred_fallthru
          _
        // Predicated region
        $region21: #{tpu_custom_call.1} parent=11 // pred_check
          %p380 = pneg %p117
        $region22: #{tpu_custom_call.1} parent=11 // pred_check_branch
          %382 = sbr.rel (%p380) target = $region24
        $region23: #{tpu_custom_call.1} parent=11 // pred_region
          _
        $region24: #{tpu_custom_call.1} parent=11 // pred_fallthru
          _
        // Predicated region
        $region25: #{tpu_custom_call.1} parent=11 // pred_check
          %p383 = pneg %p138
        $region26: #{tpu_custom_call.1} parent=11 // pred_check_branch
          %385 = sbr.rel (%p383) target = $region28
        $region27: #{tpu_custom_call.1} parent=11 // pred_region
          _
        $region28: #{tpu_custom_call.1} parent=11 // pred_fallthru
          _
        // Predicated region
        $region29: #{tpu_custom_call.1} parent=11 // pred_check
          %p386 = pneg %p159
        $region30: #{tpu_custom_call.1} parent=11 // pred_check_branch
          %388 = sbr.rel (%p386) target = $region32
        $region31: #{tpu_custom_call.1} parent=11 // pred_region
          %s390 = ssub.s32 512, 512
          %391 = vsyncadd [#allocation13], %s390
          %s392 = sshll.u32 [#allocation12], 4
          %s393 = int_to_ptr.vmem [resolvable:$true] %s392
          %398 = dma.hbm_to_vmem [thread:$0]  %s5, 512, %s393, [#allocation13], 128, 128, 8
        $region32: #{tpu_custom_call.1} parent=11 // pred_fallthru
          _
        // Predicated region
        $region33: #{tpu_custom_call.1} parent=11 // pred_check
          %p399 = pneg %p180
        $region34: #{tpu_custom_call.1} parent=11 // pred_check_branch
          %401 = sbr.rel (%p399) target = $region36
        $region35: #{tpu_custom_call.1} parent=11 // pred_region
          %s403 = ssub.s32 512, 512
          %404 = vsyncadd [#allocation13], %s403
          %s405 = sshll.u32 [#allocation14], 4
          %s406 = int_to_ptr.vmem [resolvable:$true] %s405
          %411 = dma.hbm_to_vmem [thread:$0]  %s6, 512, %s406, [#allocation13], 128, 128, 8
        $region36: #{tpu_custom_call.1} parent=11 // pred_fallthru
          _
        // Predicated region
        $region37: #{tpu_custom_call.1} parent=11 // pred_check
          %p412 = pneg %p201
        $region38: #{tpu_custom_call.1} parent=11 // pred_check_branch
          %414 = sbr.rel (%p412) target = $region40
        $region39: #{tpu_custom_call.1} parent=11 // pred_region
          _
        $region40: #{tpu_custom_call.1} parent=11 // pred_fallthru
          _
        // Predicated region
        $region41: #{tpu_custom_call.1} parent=11 // pred_check
          %p415 = pneg %p222
        $region42: #{tpu_custom_call.1} parent=11 // pred_check_branch
          %417 = sbr.rel (%p415) target = $region44
        $region43: #{tpu_custom_call.1} parent=11 // pred_region
          _
        $region44: #{tpu_custom_call.1} parent=11 // pred_fallthru
          _
        // Predicated region
        $region45: #{tpu_custom_call.1} parent=11 // pred_check
          %p418 = pneg %p243
        $region46: #{tpu_custom_call.1} parent=11 // pred_check_branch
          %420 = sbr.rel (%p418) target = $region48
        $region47: #{tpu_custom_call.1} parent=11 // pred_region
          _
        $region48: #{tpu_custom_call.1} parent=11 // pred_fallthru
          _
        // Predicated region
        $region49: #{tpu_custom_call.1} parent=11 // pred_check
          %p421 = pneg %p264
        $region50: #{tpu_custom_call.1} parent=11 // pred_check_branch
          %423 = sbr.rel (%p421) target = $region52
        $region51: #{tpu_custom_call.1} parent=11 // pred_region
          _
        $region52: #{tpu_custom_call.1} parent=11 // pred_fallthru
          _
        // Predicated region
        $region53: #{tpu_custom_call.1} parent=11 // pred_check
          %p424 = pneg %p285
        $region54: #{tpu_custom_call.1} parent=11 // pred_check_branch
          %426 = sbr.rel (%p424) target = $region56
        $region55: #{tpu_custom_call.1} parent=11 // pred_region
          _
        $region56: #{tpu_custom_call.1} parent=11 // pred_fallthru
          _
        // Predicated region
        $region57: #{tpu_custom_call.1} parent=11 // pred_check
          %p427 = pneg %p306
        $region58: #{tpu_custom_call.1} parent=11 // pred_check_branch
          %429 = sbr.rel (%p427) target = $region60
        $region59: #{tpu_custom_call.1} parent=11 // pred_region
          _
        $region60: #{tpu_custom_call.1} parent=11 // pred_fallthru
          _
        // Predicated region
        $region61: #{tpu_custom_call.1} parent=11 // pred_check
          %p430 = pneg %p327
        $region62: #{tpu_custom_call.1} parent=11 // pred_check_branch
          %432 = sbr.rel (%p430) target = $region64
        $region63: #{tpu_custom_call.1} parent=11 // pred_region
          _
        $region64: #{tpu_custom_call.1} parent=11 // pred_fallthru
          _
      $region12: #{tpu_custom_call.1} parent=5 // pred_fallthru
        _
      %p433 = scmp.lt.s32.totalorder %s28, 2
      // Predicated region
      $region65: #{tpu_custom_call.1} parent=5 // pred_check
        %p434 = pneg %p433
      $region66: #{tpu_custom_call.1} parent=5 // pred_check_branch
        %436 = sbr.rel (%p434) target = $region68
      $region67: #{tpu_custom_call.1} parent=5 // pred_region
        // Predicated region
        $region69: #{tpu_custom_call.1} parent=67 // pred_check
          %p437 = pneg %p69
        $region70: #{tpu_custom_call.1} parent=67 // pred_check_branch
          %439 = sbr.rel (%p437) target = $region72
        $region71: #{tpu_custom_call.1} parent=67 // pred_region
          %s440 = sand.u32 %s59, 1
          %s441 = scalar_lea.sflag [#allocation8], %s440
          %s442 = sand.u32 %s59, 1
          %s443 = smul.addr %s442, 8
          %s444 = scalar_lea.vmem [#allocation11], %s443
          %s446 = ssub.s32 128, 128
          %447 = vsyncadd %s441, %s446
          %s448 = smul.addr %s28, 128
          %s449 = scalar_lea.hbm %s1, %s448
          %s451 = sshll.u32 %s444, 4
          %s452 = int_to_ptr.vmem [resolvable:$true] %s451
          %454 = dma.hbm_to_vmem [thread:$0]  %s449, 128, %s452, %s441
        $region72: #{tpu_custom_call.1} parent=67 // pred_fallthru
          _
      $region68: #{tpu_custom_call.1} parent=5 // pred_fallthru
        _
      %p455 = scmp.le.s32.totalorder 1, %s28
      %p456 = scmp.lt.s32.totalorder %s28, 3
      %p457 = pnand %p455, %p456
      %p458 = pneg %p457
      // Predicated region
      $region73: #{tpu_custom_call.1} parent=5 // pred_check
        _
      $region74: #{tpu_custom_call.1} parent=5 // pred_check_branch
        %460 = sbr.rel (%p457) target = $region76
      $region75: #{tpu_custom_call.1} parent=5 // pred_region
        %s461 = ssub.s32 %s28, 1
        // Predicated region
        $region77: #{tpu_custom_call.1} parent=75 // pred_check
          %p462 = pneg %p49
        $region78: #{tpu_custom_call.1} parent=75 // pred_check_branch
          %464 = sbr.rel (%p462) target = $region80
        $region79: #{tpu_custom_call.1} parent=75 // pred_region
          %465 = dma.done [#allocation10], 16
        $region80: #{tpu_custom_call.1} parent=75 // pred_fallthru
          _
        %s466 = sand.u32 %s62, 1
        %s467 = scalar_lea.sflag [#allocation8], %s466
        %s468 = sand.u32 %s62, 1
        %s469 = smul.addr %s468, 8
        %s470 = scalar_lea.vmem [#allocation11], %s469
        // Predicated region
        $region81: #{tpu_custom_call.1} parent=75 // pred_check
          %p471 = pneg %p75
        $region82: #{tpu_custom_call.1} parent=75 // pred_check_branch
          %473 = sbr.rel (%p471) target = $region84
        $region83: #{tpu_custom_call.1} parent=75 // pred_region
          %474 = dma.done %s467, 128
        $region84: #{tpu_custom_call.1} parent=75 // pred_fallthru
          _
        // Predicated region
        $region85: #{tpu_custom_call.1} parent=75 // pred_check
          %p475 = pneg %p159
        $region86: #{tpu_custom_call.1} parent=75 // pred_check_branch
          %477 = sbr.rel (%p475) target = $region88
        $region87: #{tpu_custom_call.1} parent=75 // pred_region
          %478 = dma.done [#allocation13], 512
        $region88: #{tpu_custom_call.1} parent=75 // pred_fallthru
          _
        // Predicated region
        $region89: #{tpu_custom_call.1} parent=75 // pred_check
          %p479 = pneg %p180
        $region90: #{tpu_custom_call.1} parent=75 // pred_check_branch
          %481 = sbr.rel (%p479) target = $region92
        $region91: #{tpu_custom_call.1} parent=75 // pred_region
          %482 = dma.done [#allocation13], 512
        $region92: #{tpu_custom_call.1} parent=75 // pred_fallthru
          _
        %483 = sfence
        %p484 = pneg %p49
        %p485 = pneg %p46
        %s486 = sand.u32 %s62, 1
        %s487 = scalar_lea.sflag [#allocation8], %s486
        %s488 = sand.u32 %s62, 1
        %s489 = smul.addr %s488, 8
        %s490 = scalar_lea.vmem [#allocation11], %s489
        %p491 = pneg %p75
        %p492 = pneg %p72
        %p493 = pneg %p96
        %p494 = pneg %p93
        %p495 = pneg %p117
        %p496 = pneg %p114
        %p497 = pneg %p138
        %p498 = pneg %p135
        %p499 = pneg %p159
        %p500 = pneg %p156
        %p501 = pneg %p180
        %p502 = pneg %p177
        %p503 = pneg %p201
        %p504 = pneg %p198
        %p505 = pneg %p222
        %p506 = pneg %p219
        %p507 = pneg %p243
        %p508 = pneg %p240
        %p509 = pneg %p264
        %p510 = pneg %p261
        %p511 = pneg %p285
        %p512 = pneg %p282
        %p513 = pneg %p306
        %p514 = pneg %p303
        %p515 = pneg %p327
        %p516 = pneg %p324
        %p517 = pneg %p353
        %p518 = pneg %p350
        %s519 = sand.u32 %s340, 1
        %s520 = scalar_lea.sflag [#allocation9], %s519
        %s521 = sand.u32 %s340, 1
        %s522 = smul.addr %s521, 8
        %s523 = scalar_lea.vmem [#allocation15], %s522
        %v524 = vld [vmem:[%s470] sm:$0xff]
        %v525 = vld [vmem:[%s2] sm:$0xff]
        %v526 = vld [vmem:[%s2 + $0x8] sm:$0xff]
        %v527 = vld [vmem:[%s2 + $0x10] sm:$0xff]
        %v528 = vld [vmem:[%s2 + $0x18] sm:$0xff]
        %vm529 = vcmask 261120
        %v531 = vsel %vm529, %v524, 0
        %533 = vmatprep.subr.mxu0 0.0
        %534 = vmatpush1.msra.mxu0 %v525
        %535 = vmatprep.subr.mxu0 0.0
        %536 = vmatpush1.msra.mxu0 %v526
        %537 = vmatprep.subr.mxu0 0.0
        %538 = vmatpush1.msra.mxu0 %v527
        %539 = vmatprep.subr.mxu0 0.0
        %540 = vmatpush1.msra.mxu0 %v528
        %541 = vmatprep.subr.mxu0 0.0
        %542 = vmatpush1.msra.mxu0 0.0
        %543 = vmatprep.subr.mxu0 0.0
        %544 = vmatpush1.msra.mxu0 0.0
        %545 = vmatprep.subr.mxu0 0.0
        %546 = vmatpush1.msra.mxu0 0.0
        %547 = vmatprep.subr.mxu0 0.0
        %548 = vmatpush1.msra.mxu0 0.0
        %549 = vmatprep.subr.mxu0 0.0
        %550 = vmatpush1.msra.mxu0 0.0
        %551 = vmatprep.subr.mxu0 0.0
        %552 = vmatpush1.msra.mxu0 0.0
        %553 = vmatprep.subr.mxu0 0.0
        %554 = vmatpush1.msra.mxu0 0.0
        %555 = vmatprep.subr.mxu0 0.0
        %556 = vmatpush1.msra.mxu0 0.0
        %557 = vmatprep.subr.mxu0 0.0
        %558 = vmatpush1.msra.mxu0 0.0
        %559 = vmatprep.subr.mxu0 0.0
        %560 = vmatpush1.msra.mxu0 0.0
        %561 = vmatprep.subr.mxu0 0.0
        %562 = vmatpush1.msra.mxu0 0.0
        %563 = vmatprep.subr.mxu0 0.0
        %564 = vmatpush1.msra.mxu0 0.0
        %565 = vmatprep.subr.mxu0 0.0
        %566 = vmatpush1.msra.mxu0 0.0
        %567 = vmatprep.subr.mxu0 0.0
        %568 = vmatpush1.msra.mxu0 0.0
        %569 = vmatprep.subr.mxu0 0.0
        %570 = vmatpush1.msra.mxu0 0.0
        %571 = vmatprep.subr.mxu0 0.0
        %572 = vmatpush1.msra.mxu0 0.0
        %573 = vmatprep.subr.mxu0 0.0
        %574 = vmatpush1.msra.mxu0 0.0
        %575 = vmatprep.subr.mxu0 0.0
        %576 = vmatpush1.msra.mxu0 0.0
        %577 = vmatprep.subr.mxu0 0.0
        %578 = vmatpush1.msra.mxu0 0.0
        %579 = vmatprep.subr.mxu0 0.0
        %580 = vmatpush1.msra.mxu0 0.0
        %581 = vmatprep.subr.mxu0 0.0
        %582 = vmatpush1.msra.mxu0 0.0
        %583 = vmatprep.subr.mxu0 0.0
        %584 = vmatpush1.msra.mxu0 0.0
        %585 = vmatprep.subr.mxu0 0.0
        %586 = vmatpush1.msra.mxu0 0.0
        %587 = vmatprep.subr.mxu0 0.0
        %588 = vmatpush1.msra.mxu0 0.0
        %589 = vmatprep.subr.mxu0 0.0
        %590 = vmatpush1.msra.mxu0 0.0
        %591 = vmatprep.subr.mxu0 0.0
        %592 = vmatpush1.msra.mxu0 0.0
        %593 = vmatprep.subr.mxu0 0.0
        %594 = vmatpush1.msra.mxu0 0.0
        %595 = vmatprep.subr.mxu0 0.0
        %596 = vmatpush1.msra.mxu0 0.0
        %597 = vmatprep.mubr.f32.mxu0 0.0
        %598 = vmatmul.mubr.f32.gmra.mrb[0].mxu0 %v531
        %v599 = vpop.f32.mrb[0].mxu0
        %v600 = vadd.f32 0.0, %v599
        %v601 = vpop.f32.mrb[0].mxu0
        %602 = vdwg.mxu0
        %v603 = vmul.f32 %v600, 0.35355338
        %604 = vst.msk [vmem:[#allocation2] sm:$0xff] %vm529, %v603
        %v605 = vld [vmem:[%s3] sm:$0xff]
        %v606 = vld [vmem:[%s3 + $0x8] sm:$0xff]
        %v607 = vld [vmem:[%s3 + $0x10] sm:$0xff]
        %v608 = vld [vmem:[%s3 + $0x18] sm:$0xff]
        %609 = vmatprep.subr.mxu0 0.0
        %610 = vmatpush1.msra.mxu0 %v605
        %611 = vmatprep.subr.mxu0 0.0
        %612 = vmatpush1.msra.mxu0 %v606
        %613 = vmatprep.subr.mxu0 0.0
        %614 = vmatpush1.msra.mxu0 %v607
        %615 = vmatprep.subr.mxu0 0.0
        %616 = vmatpush1.msra.mxu0 %v608
        %617 = vmatprep.subr.mxu0 0.0
        %618 = vmatpush1.msra.mxu0 0.0
        %619 = vmatprep.subr.mxu0 0.0
        %620 = vmatpush1.msra.mxu0 0.0
        %621 = vmatprep.subr.mxu0 0.0
        %622 = vmatpush1.msra.mxu0 0.0
        %623 = vmatprep.subr.mxu0 0.0
        %624 = vmatpush1.msra.mxu0 0.0
        %625 = vmatprep.subr.mxu0 0.0
        %626 = vmatpush1.msra.mxu0 0.0
        %627 = vmatprep.subr.mxu0 0.0
        %628 = vmatpush1.msra.mxu0 0.0
        %629 = vmatprep.subr.mxu0 0.0
        %630 = vmatpush1.msra.mxu0 0.0
        %631 = vmatprep.subr.mxu0 0.0
        %632 = vmatpush1.msra.mxu0 0.0
        %633 = vmatprep.subr.mxu0 0.0
        %634 = vmatpush1.msra.mxu0 0.0
        %635 = vmatprep.subr.mxu0 0.0
        %636 = vmatpush1.msra.mxu0 0.0
        %637 = vmatprep.subr.mxu0 0.0
        %638 = vmatpush1.msra.mxu0 0.0
        %639 = vmatprep.subr.mxu0 0.0
        %640 = vmatpush1.msra.mxu0 0.0
        %641 = vmatprep.subr.mxu0 0.0
        %642 = vmatpush1.msra.mxu0 0.0
        %643 = vmatprep.subr.mxu0 0.0
        %644 = vmatpush1.msra.mxu0 0.0
        %645 = vmatprep.subr.mxu0 0.0
        %646 = vmatpush1.msra.mxu0 0.0
        %647 = vmatprep.subr.mxu0 0.0
        %648 = vmatpush1.msra.mxu0 0.0
        %649 = vmatprep.subr.mxu0 0.0
        %650 = vmatpush1.msra.mxu0 0.0
        %651 = vmatprep.subr.mxu0 0.0
        %652 = vmatpush1.msra.mxu0 0.0
        %653 = vmatprep.subr.mxu0 0.0
        %654 = vmatpush1.msra.mxu0 0.0
        %655 = vmatprep.subr.mxu0 0.0
        %656 = vmatpush1.msra.mxu0 0.0
        %657 = vmatprep.subr.mxu0 0.0
        %658 = vmatpush1.msra.mxu0 0.0
        %659 = vmatprep.subr.mxu0 0.0
        %660 = vmatpush1.msra.mxu0 0.0
        %661 = vmatprep.subr.mxu0 0.0
        %662 = vmatpush1.msra.mxu0 0.0
        %663 = vmatprep.subr.mxu0 0.0
        %664 = vmatpush1.msra.mxu0 0.0
        %665 = vmatprep.subr.mxu0 0.0
        %666 = vmatpush1.msra.mxu0 0.0
        %667 = vmatprep.subr.mxu0 0.0
        %668 = vmatpush1.msra.mxu0 0.0
        %669 = vmatprep.subr.mxu0 0.0
        %670 = vmatpush1.msra.mxu0 0.0
        %671 = vmatprep.subr.mxu0 0.0
        %672 = vmatpush1.msra.mxu0 0.0
        %673 = vmatprep.mubr.f32.mxu0 0.0
        %674 = vmatmul.mubr.f32.gmra.mrb[0].mxu0 %v531
        %v675 = vpop.f32.mrb[0].mxu0
        %v676 = vadd.f32 0.0, %v675
        %v677 = vpop.f32.mrb[0].mxu0
        %678 = vdwg.mxu0
        %679 = vst.msk [vmem:[#allocation3] sm:$0xff] %vm529, %v676
        %v680 = vld [vmem:[%s4] sm:$0xff]
        %v681 = vld [vmem:[%s4 + $0x8] sm:$0xff]
        %v682 = vld [vmem:[%s4 + $0x10] sm:$0xff]
        %v683 = vld [vmem:[%s4 + $0x18] sm:$0xff]
        %684 = vmatprep.subr.mxu0 0.0
        %685 = vmatpush1.msra.mxu0 %v680
        %686 = vmatprep.subr.mxu0 0.0
        %687 = vmatpush1.msra.mxu0 %v681
        %688 = vmatprep.subr.mxu0 0.0
        %689 = vmatpush1.msra.mxu0 %v682
        %690 = vmatprep.subr.mxu0 0.0
        %691 = vmatpush1.msra.mxu0 %v683
        %692 = vmatprep.subr.mxu0 0.0
        %693 = vmatpush1.msra.mxu0 0.0
        %694 = vmatprep.subr.mxu0 0.0
        %695 = vmatpush1.msra.mxu0 0.0
        %696 = vmatprep.subr.mxu0 0.0
        %697 = vmatpush1.msra.mxu0 0.0
        %698 = vmatprep.subr.mxu0 0.0
        %699 = vmatpush1.msra.mxu0 0.0
        %700 = vmatprep.subr.mxu0 0.0
        %701 = vmatpush1.msra.mxu0 0.0
        %702 = vmatprep.subr.mxu0 0.0
        %703 = vmatpush1.msra.mxu0 0.0
        %704 = vmatprep.subr.mxu0 0.0
        %705 = vmatpush1.msra.mxu0 0.0
        %706 = vmatprep.subr.mxu0 0.0
        %707 = vmatpush1.msra.mxu0 0.0
        %708 = vmatprep.subr.mxu0 0.0
        %709 = vmatpush1.msra.mxu0 0.0
        %710 = vmatprep.subr.mxu0 0.0
        %711 = vmatpush1.msra.mxu0 0.0
        %712 = vmatprep.subr.mxu0 0.0
        %713 = vmatpush1.msra.mxu0 0.0
        %714 = vmatprep.subr.mxu0 0.0
        %715 = vmatpush1.msra.mxu0 0.0
        %716 = vmatprep.subr.mxu0 0.0
        %717 = vmatpush1.msra.mxu0 0.0
        %718 = vmatprep.subr.mxu0 0.0
        %719 = vmatpush1.msra.mxu0 0.0
        %720 = vmatprep.subr.mxu0 0.0
        %721 = vmatpush1.msra.mxu0 0.0
        %722 = vmatprep.subr.mxu0 0.0
        %723 = vmatpush1.msra.mxu0 0.0
        %724 = vmatprep.subr.mxu0 0.0
        %725 = vmatpush1.msra.mxu0 0.0
        %726 = vmatprep.subr.mxu0 0.0
        %727 = vmatpush1.msra.mxu0 0.0
        %728 = vmatprep.subr.mxu0 0.0
        %729 = vmatpush1.msra.mxu0 0.0
        %730 = vmatprep.subr.mxu0 0.0
        %731 = vmatpush1.msra.mxu0 0.0
        %732 = vmatprep.subr.mxu0 0.0
        %733 = vmatpush1.msra.mxu0 0.0
        %734 = vmatprep.subr.mxu0 0.0
        %735 = vmatpush1.msra.mxu0 0.0
        %736 = vmatprep.subr.mxu0 0.0
        %737 = vmatpush1.msra.mxu0 0.0
        %738 = vmatprep.subr.mxu0 0.0
        %739 = vmatpush1.msra.mxu0 0.0
        %740 = vmatprep.subr.mxu0 0.0
        %741 = vmatpush1.msra.mxu0 0.0
        %742 = vmatprep.subr.mxu0 0.0
        %743 = vmatpush1.msra.mxu0 0.0
        %744 = vmatprep.subr.mxu0 0.0
        %745 = vmatpush1.msra.mxu0 0.0
        %746 = vmatprep.subr.mxu0 0.0
        %747 = vmatpush1.msra.mxu0 0.0
        %748 = vmatprep.mubr.f32.mxu0 0.0
        %749 = vmatmul.mubr.f32.gmra.mrb[0].mxu0 %v531
        %v750 = vpop.f32.mrb[0].mxu0
        %v751 = vadd.f32 0.0, %v750
        %v752 = vpop.f32.mrb[0].mxu0
        %753 = vdwg.mxu0
        %754 = vst.msk [vmem:[#allocation4] sm:$0xff] %vm529, %v751
        %v755 = vlaneseq
        %v756 = vand.u32 %v755, 127
        %s757 = sld [smem:[#allocation7 + %s33]]
        %v758 = vld [vmem:[#allocation2] sm:$0xff]
        %v759 = vld [vmem:[#allocation3] sm:$0xff]
        %v760 = vld [vmem:[#allocation4] sm:$0xff]
        %vm761 = vcmask 64512
        %v763 = vsel %vm761, %v758, 0
        %v766 = vsel %vm761, %v759, 0
        %768 = vmatprep.subr.mxu0 0.0
        %769 = vmatpush1.xpose.msra.mxu0 %v766
        %770 = vmatprep.subr.mxu0 0.0
        %771 = vmatpush1.xpose.msra.mxu0 0.0
        %772 = vmatprep.subr.mxu0 0.0
        %773 = vmatpush1.xpose.msra.mxu0 0.0
        %774 = vmatprep.subr.mxu0 0.0
        %775 = vmatpush1.xpose.msra.mxu0 0.0
        %776 = vmatprep.subr.mxu0 0.0
        %777 = vmatpush1.xpose.msra.mxu0 0.0
        %778 = vmatprep.subr.mxu0 0.0
        %779 = vmatpush1.xpose.msra.mxu0 0.0
        %780 = vmatprep.subr.mxu0 0.0
        %781 = vmatpush1.xpose.msra.mxu0 0.0
        %782 = vmatprep.subr.mxu0 0.0
        %783 = vmatpush1.xpose.msra.mxu0 0.0
        %784 = vmatprep.subr.mxu0 0.0
        %785 = vmatpush1.xpose.msra.mxu0 0.0
        %786 = vmatprep.subr.mxu0 0.0
        %787 = vmatpush1.xpose.msra.mxu0 0.0
        %788 = vmatprep.subr.mxu0 0.0
        %789 = vmatpush1.xpose.msra.mxu0 0.0
        %790 = vmatprep.subr.mxu0 0.0
        %791 = vmatpush1.xpose.msra.mxu0 0.0
        %792 = vmatprep.subr.mxu0 0.0
        %793 = vmatpush1.xpose.msra.mxu0 0.0
        %794 = vmatprep.subr.mxu0 0.0
        %795 = vmatpush1.xpose.msra.mxu0 0.0
        %796 = vmatprep.subr.mxu0 0.0
        %797 = vmatpush1.xpose.msra.mxu0 0.0
        %798 = vmatprep.subr.mxu0 0.0
        %799 = vmatpush1.xpose.msra.mxu0 0.0
        %800 = vmatprep.subr.mxu0 0.0
        %801 = vmatpush1.xpose.msra.mxu0 0.0
        %802 = vmatprep.subr.mxu0 0.0
        %803 = vmatpush1.xpose.msra.mxu0 0.0
        %804 = vmatprep.subr.mxu0 0.0
        %805 = vmatpush1.xpose.msra.mxu0 0.0
        %806 = vmatprep.subr.mxu0 0.0
        %807 = vmatpush1.xpose.msra.mxu0 0.0
        %808 = vmatprep.subr.mxu0 0.0
        %809 = vmatpush1.xpose.msra.mxu0 0.0
        %810 = vmatprep.subr.mxu0 0.0
        %811 = vmatpush1.xpose.msra.mxu0 0.0
        %812 = vmatprep.subr.mxu0 0.0
        %813 = vmatpush1.xpose.msra.mxu0 0.0
        %814 = vmatprep.subr.mxu0 0.0
        %815 = vmatpush1.xpose.msra.mxu0 0.0
        %816 = vmatprep.subr.mxu0 0.0
        %817 = vmatpush1.xpose.msra.mxu0 0.0
        %818 = vmatprep.subr.mxu0 0.0
        %819 = vmatpush1.xpose.msra.mxu0 0.0
        %820 = vmatprep.subr.mxu0 0.0
        %821 = vmatpush1.xpose.msra.mxu0 0.0
        %822 = vmatprep.subr.mxu0 0.0
        %823 = vmatpush1.xpose.msra.mxu0 0.0
        %824 = vmatprep.subr.mxu0 0.0
        %825 = vmatpush1.xpose.msra.mxu0 0.0
        %826 = vmatprep.subr.mxu0 0.0
        %827 = vmatpush1.xpose.msra.mxu0 0.0
        %828 = vmatprep.subr.mxu0 0.0
        %829 = vmatpush1.xpose.msra.mxu0 0.0
        %830 = vmatprep.subr.mxu0 0.0
        %831 = vmatpush1.xpose.msra.mxu0 0.0
        %832 = vmatprep.mubr.f32.mxu0 0.0
        %833 = vmatmul.mubr.f32.gmra.mrb[0].mxu0 %v763
        %v834 = vpop.f32.mrb[0].mxu0
        %v835 = vadd.f32 0.0, %v834
        %v836 = vpop.f32.mrb[0].mxu0
        %837 = vdwg.mxu0
        %838 = vst.msk [vmem:[#allocation5] sm:$0xff] %vm761, %v835
        %839 = vrot.lane.b32.xlu0 %v758, 120
        %v840 = vpop.permute.xlu0 %839
        %841 = vrot.lane.b32.xlu0 %v759, 120
        %v842 = vpop.permute.xlu0 %841
        %v843 = vsel %vm761, %v840, 0
        %v845 = vsel %vm761, %v842, 0
        %847 = vmatprep.subr.mxu0 0.0
        %848 = vmatpush1.xpose.msra.mxu0 %v845
        %849 = vmatprep.subr.mxu0 0.0
        %850 = vmatpush1.xpose.msra.mxu0 0.0
        %851 = vmatprep.subr.mxu0 0.0
        %852 = vmatpush1.xpose.msra.mxu0 0.0
        %853 = vmatprep.subr.mxu0 0.0
        %854 = vmatpush1.xpose.msra.mxu0 0.0
        %855 = vmatprep.subr.mxu0 0.0
        %856 = vmatpush1.xpose.msra.mxu0 0.0
        %857 = vmatprep.subr.mxu0 0.0
        %858 = vmatpush1.xpose.msra.mxu0 0.0
        %859 = vmatprep.subr.mxu0 0.0
        %860 = vmatpush1.xpose.msra.mxu0 0.0
        %861 = vmatprep.subr.mxu0 0.0
        %862 = vmatpush1.xpose.msra.mxu0 0.0
        %863 = vmatprep.subr.mxu0 0.0
        %864 = vmatpush1.xpose.msra.mxu0 0.0
        %865 = vmatprep.subr.mxu0 0.0
        %866 = vmatpush1.xpose.msra.mxu0 0.0
        %867 = vmatprep.subr.mxu0 0.0
        %868 = vmatpush1.xpose.msra.mxu0 0.0
        %869 = vmatprep.subr.mxu0 0.0
        %870 = vmatpush1.xpose.msra.mxu0 0.0
        %871 = vmatprep.subr.mxu0 0.0
        %872 = vmatpush1.xpose.msra.mxu0 0.0
        %873 = vmatprep.subr.mxu0 0.0
        %874 = vmatpush1.xpose.msra.mxu0 0.0
        %875 = vmatprep.subr.mxu0 0.0
        %876 = vmatpush1.xpose.msra.mxu0 0.0
        %877 = vmatprep.subr.mxu0 0.0
        %878 = vmatpush1.xpose.msra.mxu0 0.0
        %879 = vmatprep.subr.mxu0 0.0
        %880 = vmatpush1.xpose.msra.mxu0 0.0
        %881 = vmatprep.subr.mxu0 0.0
        %882 = vmatpush1.xpose.msra.mxu0 0.0
        %883 = vmatprep.subr.mxu0 0.0
        %884 = vmatpush1.xpose.msra.mxu0 0.0
        %885 = vmatprep.subr.mxu0 0.0
        %886 = vmatpush1.xpose.msra.mxu0 0.0
        %887 = vmatprep.subr.mxu0 0.0
        %888 = vmatpush1.xpose.msra.mxu0 0.0
        %889 = vmatprep.subr.mxu0 0.0
        %890 = vmatpush1.xpose.msra.mxu0 0.0
        %891 = vmatprep.subr.mxu0 0.0
        %892 = vmatpush1.xpose.msra.mxu0 0.0
        %893 = vmatprep.subr.mxu0 0.0
        %894 = vmatpush1.xpose.msra.mxu0 0.0
        %895 = vmatprep.subr.mxu0 0.0
        %896 = vmatpush1.xpose.msra.mxu0 0.0
        %897 = vmatprep.subr.mxu0 0.0
        %898 = vmatpush1.xpose.msra.mxu0 0.0
        %899 = vmatprep.subr.mxu0 0.0
        %900 = vmatpush1.xpose.msra.mxu0 0.0
        %901 = vmatprep.subr.mxu0 0.0
        %902 = vmatpush1.xpose.msra.mxu0 0.0
        %903 = vmatprep.subr.mxu0 0.0
        %904 = vmatpush1.xpose.msra.mxu0 0.0
        %905 = vmatprep.subr.mxu0 0.0
        %906 = vmatpush1.xpose.msra.mxu0 0.0
        %907 = vmatprep.subr.mxu0 0.0
        %908 = vmatpush1.xpose.msra.mxu0 0.0
        %909 = vmatprep.subr.mxu0 0.0
        %910 = vmatpush1.xpose.msra.mxu0 0.0
        %911 = vmatprep.mubr.f32.mxu0 0.0
        %912 = vmatmul.mubr.f32.gmra.mrb[0].mxu0 %v843
        %v913 = vpop.f32.mrb[0].mxu0
        %v914 = vadd.f32 0.0, %v913
        %v915 = vpop.f32.mrb[0].mxu0
        %916 = vdwg.mxu0
        %917 = vst.msk [vmem:[#allocation5 + $0x8] sm:$0xff] %vm761, %v914
        %918 = vrot.lane.b32.xlu0 %v758, 112
        %v919 = vpop.permute.xlu0 %918
        %920 = vrot.lane.b32.xlu0 %v759, 112
        %v921 = vpop.permute.xlu0 %920
        %v922 = vsel %vm761, %v919, 0
        %v924 = vsel %vm761, %v921, 0
        %926 = vmatprep.subr.mxu0 0.0
        %927 = vmatpush1.xpose.msra.mxu0 %v924
        %928 = vmatprep.subr.mxu0 0.0
        %929 = vmatpush1.xpose.msra.mxu0 0.0
        %930 = vmatprep.subr.mxu0 0.0
        %931 = vmatpush1.xpose.msra.mxu0 0.0
        %932 = vmatprep.subr.mxu0 0.0
        %933 = vmatpush1.xpose.msra.mxu0 0.0
        %934 = vmatprep.subr.mxu0 0.0
        %935 = vmatpush1.xpose.msra.mxu0 0.0
        %936 = vmatprep.subr.mxu0 0.0
        %937 = vmatpush1.xpose.msra.mxu0 0.0
        %938 = vmatprep.subr.mxu0 0.0
        %939 = vmatpush1.xpose.msra.mxu0 0.0
        %940 = vmatprep.subr.mxu0 0.0
        %941 = vmatpush1.xpose.msra.mxu0 0.0
        %942 = vmatprep.subr.mxu0 0.0
        %943 = vmatpush1.xpose.msra.mxu0 0.0
        %944 = vmatprep.subr.mxu0 0.0
        %945 = vmatpush1.xpose.msra.mxu0 0.0
        %946 = vmatprep.subr.mxu0 0.0
        %947 = vmatpush1.xpose.msra.mxu0 0.0
        %948 = vmatprep.subr.mxu0 0.0
        %949 = vmatpush1.xpose.msra.mxu0 0.0
        %950 = vmatprep.subr.mxu0 0.0
        %951 = vmatpush1.xpose.msra.mxu0 0.0
        %952 = vmatprep.subr.mxu0 0.0
        %953 = vmatpush1.xpose.msra.mxu0 0.0
        %954 = vmatprep.subr.mxu0 0.0
        %955 = vmatpush1.xpose.msra.mxu0 0.0
        %956 = vmatprep.subr.mxu0 0.0
        %957 = vmatpush1.xpose.msra.mxu0 0.0
        %958 = vmatprep.subr.mxu0 0.0
        %959 = vmatpush1.xpose.msra.mxu0 0.0
        %960 = vmatprep.subr.mxu0 0.0
        %961 = vmatpush1.xpose.msra.mxu0 0.0
        %962 = vmatprep.subr.mxu0 0.0
        %963 = vmatpush1.xpose.msra.mxu0 0.0
        %964 = vmatprep.subr.mxu0 0.0
        %965 = vmatpush1.xpose.msra.mxu0 0.0
        %966 = vmatprep.subr.mxu0 0.0
        %967 = vmatpush1.xpose.msra.mxu0 0.0
        %968 = vmatprep.subr.mxu0 0.0
        %969 = vmatpush1.xpose.msra.mxu0 0.0
        %970 = vmatprep.subr.mxu0 0.0
        %971 = vmatpush1.xpose.msra.mxu0 0.0
        %972 = vmatprep.subr.mxu0 0.0
        %973 = vmatpush1.xpose.msra.mxu0 0.0
        %974 = vmatprep.subr.mxu0 0.0
        %975 = vmatpush1.xpose.msra.mxu0 0.0
        %976 = vmatprep.subr.mxu0 0.0
        %977 = vmatpush1.xpose.msra.mxu0 0.0
        %978 = vmatprep.subr.mxu0 0.0
        %979 = vmatpush1.xpose.msra.mxu0 0.0
        %980 = vmatprep.subr.mxu0 0.0
        %981 = vmatpush1.xpose.msra.mxu0 0.0
        %982 = vmatprep.subr.mxu0 0.0
        %983 = vmatpush1.xpose.msra.mxu0 0.0
        %984 = vmatprep.subr.mxu0 0.0
        %985 = vmatpush1.xpose.msra.mxu0 0.0
        %986 = vmatprep.subr.mxu0 0.0
        %987 = vmatpush1.xpose.msra.mxu0 0.0
        %988 = vmatprep.subr.mxu0 0.0
        %989 = vmatpush1.xpose.msra.mxu0 0.0
        %990 = vmatprep.mubr.f32.mxu0 0.0
        %991 = vmatmul.mubr.f32.gmra.mrb[0].mxu0 %v922
        %v992 = vpop.f32.mrb[0].mxu0
        %v993 = vadd.f32 0.0, %v992
        %v994 = vpop.f32.mrb[0].mxu0
        %995 = vdwg.mxu0
        %996 = vst.msk [vmem:[#allocation5 + $0x10] sm:$0xff] %vm761, %v993
        %997 = vrot.lane.b32.xlu0 %v758, 104
        %v998 = vpop.permute.xlu0 %997
        %999 = vrot.lane.b32.xlu0 %v759, 104
        %v1000 = vpop.permute.xlu0 %999
        %v1001 = vsel %vm761, %v998, 0
        %v1003 = vsel %vm761, %v1000, 0
        %1005 = vmatprep.subr.mxu0 0.0
        %1006 = vmatpush1.xpose.msra.mxu0 %v1003
        %1007 = vmatprep.subr.mxu0 0.0
        %1008 = vmatpush1.xpose.msra.mxu0 0.0
        %1009 = vmatprep.subr.mxu0 0.0
        %1010 = vmatpush1.xpose.msra.mxu0 0.0
        %1011 = vmatprep.subr.mxu0 0.0
        %1012 = vmatpush1.xpose.msra.mxu0 0.0
        %1013 = vmatprep.subr.mxu0 0.0
        %1014 = vmatpush1.xpose.msra.mxu0 0.0
        %1015 = vmatprep.subr.mxu0 0.0
        %1016 = vmatpush1.xpose.msra.mxu0 0.0
        %1017 = vmatprep.subr.mxu0 0.0
        %1018 = vmatpush1.xpose.msra.mxu0 0.0
        %1019 = vmatprep.subr.mxu0 0.0
        %1020 = vmatpush1.xpose.msra.mxu0 0.0
        %1021 = vmatprep.subr.mxu0 0.0
        %1022 = vmatpush1.xpose.msra.mxu0 0.0
        %1023 = vmatprep.subr.mxu0 0.0
        %1024 = vmatpush1.xpose.msra.mxu0 0.0
        %1025 = vmatprep.subr.mxu0 0.0
        %1026 = vmatpush1.xpose.msra.mxu0 0.0
        %1027 = vmatprep.subr.mxu0 0.0
        %1028 = vmatpush1.xpose.msra.mxu0 0.0
        %1029 = vmatprep.subr.mxu0 0.0
        %1030 = vmatpush1.xpose.msra.mxu0 0.0
        %1031 = vmatprep.subr.mxu0 0.0
        %1032 = vmatpush1.xpose.msra.mxu0 0.0
        %1033 = vmatprep.subr.mxu0 0.0
        %1034 = vmatpush1.xpose.msra.mxu0 0.0
        %1035 = vmatprep.subr.mxu0 0.0
        %1036 = vmatpush1.xpose.msra.mxu0 0.0
        %1037 = vmatprep.subr.mxu0 0.0
        %1038 = vmatpush1.xpose.msra.mxu0 0.0
        %1039 = vmatprep.subr.mxu0 0.0
        %1040 = vmatpush1.xpose.msra.mxu0 0.0
        %1041 = vmatprep.subr.mxu0 0.0
        %1042 = vmatpush1.xpose.msra.mxu0 0.0
        %1043 = vmatprep.subr.mxu0 0.0
        %1044 = vmatpush1.xpose.msra.mxu0 0.0
        %1045 = vmatprep.subr.mxu0 0.0
        %1046 = vmatpush1.xpose.msra.mxu0 0.0
        %1047 = vmatprep.subr.mxu0 0.0
        %1048 = vmatpush1.xpose.msra.mxu0 0.0
        %1049 = vmatprep.subr.mxu0 0.0
        %1050 = vmatpush1.xpose.msra.mxu0 0.0
        %1051 = vmatprep.subr.mxu0 0.0
        %1052 = vmatpush1.xpose.msra.mxu0 0.0
        %1053 = vmatprep.subr.mxu0 0.0
        %1054 = vmatpush1.xpose.msra.mxu0 0.0
        %1055 = vmatprep.subr.mxu0 0.0
        %1056 = vmatpush1.xpose.msra.mxu0 0.0
        %1057 = vmatprep.subr.mxu0 0.0
        %1058 = vmatpush1.xpose.msra.mxu0 0.0
        %1059 = vmatprep.subr.mxu0 0.0
        %1060 = vmatpush1.xpose.msra.mxu0 0.0
        %1061 = vmatprep.subr.mxu0 0.0
        %1062 = vmatpush1.xpose.msra.mxu0 0.0
        %1063 = vmatprep.subr.mxu0 0.0
        %1064 = vmatpush1.xpose.msra.mxu0 0.0
        %1065 = vmatprep.subr.mxu0 0.0
        %1066 = vmatpush1.xpose.msra.mxu0 0.0
        %1067 = vmatprep.subr.mxu0 0.0
        %1068 = vmatpush1.xpose.msra.mxu0 0.0
        %1069 = vmatprep.mubr.f32.mxu0 0.0
        %1070 = vmatmul.mubr.f32.gmra.mrb[0].mxu0 %v1001
        %v1071 = vpop.f32.mrb[0].mxu0
        %v1072 = vadd.f32 0.0, %v1071
        %v1073 = vpop.f32.mrb[0].mxu0
        %1074 = vdwg.mxu0
        %1075 = vst.msk [vmem:[#allocation5 + $0x18] sm:$0xff] %vm761, %v1072
        %v1076 = vstv %s757
        %vm1077 = vcmp.lt.s32.totalorder %v756, %v1076
        %v1078 = vld [vmem:[#allocation5] sm:$0xff]
        %v1079 = vld [vmem:[#allocation5 + $0x8] sm:$0xff]
        %v1080 = vld [vmem:[#allocation5 + $0x10] sm:$0xff]
        %v1081 = vld [vmem:[#allocation5 + $0x18] sm:$0xff]
        %v1082 = vsel %vm1077, %v1078, -1000000.0
        %v1083 = vsel %vm1077, %v1079, -1000000.0
        %v1084 = vsel %vm1077, %v1080, -1000000.0
        %v1085 = vsel %vm1077, %v1081, -1000000.0
        %v1086 = vsel %vm761, %v1082, -inf
        %1087 = vmax.xlane.f32.xlu0 %v1086
        %v1088 = vpop.xlane.xlu0 %1087
        %v1089 = vsel %vm761, %v1083, -inf
        %1090 = vmax.xlane.f32.xlu0 %v1089
        %v1091 = vpop.xlane.xlu0 %1090
        %v1092 = vsel %vm761, %v1084, -inf
        %1093 = vmax.xlane.f32.xlu0 %v1092
        %v1094 = vpop.xlane.xlu0 %1093
        %v1095 = vsel %vm761, %v1085, -inf
        %1096 = vmax.xlane.f32.xlu0 %v1095
        %v1097 = vpop.xlane.xlu0 %1096
        %v1098 = vsub.f32 %v1082, %v1088
        %v1099 = vsub.f32 %v1083, %v1091
        %v1100 = vsub.f32 %v1084, %v1094
        %v1101 = vsub.f32 %v1085, %v1097
        %v1102 = vmul.f32 %v1098, 1.442695
        %v1103 = vpow.pop %v1102
        %v1104 = vmul.f32 %v1099, 1.442695
        %v1105 = vpow.pop %v1104
        %v1106 = vmul.f32 %v1100, 1.442695
        %v1107 = vpow.pop %v1106
        %v1108 = vmul.f32 %v1101, 1.442695
        %v1109 = vpow.pop %v1108
        %v1110 = vsel %vm761, %v1103, 0.0
        %1111 = vadd.xlane.f32.xlu0 %v1110
        %v1112 = vpop.xlane.xlu0 %1111
        %v1113 = vsel %vm761, %v1105, 0.0
        %1114 = vadd.xlane.f32.xlu0 %v1113
        %v1115 = vpop.xlane.xlu0 %1114
        %v1116 = vsel %vm761, %v1107, 0.0
        %1117 = vadd.xlane.f32.xlu0 %v1116
        %v1118 = vpop.xlane.xlu0 %1117
        %v1119 = vsel %vm761, %v1109, 0.0
        %1120 = vadd.xlane.f32.xlu0 %v1119
        %v1121 = vpop.xlane.xlu0 %1120
        %v1122 = vrcp.pop %v1112
        %v1123 = vrcp.pop %v1115
        %v1124 = vrcp.pop %v1118
        %v1125 = vrcp.pop %v1121
        %v1126 = vmul.f32 %v1103, %v1122
        %v1127 = vmul.f32 %v1105, %v1123
        %v1128 = vmul.f32 %v1107, %v1124
        %v1129 = vmul.f32 %v1109, %v1125
        %v1131 = vsel %vm761, %v1126, 0
        %1133 = vmatprep.subr.mxu0 0.0
        %1134 = vmatpush1.msra.mxu0 %v760
        %1135 = vmatprep.subr.mxu0 0.0
        %1136 = vmatpush1.msra.mxu0 0.0
        %1137 = vmatprep.subr.mxu0 0.0
        %1138 = vmatpush1.msra.mxu0 0.0
        %1139 = vmatprep.subr.mxu0 0.0
        %1140 = vmatpush1.msra.mxu0 0.0
        %1141 = vmatprep.subr.mxu0 0.0
        %1142 = vmatpush1.msra.mxu0 0.0
        %1143 = vmatprep.subr.mxu0 0.0
        %1144 = vmatpush1.msra.mxu0 0.0
        %1145 = vmatprep.subr.mxu0 0.0
        %1146 = vmatpush1.msra.mxu0 0.0
        %1147 = vmatprep.subr.mxu0 0.0
        %1148 = vmatpush1.msra.mxu0 0.0
        %1149 = vmatprep.subr.mxu0 0.0
        %1150 = vmatpush1.msra.mxu0 0.0
        %1151 = vmatprep.subr.mxu0 0.0
        %1152 = vmatpush1.msra.mxu0 0.0
        %1153 = vmatprep.subr.mxu0 0.0
        %1154 = vmatpush1.msra.mxu0 0.0
        %1155 = vmatprep.subr.mxu0 0.0
        %1156 = vmatpush1.msra.mxu0 0.0
        %1157 = vmatprep.subr.mxu0 0.0
        %1158 = vmatpush1.msra.mxu0 0.0
        %1159 = vmatprep.subr.mxu0 0.0
        %1160 = vmatpush1.msra.mxu0 0.0
        %1161 = vmatprep.subr.mxu0 0.0
        %1162 = vmatpush1.msra.mxu0 0.0
        %1163 = vmatprep.subr.mxu0 0.0
        %1164 = vmatpush1.msra.mxu0 0.0
        %1165 = vmatprep.subr.mxu0 0.0
        %1166 = vmatpush1.msra.mxu0 0.0
        %1167 = vmatprep.subr.mxu0 0.0
        %1168 = vmatpush1.msra.mxu0 0.0
        %1169 = vmatprep.subr.mxu0 0.0
        %1170 = vmatpush1.msra.mxu0 0.0
        %1171 = vmatprep.subr.mxu0 0.0
        %1172 = vmatpush1.msra.mxu0 0.0
        %1173 = vmatprep.subr.mxu0 0.0
        %1174 = vmatpush1.msra.mxu0 0.0
        %1175 = vmatprep.subr.mxu0 0.0
        %1176 = vmatpush1.msra.mxu0 0.0
        %1177 = vmatprep.subr.mxu0 0.0
        %1178 = vmatpush1.msra.mxu0 0.0
        %1179 = vmatprep.subr.mxu0 0.0
        %1180 = vmatpush1.msra.mxu0 0.0
        %1181 = vmatprep.subr.mxu0 0.0
        %1182 = vmatpush1.msra.mxu0 0.0
        %1183 = vmatprep.subr.mxu0 0.0
        %1184 = vmatpush1.msra.mxu0 0.0
        %1185 = vmatprep.subr.mxu0 0.0
        %1186 = vmatpush1.msra.mxu0 0.0
        %1187 = vmatprep.subr.mxu0 0.0
        %1188 = vmatpush1.msra.mxu0 0.0
        %1189 = vmatprep.subr.mxu0 0.0
        %1190 = vmatpush1.msra.mxu0 0.0
        %1191 = vmatprep.subr.mxu0 0.0
        %1192 = vmatpush1.msra.mxu0 0.0
        %1193 = vmatprep.subr.mxu0 0.0
        %1194 = vmatpush1.msra.mxu0 0.0
        %1195 = vmatprep.subr.mxu0 0.0
        %1196 = vmatpush1.msra.mxu0 0.0
        %1197 = vmatprep.mubr.f32.mxu0 0.0
        %1198 = vmatmul.mubr.f32.gmra.mrb[0].mxu0 %v1131
        %v1199 = vpop.f32.mrb[0].mxu0
        %v1200 = vadd.f32 0.0, %v1199
        %v1201 = vpop.f32.mrb[0].mxu0
        %1202 = vdwg.mxu0
        %1203 = vst.msk [vmem:[#allocation6] sm:$0xff] %vm761, %v1200
        %1205 = vrot.lane.b32.xlu0 %v760, 120
        %v1206 = vpop.permute.xlu0 %1205
        %v1209 = vsel %vm761, %v1127, 0
        %1211 = vmatprep.subr.mxu0 0.0
        %1212 = vmatpush1.msra.mxu0 %v1206
        %1213 = vmatprep.subr.mxu0 0.0
        %1214 = vmatpush1.msra.mxu0 0.0
        %1215 = vmatprep.subr.mxu0 0.0
        %1216 = vmatpush1.msra.mxu0 0.0
        %1217 = vmatprep.subr.mxu0 0.0
        %1218 = vmatpush1.msra.mxu0 0.0
        %1219 = vmatprep.subr.mxu0 0.0
        %1220 = vmatpush1.msra.mxu0 0.0
        %1221 = vmatprep.subr.mxu0 0.0
        %1222 = vmatpush1.msra.mxu0 0.0
        %1223 = vmatprep.subr.mxu0 0.0
        %1224 = vmatpush1.msra.mxu0 0.0
        %1225 = vmatprep.subr.mxu0 0.0
        %1226 = vmatpush1.msra.mxu0 0.0
        %1227 = vmatprep.subr.mxu0 0.0
        %1228 = vmatpush1.msra.mxu0 0.0
        %1229 = vmatprep.subr.mxu0 0.0
        %1230 = vmatpush1.msra.mxu0 0.0
        %1231 = vmatprep.subr.mxu0 0.0
        %1232 = vmatpush1.msra.mxu0 0.0
        %1233 = vmatprep.subr.mxu0 0.0
        %1234 = vmatpush1.msra.mxu0 0.0
        %1235 = vmatprep.subr.mxu0 0.0
        %1236 = vmatpush1.msra.mxu0 0.0
        %1237 = vmatprep.subr.mxu0 0.0
        %1238 = vmatpush1.msra.mxu0 0.0
        %1239 = vmatprep.subr.mxu0 0.0
        %1240 = vmatpush1.msra.mxu0 0.0
        %1241 = vmatprep.subr.mxu0 0.0
        %1242 = vmatpush1.msra.mxu0 0.0
        %1243 = vmatprep.subr.mxu0 0.0
        %1244 = vmatpush1.msra.mxu0 0.0
        %1245 = vmatprep.subr.mxu0 0.0
        %1246 = vmatpush1.msra.mxu0 0.0
        %1247 = vmatprep.subr.mxu0 0.0
        %1248 = vmatpush1.msra.mxu0 0.0
        %1249 = vmatprep.subr.mxu0 0.0
        %1250 = vmatpush1.msra.mxu0 0.0
        %1251 = vmatprep.subr.mxu0 0.0
        %1252 = vmatpush1.msra.mxu0 0.0
        %1253 = vmatprep.subr.mxu0 0.0
        %1254 = vmatpush1.msra.mxu0 0.0
        %1255 = vmatprep.subr.mxu0 0.0
        %1256 = vmatpush1.msra.mxu0 0.0
        %1257 = vmatprep.subr.mxu0 0.0
        %1258 = vmatpush1.msra.mxu0 0.0
        %1259 = vmatprep.subr.mxu0 0.0
        %1260 = vmatpush1.msra.mxu0 0.0
        %1261 = vmatprep.subr.mxu0 0.0
        %1262 = vmatpush1.msra.mxu0 0.0
        %1263 = vmatprep.subr.mxu0 0.0
        %1264 = vmatpush1.msra.mxu0 0.0
        %1265 = vmatprep.subr.mxu0 0.0
        %1266 = vmatpush1.msra.mxu0 0.0
        %1267 = vmatprep.subr.mxu0 0.0
        %1268 = vmatpush1.msra.mxu0 0.0
        %1269 = vmatprep.subr.mxu0 0.0
        %1270 = vmatpush1.msra.mxu0 0.0
        %1271 = vmatprep.subr.mxu0 0.0
        %1272 = vmatpush1.msra.mxu0 0.0
        %1273 = vmatprep.subr.mxu0 0.0
        %1274 = vmatpush1.msra.mxu0 0.0
        %1275 = vmatprep.mubr.f32.mxu0 0.0
        %1276 = vmatmul.mubr.f32.gmra.mrb[0].mxu0 %v1209
        %v1277 = vpop.f32.mrb[0].mxu0
        %v1278 = vadd.f32 0.0, %v1277
        %v1279 = vpop.f32.mrb[0].mxu0
        %1280 = vdwg.mxu0
        %1282 = vrot.lane.b32.xlu0 %v1278, 8
        %v1283 = vpop.permute.xlu0 %1282
        %vm1285 = vcmask 130112
        %1286 = vst.msk [vmem:[#allocation6] sm:$0xff] %vm1285, %v1283
        %1287 = vrot.lane.b32.xlu0 %v760, 112
        %v1288 = vpop.permute.xlu0 %1287
        %v1291 = vsel %vm761, %v1128, 0
        %1293 = vmatprep.subr.mxu0 0.0
        %1294 = vmatpush1.msra.mxu0 %v1288
        %1295 = vmatprep.subr.mxu0 0.0
        %1296 = vmatpush1.msra.mxu0 0.0
        %1297 = vmatprep.subr.mxu0 0.0
        %1298 = vmatpush1.msra.mxu0 0.0
        %1299 = vmatprep.subr.mxu0 0.0
        %1300 = vmatpush1.msra.mxu0 0.0
        %1301 = vmatprep.subr.mxu0 0.0
        %1302 = vmatpush1.msra.mxu0 0.0
        %1303 = vmatprep.subr.mxu0 0.0
        %1304 = vmatpush1.msra.mxu0 0.0
        %1305 = vmatprep.subr.mxu0 0.0
        %1306 = vmatpush1.msra.mxu0 0.0
        %1307 = vmatprep.subr.mxu0 0.0
        %1308 = vmatpush1.msra.mxu0 0.0
        %1309 = vmatprep.subr.mxu0 0.0
        %1310 = vmatpush1.msra.mxu0 0.0
        %1311 = vmatprep.subr.mxu0 0.0
        %1312 = vmatpush1.msra.mxu0 0.0
        %1313 = vmatprep.subr.mxu0 0.0
        %1314 = vmatpush1.msra.mxu0 0.0
        %1315 = vmatprep.subr.mxu0 0.0
        %1316 = vmatpush1.msra.mxu0 0.0
        %1317 = vmatprep.subr.mxu0 0.0
        %1318 = vmatpush1.msra.mxu0 0.0
        %1319 = vmatprep.subr.mxu0 0.0
        %1320 = vmatpush1.msra.mxu0 0.0
        %1321 = vmatprep.subr.mxu0 0.0
        %1322 = vmatpush1.msra.mxu0 0.0
        %1323 = vmatprep.subr.mxu0 0.0
        %1324 = vmatpush1.msra.mxu0 0.0
        %1325 = vmatprep.subr.mxu0 0.0
        %1326 = vmatpush1.msra.mxu0 0.0
        %1327 = vmatprep.subr.mxu0 0.0
        %1328 = vmatpush1.msra.mxu0 0.0
        %1329 = vmatprep.subr.mxu0 0.0
        %1330 = vmatpush1.msra.mxu0 0.0
        %1331 = vmatprep.subr.mxu0 0.0
        %1332 = vmatpush1.msra.mxu0 0.0
        %1333 = vmatprep.subr.mxu0 0.0
        %1334 = vmatpush1.msra.mxu0 0.0
        %1335 = vmatprep.subr.mxu0 0.0
        %1336 = vmatpush1.msra.mxu0 0.0
        %1337 = vmatprep.subr.mxu0 0.0
        %1338 = vmatpush1.msra.mxu0 0.0
        %1339 = vmatprep.subr.mxu0 0.0
        %1340 = vmatpush1.msra.mxu0 0.0
        %1341 = vmatprep.subr.mxu0 0.0
        %1342 = vmatpush1.msra.mxu0 0.0
        %1343 = vmatprep.subr.mxu0 0.0
        %1344 = vmatpush1.msra.mxu0 0.0
        %1345 = vmatprep.subr.mxu0 0.0
        %1346 = vmatpush1.msra.mxu0 0.0
        %1347 = vmatprep.subr.mxu0 0.0
        %1348 = vmatpush1.msra.mxu0 0.0
        %1349 = vmatprep.subr.mxu0 0.0
        %1350 = vmatpush1.msra.mxu0 0.0
        %1351 = vmatprep.subr.mxu0 0.0
        %1352 = vmatpush1.msra.mxu0 0.0
        %1353 = vmatprep.subr.mxu0 0.0
        %1354 = vmatpush1.msra.mxu0 0.0
        %1355 = vmatprep.subr.mxu0 0.0
        %1356 = vmatpush1.msra.mxu0 0.0
        %1357 = vmatprep.mubr.f32.mxu0 0.0
        %1358 = vmatmul.mubr.f32.gmra.mrb[0].mxu0 %v1291
        %v1359 = vpop.f32.mrb[0].mxu0
        %v1360 = vadd.f32 0.0, %v1359
        %v1361 = vpop.f32.mrb[0].mxu0
        %1362 = vdwg.mxu0
        %1364 = vrot.lane.b32.xlu0 %v1360, 16
        %v1365 = vpop.permute.xlu0 %1364
        %vm1367 = vcmask 195712
        %1368 = vst.msk [vmem:[#allocation6] sm:$0xff] %vm1367, %v1365
        %1369 = vrot.lane.b32.xlu0 %v760, 104
        %v1370 = vpop.permute.xlu0 %1369
        %v1373 = vsel %vm761, %v1129, 0
        %1375 = vmatprep.subr.mxu0 0.0
        %1376 = vmatpush1.msra.mxu0 %v1370
        %1377 = vmatprep.subr.mxu0 0.0
        %1378 = vmatpush1.msra.mxu0 0.0
        %1379 = vmatprep.subr.mxu0 0.0
        %1380 = vmatpush1.msra.mxu0 0.0
        %1381 = vmatprep.subr.mxu0 0.0
        %1382 = vmatpush1.msra.mxu0 0.0
        %1383 = vmatprep.subr.mxu0 0.0
        %1384 = vmatpush1.msra.mxu0 0.0
        %1385 = vmatprep.subr.mxu0 0.0
        %1386 = vmatpush1.msra.mxu0 0.0
        %1387 = vmatprep.subr.mxu0 0.0
        %1388 = vmatpush1.msra.mxu0 0.0
        %1389 = vmatprep.subr.mxu0 0.0
        %1390 = vmatpush1.msra.mxu0 0.0
        %1391 = vmatprep.subr.mxu0 0.0
        %1392 = vmatpush1.msra.mxu0 0.0
        %1393 = vmatprep.subr.mxu0 0.0
        %1394 = vmatpush1.msra.mxu0 0.0
        %1395 = vmatprep.subr.mxu0 0.0
        %1396 = vmatpush1.msra.mxu0 0.0
        %1397 = vmatprep.subr.mxu0 0.0
        %1398 = vmatpush1.msra.mxu0 0.0
        %1399 = vmatprep.subr.mxu0 0.0
        %1400 = vmatpush1.msra.mxu0 0.0
        %1401 = vmatprep.subr.mxu0 0.0
        %1402 = vmatpush1.msra.mxu0 0.0
        %1403 = vmatprep.subr.mxu0 0.0
        %1404 = vmatpush1.msra.mxu0 0.0
        %1405 = vmatprep.subr.mxu0 0.0
        %1406 = vmatpush1.msra.mxu0 0.0
        %1407 = vmatprep.subr.mxu0 0.0
        %1408 = vmatpush1.msra.mxu0 0.0
        %1409 = vmatprep.subr.mxu0 0.0
        %1410 = vmatpush1.msra.mxu0 0.0
        %1411 = vmatprep.subr.mxu0 0.0
        %1412 = vmatpush1.msra.mxu0 0.0
        %1413 = vmatprep.subr.mxu0 0.0
        %1414 = vmatpush1.msra.mxu0 0.0
        %1415 = vmatprep.subr.mxu0 0.0
        %1416 = vmatpush1.msra.mxu0 0.0
        %1417 = vmatprep.subr.mxu0 0.0
        %1418 = vmatpush1.msra.mxu0 0.0
        %1419 = vmatprep.subr.mxu0 0.0
        %1420 = vmatpush1.msra.mxu0 0.0
        %1421 = vmatprep.subr.mxu0 0.0
        %1422 = vmatpush1.msra.mxu0 0.0
        %1423 = vmatprep.subr.mxu0 0.0
        %1424 = vmatpush1.msra.mxu0 0.0
        %1425 = vmatprep.subr.mxu0 0.0
        %1426 = vmatpush1.msra.mxu0 0.0
        %1427 = vmatprep.subr.mxu0 0.0
        %1428 = vmatpush1.msra.mxu0 0.0
        %1429 = vmatprep.subr.mxu0 0.0
        %1430 = vmatpush1.msra.mxu0 0.0
        %1431 = vmatprep.subr.mxu0 0.0
        %1432 = vmatpush1.msra.mxu0 0.0
        %1433 = vmatprep.subr.mxu0 0.0
        %1434 = vmatpush1.msra.mxu0 0.0
        %1435 = vmatprep.subr.mxu0 0.0
        %1436 = vmatpush1.msra.mxu0 0.0
        %1437 = vmatprep.subr.mxu0 0.0
        %1438 = vmatpush1.msra.mxu0 0.0
        %1439 = vmatprep.mubr.f32.mxu0 0.0
        %1440 = vmatmul.mubr.f32.gmra.mrb[0].mxu0 %v1373
        %v1441 = vpop.f32.mrb[0].mxu0
        %v1442 = vadd.f32 0.0, %v1441
        %v1443 = vpop.f32.mrb[0].mxu0
        %1444 = vdwg.mxu0
        %1446 = vrot.lane.b32.xlu0 %v1442, 24
        %v1447 = vpop.permute.xlu0 %1446
        %vm1449 = vcmask 261312
        %1450 = vst.msk [vmem:[#allocation6] sm:$0xff] %vm1449, %v1447
        %v1451 = vld [vmem:[#allocation6] sm:$0xff]
        %v1452 = vld [vmem:[#allocation12] sm:$0xff]
        %v1453 = vld [vmem:[#allocation12 + $0x8] sm:$0xff]
        %v1454 = vld [vmem:[#allocation12 + $0x10] sm:$0xff]
        %v1455 = vld [vmem:[#allocation12 + $0x18] sm:$0xff]
        %v1456 = vld [vmem:[%s470] sm:$0xff]
        %v1458 = vsel %vm529, %v1451, 0
        %1460 = vmatprep.subr.mxu0 0.0
        %1461 = vmatpush1.msra.mxu0 %v1452
        %1462 = vmatprep.subr.mxu0 0.0
        %1463 = vmatpush1.msra.mxu0 %v1453
        %1464 = vmatprep.subr.mxu0 0.0
        %1465 = vmatpush1.msra.mxu0 %v1454
        %1466 = vmatprep.subr.mxu0 0.0
        %1467 = vmatpush1.msra.mxu0 %v1455
        %1468 = vmatprep.subr.mxu0 0.0
        %1469 = vmatpush1.msra.mxu0 0.0
        %1470 = vmatprep.subr.mxu0 0.0
        %1471 = vmatpush1.msra.mxu0 0.0
        %1472 = vmatprep.subr.mxu0 0.0
        %1473 = vmatpush1.msra.mxu0 0.0
        %1474 = vmatprep.subr.mxu0 0.0
        %1475 = vmatpush1.msra.mxu0 0.0
        %1476 = vmatprep.subr.mxu0 0.0
        %1477 = vmatpush1.msra.mxu0 0.0
        %1478 = vmatprep.subr.mxu0 0.0
        %1479 = vmatpush1.msra.mxu0 0.0
        %1480 = vmatprep.subr.mxu0 0.0
        %1481 = vmatpush1.msra.mxu0 0.0
        %1482 = vmatprep.subr.mxu0 0.0
        %1483 = vmatpush1.msra.mxu0 0.0
        %1484 = vmatprep.subr.mxu0 0.0
        %1485 = vmatpush1.msra.mxu0 0.0
        %1486 = vmatprep.subr.mxu0 0.0
        %1487 = vmatpush1.msra.mxu0 0.0
        %1488 = vmatprep.subr.mxu0 0.0
        %1489 = vmatpush1.msra.mxu0 0.0
        %1490 = vmatprep.subr.mxu0 0.0
        %1491 = vmatpush1.msra.mxu0 0.0
        %1492 = vmatprep.subr.mxu0 0.0
        %1493 = vmatpush1.msra.mxu0 0.0
        %1494 = vmatprep.subr.mxu0 0.0
        %1495 = vmatpush1.msra.mxu0 0.0
        %1496 = vmatprep.subr.mxu0 0.0
        %1497 = vmatpush1.msra.mxu0 0.0
        %1498 = vmatprep.subr.mxu0 0.0
        %1499 = vmatpush1.msra.mxu0 0.0
        %1500 = vmatprep.subr.mxu0 0.0
        %1501 = vmatpush1.msra.mxu0 0.0
        %1502 = vmatprep.subr.mxu0 0.0
        %1503 = vmatpush1.msra.mxu0 0.0
        %1504 = vmatprep.subr.mxu0 0.0
        %1505 = vmatpush1.msra.mxu0 0.0
        %1506 = vmatprep.subr.mxu0 0.0
        %1507 = vmatpush1.msra.mxu0 0.0
        %1508 = vmatprep.subr.mxu0 0.0
        %1509 = vmatpush1.msra.mxu0 0.0
        %1510 = vmatprep.subr.mxu0 0.0
        %1511 = vmatpush1.msra.mxu0 0.0
        %1512 = vmatprep.subr.mxu0 0.0
        %1513 = vmatpush1.msra.mxu0 0.0
        %1514 = vmatprep.subr.mxu0 0.0
        %1515 = vmatpush1.msra.mxu0 0.0
        %1516 = vmatprep.subr.mxu0 0.0
        %1517 = vmatpush1.msra.mxu0 0.0
        %1518 = vmatprep.subr.mxu0 0.0
        %1519 = vmatpush1.msra.mxu0 0.0
        %1520 = vmatprep.subr.mxu0 0.0
        %1521 = vmatpush1.msra.mxu0 0.0
        %1522 = vmatprep.subr.mxu0 0.0
        %1523 = vmatpush1.msra.mxu0 0.0
        %1524 = vmatprep.mubr.f32.mxu0 0.0
        %1525 = vmatmul.mubr.f32.gmra.mrb[0].mxu0 %v1458
        %v1526 = vpop.f32.mrb[0].mxu0
        %v1527 = vadd.f32 %v1456, %v1526
        %v1528 = vpop.f32.mrb[0].mxu0
        %1529 = vdwg.mxu0
        %v1530 = vsel %vm529, %v1527, 0.0
        %1531 = vadd.xlane.f32.xlu0 %v1530
        %v1532 = vpop.xlane.xlu0 %1531
        %v1533 = vrcp.pop 32.0
        %v1534 = vmul.f32 %v1532, %v1533
        %v1535 = vsub.f32 %v1527, %v1534
        %v1536 = vmul.f32 %v1535, %v1535
        %v1537 = vsel %vm529, %v1536, 0.0
        %1538 = vadd.xlane.f32.xlu0 %v1537
        %v1539 = vpop.xlane.xlu0 %1538
        %v1540 = vmul.f32 %v1539, %v1533
        %v1541 = vadd.f32 %v1540, 1e-05
        %v1542 = vrsqrt.pop %v1541
        %v1543 = vmul.f32 %v1535, %v1542
        %v1544 = vld [vmem:[%s10] sm:$0x1]
        %v1546 = vlaneseq
        %v1547 = vshrl.u32 %v1546, 7
        %v1548 = vsub.s32 0, %v1547
        %v1549 = vrot.slane %v1544, %v1548
        %v1551 = vmul.f32 %v1543, %v1549
        %v1552 = vld [vmem:[%s11] sm:$0x1]
        %v1554 = vlaneseq
        %v1555 = vshrl.u32 %v1554, 7
        %v1556 = vsub.s32 0, %v1555
        %v1557 = vrot.slane %v1552, %v1556
        %v1559 = vadd.f32 %v1551, %v1557
        %v1560 = vld [vmem:[#allocation14] sm:$0xff]
        %v1561 = vld [vmem:[#allocation14 + $0x8] sm:$0xff]
        %v1562 = vld [vmem:[#allocation14 + $0x10] sm:$0xff]
        %v1563 = vld [vmem:[#allocation14 + $0x18] sm:$0xff]
        %v1564 = vld [vmem:[%s7] sm:$0x1]
        %v1566 = vlaneseq
        %v1567 = vshrl.u32 %v1566, 7
        %v1568 = vsub.s32 0, %v1567
        %v1569 = vrot.slane %v1564, %v1568
        %v1572 = vsel %vm529, %v1559, 0
        %1574 = vmatprep.subr.mxu0 0.0
        %1575 = vmatpush1.msra.mxu0 %v1560
        %1576 = vmatprep.subr.mxu0 0.0
        %1577 = vmatpush1.msra.mxu0 %v1561
        %1578 = vmatprep.subr.mxu0 0.0
        %1579 = vmatpush1.msra.mxu0 %v1562
        %1580 = vmatprep.subr.mxu0 0.0
        %1581 = vmatpush1.msra.mxu0 %v1563
        %1582 = vmatprep.subr.mxu0 0.0
        %1583 = vmatpush1.msra.mxu0 0.0
        %1584 = vmatprep.subr.mxu0 0.0
        %1585 = vmatpush1.msra.mxu0 0.0
        %1586 = vmatprep.subr.mxu0 0.0
        %1587 = vmatpush1.msra.mxu0 0.0
        %1588 = vmatprep.subr.mxu0 0.0
        %1589 = vmatpush1.msra.mxu0 0.0
        %1590 = vmatprep.subr.mxu0 0.0
        %1591 = vmatpush1.msra.mxu0 0.0
        %1592 = vmatprep.subr.mxu0 0.0
        %1593 = vmatpush1.msra.mxu0 0.0
        %1594 = vmatprep.subr.mxu0 0.0
        %1595 = vmatpush1.msra.mxu0 0.0
        %1596 = vmatprep.subr.mxu0 0.0
        %1597 = vmatpush1.msra.mxu0 0.0
        %1598 = vmatprep.subr.mxu0 0.0
        %1599 = vmatpush1.msra.mxu0 0.0
        %1600 = vmatprep.subr.mxu0 0.0
        %1601 = vmatpush1.msra.mxu0 0.0
        %1602 = vmatprep.subr.mxu0 0.0
        %1603 = vmatpush1.msra.mxu0 0.0
        %1604 = vmatprep.subr.mxu0 0.0
        %1605 = vmatpush1.msra.mxu0 0.0
        %1606 = vmatprep.subr.mxu0 0.0
        %1607 = vmatpush1.msra.mxu0 0.0
        %1608 = vmatprep.subr.mxu0 0.0
        %1609 = vmatpush1.msra.mxu0 0.0
        %1610 = vmatprep.subr.mxu0 0.0
        %1611 = vmatpush1.msra.mxu0 0.0
        %1612 = vmatprep.subr.mxu0 0.0
        %1613 = vmatpush1.msra.mxu0 0.0
        %1614 = vmatprep.subr.mxu0 0.0
        %1615 = vmatpush1.msra.mxu0 0.0
        %1616 = vmatprep.subr.mxu0 0.0
        %1617 = vmatpush1.msra.mxu0 0.0
        %1618 = vmatprep.subr.mxu0 0.0
        %1619 = vmatpush1.msra.mxu0 0.0
        %1620 = vmatprep.subr.mxu0 0.0
        %1621 = vmatpush1.msra.mxu0 0.0
        %1622 = vmatprep.subr.mxu0 0.0
        %1623 = vmatpush1.msra.mxu0 0.0
        %1624 = vmatprep.subr.mxu0 0.0
        %1625 = vmatpush1.msra.mxu0 0.0
        %1626 = vmatprep.subr.mxu0 0.0
        %1627 = vmatpush1.msra.mxu0 0.0
        %1628 = vmatprep.subr.mxu0 0.0
        %1629 = vmatpush1.msra.mxu0 0.0
        %1630 = vmatprep.subr.mxu0 0.0
        %1631 = vmatpush1.msra.mxu0 0.0
        %1632 = vmatprep.subr.mxu0 0.0
        %1633 = vmatpush1.msra.mxu0 0.0
        %1634 = vmatprep.subr.mxu0 0.0
        %1635 = vmatpush1.msra.mxu0 0.0
        %1636 = vmatprep.subr.mxu0 0.0
        %1637 = vmatpush1.msra.mxu0 0.0
        %1638 = vmatprep.mubr.f32.mxu0 0.0
        %1639 = vmatmul.mubr.f32.gmra.mrb[0].mxu0 %v1572
        %v1640 = vpop.f32.mrb[0].mxu0
        %v1641 = vadd.f32 %v1569, %v1640
        %v1642 = vpop.f32.mrb[0].mxu0
        %1643 = vdwg.mxu0
        %v1644 = vmax.f32 %v1641, 0.0
        %v1645 = vld [vmem:[%s8] sm:$0xff]
        %v1646 = vld [vmem:[%s8 + $0x8] sm:$0xff]
        %v1647 = vld [vmem:[%s8 + $0x10] sm:$0xff]
        %v1648 = vld [vmem:[%s8 + $0x18] sm:$0xff]
        %v1649 = vld [vmem:[%s8 + $0x20] sm:$0xff]
        %v1650 = vld [vmem:[%s8 + $0x28] sm:$0xff]
        %v1651 = vld [vmem:[%s8 + $0x30] sm:$0xff]
        %v1652 = vld [vmem:[%s8 + $0x38] sm:$0xff]
        %v1653 = vld [vmem:[%s9] sm:$0x1]
        %v1655 = vlaneseq
        %v1656 = vshrl.u32 %v1655, 7
        %v1657 = vsub.s32 0, %v1656
        %v1658 = vrot.slane %v1653, %v1657
        %vm1660 = vcmask 523264
        %v1662 = vsel %vm1660, %v1644, 0
        %1664 = vmatprep.subr.mxu0 0.0
        %1665 = vmatpush1.msra.mxu0 %v1645
        %1666 = vmatprep.subr.mxu0 0.0
        %1667 = vmatpush1.msra.mxu0 %v1646
        %1668 = vmatprep.subr.mxu0 0.0
        %1669 = vmatpush1.msra.mxu0 %v1647
        %1670 = vmatprep.subr.mxu0 0.0
        %1671 = vmatpush1.msra.mxu0 %v1648
        %1672 = vmatprep.subr.mxu0 0.0
        %1673 = vmatpush1.msra.mxu0 %v1649
        %1674 = vmatprep.subr.mxu0 0.0
        %1675 = vmatpush1.msra.mxu0 %v1650
        %1676 = vmatprep.subr.mxu0 0.0
        %1677 = vmatpush1.msra.mxu0 %v1651
        %1678 = vmatprep.subr.mxu0 0.0
        %1679 = vmatpush1.msra.mxu0 %v1652
        %1680 = vmatprep.subr.mxu0 0.0
        %1681 = vmatpush1.msra.mxu0 0.0
        %1682 = vmatprep.subr.mxu0 0.0
        %1683 = vmatpush1.msra.mxu0 0.0
        %1684 = vmatprep.subr.mxu0 0.0
        %1685 = vmatpush1.msra.mxu0 0.0
        %1686 = vmatprep.subr.mxu0 0.0
        %1687 = vmatpush1.msra.mxu0 0.0
        %1688 = vmatprep.subr.mxu0 0.0
        %1689 = vmatpush1.msra.mxu0 0.0
        %1690 = vmatprep.subr.mxu0 0.0
        %1691 = vmatpush1.msra.mxu0 0.0
        %1692 = vmatprep.subr.mxu0 0.0
        %1693 = vmatpush1.msra.mxu0 0.0
        %1694 = vmatprep.subr.mxu0 0.0
        %1695 = vmatpush1.msra.mxu0 0.0
        %1696 = vmatprep.subr.mxu0 0.0
        %1697 = vmatpush1.msra.mxu0 0.0
        %1698 = vmatprep.subr.mxu0 0.0
        %1699 = vmatpush1.msra.mxu0 0.0
        %1700 = vmatprep.subr.mxu0 0.0
        %1701 = vmatpush1.msra.mxu0 0.0
        %1702 = vmatprep.subr.mxu0 0.0
        %1703 = vmatpush1.msra.mxu0 0.0
        %1704 = vmatprep.subr.mxu0 0.0
        %1705 = vmatpush1.msra.mxu0 0.0
        %1706 = vmatprep.subr.mxu0 0.0
        %1707 = vmatpush1.msra.mxu0 0.0
        %1708 = vmatprep.subr.mxu0 0.0
        %1709 = vmatpush1.msra.mxu0 0.0
        %1710 = vmatprep.subr.mxu0 0.0
        %1711 = vmatpush1.msra.mxu0 0.0
        %1712 = vmatprep.subr.mxu0 0.0
        %1713 = vmatpush1.msra.mxu0 0.0
        %1714 = vmatprep.subr.mxu0 0.0
        %1715 = vmatpush1.msra.mxu0 0.0
        %1716 = vmatprep.subr.mxu0 0.0
        %1717 = vmatpush1.msra.mxu0 0.0
        %1718 = vmatprep.subr.mxu0 0.0
        %1719 = vmatpush1.msra.mxu0 0.0
        %1720 = vmatprep.subr.mxu0 0.0
        %1721 = vmatpush1.msra.mxu0 0.0
        %1722 = vmatprep.subr.mxu0 0.0
        %1723 = vmatpush1.msra.mxu0 0.0
        %1724 = vmatprep.subr.mxu0 0.0
        %1725 = vmatpush1.msra.mxu0 0.0
        %1726 = vmatprep.subr.mxu0 0.0
        %1727 = vmatpush1.msra.mxu0 0.0
        %1728 = vmatprep.mubr.f32.mxu0 0.0
        %1729 = vmatmul.mubr.f32.gmra.mrb[0].mxu0 %v1662
        %v1730 = vpop.f32.mrb[0].mxu0
        %v1731 = vadd.f32 %v1658, %v1730
        %v1732 = vpop.f32.mrb[0].mxu0
        %1733 = vdwg.mxu0
        %v1734 = vadd.f32 %v1731, %v1559
        %v1735 = vsel %vm529, %v1734, 0.0
        %1736 = vadd.xlane.f32.xlu0 %v1735
        %v1737 = vpop.xlane.xlu0 %1736
        %v1738 = vmul.f32 %v1737, %v1533
        %v1739 = vsub.f32 %v1734, %v1738
        %v1740 = vmul.f32 %v1739, %v1739
        %v1741 = vsel %vm529, %v1740, 0.0
        %1742 = vadd.xlane.f32.xlu0 %v1741
        %v1743 = vpop.xlane.xlu0 %1742
        %v1744 = vmul.f32 %v1743, %v1533
        %v1745 = vadd.f32 %v1744, 1e-05
        %v1746 = vrsqrt.pop %v1745
        %v1747 = vmul.f32 %v1739, %v1746
        %v1748 = vld [vmem:[%s12] sm:$0x1]
        %v1750 = vlaneseq
        %v1751 = vshrl.u32 %v1750, 7
        %v1752 = vsub.s32 0, %v1751
        %v1753 = vrot.slane %v1748, %v1752
        %v1755 = vmul.f32 %v1747, %v1753
        %v1756 = vld [vmem:[%s13] sm:$0x1]
        %v1758 = vlaneseq
        %v1759 = vshrl.u32 %v1758, 7
        %v1760 = vsub.s32 0, %v1759
        %v1761 = vrot.slane %v1756, %v1760
        %v1763 = vadd.f32 %v1755, %v1761
        %1764 = vst.msk [vmem:[%s523] sm:$0xff] %vm529, %v1763
        %s1765 = sand.u32 %s340, 1
        %s1766 = scalar_lea.sflag [#allocation9], %s1765
        %s1767 = sand.u32 %s340, 1
        %s1768 = smul.addr %s1767, 8
        %s1769 = scalar_lea.vmem [#allocation15], %s1768
        // Predicated region
        $region93: #{tpu_custom_call.1} parent=75 // pred_check
          %p1770 = pneg %p350
        $region94: #{tpu_custom_call.1} parent=75 // pred_check_branch
          %1772 = sbr.rel (%p1770) target = $region96
        $region95: #{tpu_custom_call.1} parent=75 // pred_region
          %s1774 = ssub.s32 128, 128
          %1775 = vsyncadd %s1766, %s1774
          %s1776 = smul.addr %s33, 128
          %s1777 = scalar_lea.hbm %s14, %s1776
          %s1779 = sshll.u32 %s1769, 4
          %s1780 = int_to_ptr.vmem [resolvable:$true] %s1779
          %1782 = dma.vmem_to_hbm [thread:$0]  %s1780, 128, %s1777, %s1766
        $region96: #{tpu_custom_call.1} parent=75 // pred_fallthru
          _
      $region76: #{tpu_custom_call.1} parent=5 // pred_fallthru
        _
      %p1783 = scmp.le.s32.totalorder 2, %s28
      // Predicated region
      $region97: #{tpu_custom_call.1} parent=5 // pred_check
        %p1784 = pneg %p1783
      $region98: #{tpu_custom_call.1} parent=5 // pred_check_branch
        %1786 = sbr.rel (%p1784) target = $region100
      $region99: #{tpu_custom_call.1} parent=5 // pred_region
        %s1787 = ssub.s32 %s28, 2
        // Predicated region
        $region101: #{tpu_custom_call.1} parent=99 // pred_check
          %p1788 = pneg %p356
        $region102: #{tpu_custom_call.1} parent=99 // pred_check_branch
          %1790 = sbr.rel (%p1788) target = $region104
        $region103: #{tpu_custom_call.1} parent=99 // pred_region
          %s1791 = sand.u32 %s341, 1
          %s1792 = scalar_lea.sflag [#allocation9], %s1791
          %s1793 = sand.u32 %s341, 1
          %s1794 = smul.addr %s1793, 8
          %s1795 = scalar_lea.vmem [#allocation15], %s1794
          %1796 = dma.done %s1792, 128
        $region104: #{tpu_custom_call.1} parent=99 // pred_fallthru
          _
      $region100: #{tpu_custom_call.1} parent=5 // pred_fallthru
        _
    $region6: #{tpu_custom_call.1} parent=1 // loop_footer
      %s32 = sadd.s32 1, %s28
    $region7: #{tpu_custom_call.1} parent=1 // loop_footer_branch
      %27 = sbr.rel target = $region3
    $region8: #{tpu_custom_call.1} parent=1 // loop_exit
      _
    %1797 = vsyncpa [#allocation8], 1
    %s1798 = scalar_lea.sflag [#allocation8], 1
    %1799 = vsyncpa %s1798, 1
    %1800 = vsyncpa [#allocation13], 1
    %1801 = vsyncpa [#allocation9], 1
    %s1802 = scalar_lea.sflag [#allocation9], 1
    %1803 = vsyncpa %s1802, 1
    %1804 = vsyncpa [#allocation10], 1
    %s1805 = scalar_lea.sflag [#allocation10], 1
    %1806 = vsyncpa %s1805, 1

</llo_original>
